<compile_context>
chip_gen: v7x
topology: tpu7x:2x2x1
jax: 0.10.0
libtpu: 0.0.40
codegen_flags: <defaults>
</compile_context>

<pallas_src>
import functools
import math

import jax
import jax.numpy as jnp
from jax.experimental import pallas as pl
from jax.experimental.pallas import tpu as pltpu


# ----------------------------- in-kernel helpers -----------------------------

def _layernorm_f32(x, a, b, eps):
    """a * (x - mean) / (std + eps) + b with UNBIASED std (ddof=1), all f32."""
    d = x.shape[-1]
    mean = jnp.mean(x, axis=-1, keepdims=True)
    xc = x - mean
    var = jnp.sum(xc * xc, axis=-1, keepdims=True) * (1.0 / (d - 1))
    denom = jnp.sqrt(var) + eps
    inv = pl.reciprocal(denom, approx=True)      # EUP slot
    inv = inv * (2.0 - denom * inv)              # one Newton step -> ~f32 exact
    return a * (xc * inv) + b


def _mha_f32(x_res, xn, kv, keep, wq, wk, wv, wo, bq, bk, bv, bo,
             n_heads, d_head):
    """Fused multi-head attention sublayer: returns x_res + MHA(xn, kv)."""
    sq, d = xn.shape
    sk = kv.shape[0]
    bf16 = jnp.bfloat16
    scale = jnp.float32(1.0 / math.sqrt(d_head))

    xn_b = xn.astype(bf16)
    kv_b = kv.astype(bf16)
    # QKV projections: full contraction depth D on the MXU, bf16 in / f32 acc.
    q = (jnp.dot(xn_b, wq, preferred_element_type=jnp.float32) + bq) * scale
    k = jnp.dot(kv_b, wk, preferred_element_type=jnp.float32) + bk
    v = jnp.dot(kv_b, wv, preferred_element_type=jnp.float32) + bv

    # Head-major layout (H, S, dh) -> one batched dot_general per matmul.
    qh = jnp.transpose(q.reshape(sq, n_heads, d_head), (1, 0, 2))
    kh = jnp.transpose(k.reshape(sk, n_heads, d_head), (1, 0, 2))
    vh = jnp.transpose(v.reshape(sk, n_heads, d_head), (1, 0, 2))

    s = jnp.einsum("hqd,hkd->hqk", qh.astype(bf16), kh.astype(bf16),
                   preferred_element_type=jnp.float32)           # (H, Sq, Sk)
    s = jnp.where(keep[None, :, :], s, jnp.float32(-1e9))         # f32 fill
    s = s - jnp.max(s, axis=-1, keepdims=True)
    p = jnp.exp(s)
    p = p * pl.reciprocal(jnp.sum(p, axis=-1, keepdims=True), approx=True)

    ctx = jnp.einsum("hqk,hkd->hqd", p.astype(bf16), vh.astype(bf16),
                     preferred_element_type=jnp.float32)          # (H, Sq, dh)
    ctx = jnp.transpose(ctx, (1, 0, 2)).reshape(sq, d)            # (Sq, D)

    # ONE output projection with contraction depth D (no per-head Wo slices).
    out = jnp.dot(ctx.astype(bf16), wo, preferred_element_type=jnp.float32)
    return x_res + out + bo


def _ffn_f32(x_res, xn, w1, b1, w2, b2):
    bf16 = jnp.bfloat16
    h = jnp.dot(xn.astype(bf16), w1, preferred_element_type=jnp.float32) + b1
    h = jnp.maximum(h, 0.0)
    out = jnp.dot(h.astype(bf16), w2, preferred_element_type=jnp.float32) + b2
    return x_res + out


# ----------------------------- fused layer kernel -----------------------------

def decoder_layer_kernel(
        x_ref, mem_ref, tgt_m_ref, src_m_ref,
        ln0a_ref, ln0b_ref, ln1a_ref, ln1b_ref, ln2a_ref, ln2b_ref,
        wq0_ref, wk0_ref, wv0_ref, wo0_ref, bq0_ref, bk0_ref, bv0_ref, bo0_ref,
        wq1_ref, wk1_ref, wv1_ref, wo1_ref, bq1_ref, bk1_ref, bv1_ref, bo1_ref,
        w1_ref, b1_ref, w2_ref, b2_ref,
        fna_ref, fnb_ref,
        o_ref, *, n_heads, d_head, eps, apply_final_ln):
    # One grid step == one batch element; everything below stays in VMEM/vregs.
    x = x_ref[0].astype(jnp.float32)             # (Sq, D) residual stream
    mem = mem_ref[0].astype(jnp.float32)         # (Sk, D) encoder memory
    tgt_keep = tgt_m_ref[0] != 0                 # (Sq, Sq) bool, hoisted once
    src_keep = src_m_ref[0] != 0                 # (Sq, Sk) bool, hoisted once

    # sublayer 0: masked self-attention (pre-LN, residual)
    xn = _layernorm_f32(x, ln0a_ref[...], ln0b_ref[...], eps)
    x = _mha_f32(x, xn, xn, tgt_keep,
                 wq0_ref[...], wk0_ref[...], wv0_ref[...], wo0_ref[...],
                 bq0_ref[...], bk0_ref[...], bv0_ref[...], bo0_ref[...],
                 n_heads, d_head)

    # sublayer 1: cross-attention over (un-normalized) encoder memory
    xn = _layernorm_f32(x, ln1a_ref[...], ln1b_ref[...], eps)
    x = _mha_f32(x, xn, mem, src_keep,
                 wq1_ref[...], wk1_ref[...], wv1_ref[...], wo1_ref[...],
                 bq1_ref[...], bk1_ref[...], bv1_ref[...], bo1_ref[...],
                 n_heads, d_head)

    # sublayer 2: position-wise feed-forward
    xn = _layernorm_f32(x, ln2a_ref[...], ln2b_ref[...], eps)
    x = _ffn_f32(x, xn, w1_ref[...], b1_ref[...], w2_ref[...], b2_ref[...])

    if apply_final_ln:                           # static flag: last layer only
        x = _layernorm_f32(x, fna_ref[...], fnb_ref[...], eps)

    o_ref[0] = x.astype(o_ref.dtype)


# ----------------------------- pallas_call wrapper -----------------------------

def pallas_decoder_layer(x, memory, tgt_mask_i8, src_mask_i8, lp, final_ln,
                         n_heads, *, apply_final_ln, eps=1e-6):
    B, Sq, D = x.shape
    Sk = memory.shape[1]
    d_head = D // n_heads
    d_ff = lp["ffn"]["w1"].shape[1]

    row3 = lambda b: (b, 0, 0)
    rep2 = lambda b: (0, 0)
    to_bf16 = lambda w: w.astype(jnp.bfloat16)   # halves weight DMA bytes

    args = [x, memory, tgt_mask_i8, src_mask_i8]
    in_specs = [
        pl.BlockSpec((1, Sq, D), row3),          # x (residual stream)
        pl.BlockSpec((1, Sk, D), row3),          # encoder memory
        pl.BlockSpec((1, Sq, Sq), row3),         # tgt mask (int8)
        pl.BlockSpec((1, Sq, Sk), row3),         # src mask (int8)
    ]
    for i in range(3):                           # sublayer LayerNorm params
        args += [lp["ln"][i]["a"], lp["ln"][i]["b"]]
        in_specs += [pl.BlockSpec((1, D), rep2)] * 2
    for attn in (lp["self_attn"], lp["src_attn"]):
        args += [to_bf16(attn["wq"]), to_bf16(attn["wk"]),
                 to_bf16(attn["wv"]), to_bf16(attn["wo"])]
        in_specs += [pl.BlockSpec((D, D), rep2)] * 4
        args += [attn["bq"], attn["bk"], attn["bv"], attn["bo"]]
        in_specs += [pl.BlockSpec((1, D), rep2)] * 4
    ffn = lp["ffn"]
    args += [to_bf16(ffn["w1"]), ffn["b1"], to_bf16(ffn["w2"]), ffn["b2"]]
    in_specs += [pl.BlockSpec((D, d_ff), rep2), pl.BlockSpec((1, d_ff), rep2),
                 pl.BlockSpec((d_ff, D), rep2), pl.BlockSpec((1, D), rep2)]
    args += [final_ln["a"], final_ln["b"]]       # final LN (last layer only)
    in_specs += [pl.BlockSpec((1, D), rep2)] * 2

    kernel = functools.partial(decoder_layer_kernel, n_heads=n_heads,
                               d_head=d_head, eps=eps,
                               apply_final_ln=apply_final_ln)
    return pl.pallas_call(
        kernel,
        out_shape=jax.ShapeDtypeStruct((B, Sq, D), x.dtype),
        grid=(B,),
        in_specs=in_specs,
        out_specs=pl.BlockSpec((1, Sq, D), row3),
        compiler_params=pltpu.CompilerParams(
            dimension_semantics=("parallel",)),
        # TODO(synk): set vmem_limit_bytes explicitly for production-size
        #             configs (default scoped VMEM is 16/32 MiB).
    )(*args)


# ----------------------------- Decoder forward -----------------------------

def decoder_forward_pallas(x, memory, src_mask, tgt_mask, params, n_heads):
    tgt_i8 = (tgt_mask > 0).astype(jnp.int8)     # 4x smaller DMA than f32
    src_i8 = (src_mask > 0).astype(jnp.int8)
    n_layers = len(params["layers"])
    for li, lp in enumerate(params["layers"]):
        x = pallas_decoder_layer(
            x, memory, tgt_i8, src_i8, lp, params["norm"], n_heads,
            apply_final_ln=(li == n_layers - 1))
    return x


# ----------------------------- plain-JAX reference -----------------------------

def _layernorm_ref(x, a, b, eps=1e-6):
    mean = jnp.mean(x, -1, keepdims=True)
    std = jnp.std(x, -1, keepdims=True, ddof=1)
    return a * (x - mean) / (std + eps) + b


def _mha_ref(xq, xkv, mask, res, w, n_heads):
    B, Sq, D = xq.shape
    Sk = xkv.shape[1]
    dh = D // n_heads
    q = (xq @ w["wq"] + w["bq"]).reshape(B, Sq, n_heads, dh).transpose(0, 2, 1, 3)
    k = (xkv @ w["wk"] + w["bk"]).reshape(B, Sk, n_heads, dh).transpose(0, 2, 1, 3)
    v = (xkv @ w["wv"] + w["bv"]).reshape(B, Sk, n_heads, dh).transpose(0, 2, 1, 3)
    s = jnp.einsum("bhqd,bhkd->bhqk", q, k) / math.sqrt(dh)
    s = jnp.where(mask[:, None] > 0, s, -1e9)
    p = jax.nn.softmax(s, axis=-1)
    ctx = jnp.einsum("bhqk,bhkd->bhqd", p, v).transpose(0, 2, 1, 3).reshape(B, Sq, D)
    return res + ctx @ w["wo"] + w["bo"]


def _ffn_ref(x, res, w):
    h = jnp.maximum(x @ w["w1"] + w["b1"], 0.0)
    return res + h @ w["w2"] + w["b2"]


def decoder_forward_ref(x, memory, src_mask, tgt_mask, params, n_heads):
    for lp in params["layers"]:
        xn = _layernorm_ref(x, lp["ln"][0]["a"], lp["ln"][0]["b"])
        x = _mha_ref(xn, xn, tgt_mask, x, lp["self_attn"], n_heads)
        xn = _layernorm_ref(x, lp["ln"][1]["a"], lp["ln"][1]["b"])
        x = _mha_ref(xn, memory, src_mask, x, lp["src_attn"], n_heads)
        xn = _layernorm_ref(x, lp["ln"][2]["a"], lp["ln"][2]["b"])
        x = _ffn_ref(xn, x, lp["ffn"])
    return _layernorm_ref(x, params["norm"]["a"], params["norm"]["b"])


# ----------------------------- parameter init -----------------------------

def init_decoder_params(key, n_layers, d_model, d_ff):
    ks = iter(jax.random.split(key, 16))

    def linear(k, fan_in, fan_out):
        w = jax.random.normal(k, (fan_in, fan_out), jnp.float32) * 0.02
        b = jnp.zeros((1, fan_out), jnp.float32)
        return w, b

    def attn_params():
        p = {}
        for name in ("q", "k", "v", "o"):
            w, b = linear(next(ks), d_model, d_model)
            p["w" + name] = w
            p["b" + name] = b
        return p

    layer = {
        "self_attn": attn_params(),
        "src_attn": attn_params(),
        "ln": [{"a": jnp.ones((1, d_model), jnp.float32),
                "b": jnp.zeros((1, d_model), jnp.float32)} for _ in range(3)],
    }
    w1, b1 = linear(next(ks), d_model, d_ff)
    w2, b2 = linear(next(ks), d_ff, d_model)
    layer["ffn"] = {"w1": w1, "b1": b1, "w2": w2, "b2": b2}

    # clones() deep-copies the SAME initialized layer N times -> shared init.
    return {
        "layers": [jax.tree.map(lambda t: t, layer) for _ in range(n_layers)],
        "norm": {"a": jnp.ones((1, d_model), jnp.float32),
                 "b": jnp.zeros((1, d_model), jnp.float32)},
    }


# ----------------------------- main -----------------------------

if __name__ == "__main__":
    # D kept a multiple of 128 so output stores are lane-dense (perf review).
    B, S_TGT, S_SRC, D, H, D_FF, N_LAYERS = 2, 8, 8, 128, 4, 256, 2

    key = jax.random.PRNGKey(0)
    kx, km, kp = jax.random.split(key, 3)
    x = jax.random.normal(kx, (B, S_TGT, D), jnp.float32)        # target embeddings
    memory = jax.random.normal(km, (B, S_SRC, D), jnp.float32)   # encoder output
    tgt_mask = jnp.broadcast_to(
        jnp.tril(jnp.ones((S_TGT, S_TGT), jnp.float32)), (B, S_TGT, S_TGT))
    src_mask = jnp.ones((B, S_TGT, S_SRC), jnp.float32)

    params = init_decoder_params(kp, N_LAYERS, D, D_FF)

    out = decoder_forward_pallas(x, memory, src_mask, tgt_mask, params, H)
    out = jax.block_until_ready(out)

    ref = decoder_forward_ref(x, memory, src_mask, tgt_mask, params, H)
    assert out.shape == (B, S_TGT, D)
    max_err = float(jnp.max(jnp.abs(out - ref)))
    assert jnp.allclose(out, ref, atol=2e-2, rtol=2e-2), f"max abs err {max_err}"

    print("KERNEL_OK")
</pallas_src>

<mosaic_0001>
module attributes {stable_mosaic.version = 11 : i64} {
  func.func @decoder_layer_kernel(%arg0: i32, %arg1: memref<1x8x128xf32, #tpu.memory_space<vmem>>, %arg2: memref<1x8x128xf32, #tpu.memory_space<vmem>>, %arg3: memref<1x8x8xi8, #tpu.memory_space<vmem>>, %arg4: memref<1x8x8xi8, #tpu.memory_space<vmem>>, %arg5: memref<1x128xf32, #tpu.memory_space<vmem>>, %arg6: memref<1x128xf32, #tpu.memory_space<vmem>>, %arg7: memref<1x128xf32, #tpu.memory_space<vmem>>, %arg8: memref<1x128xf32, #tpu.memory_space<vmem>>, %arg9: memref<1x128xf32, #tpu.memory_space<vmem>>, %arg10: memref<1x128xf32, #tpu.memory_space<vmem>>, %arg11: memref<128x128xbf16, #tpu.memory_space<vmem>>, %arg12: memref<128x128xbf16, #tpu.memory_space<vmem>>, %arg13: memref<128x128xbf16, #tpu.memory_space<vmem>>, %arg14: memref<128x128xbf16, #tpu.memory_space<vmem>>, %arg15: memref<1x128xf32, #tpu.memory_space<vmem>>, %arg16: memref<1x128xf32, #tpu.memory_space<vmem>>, %arg17: memref<1x128xf32, #tpu.memory_space<vmem>>, %arg18: memref<1x128xf32, #tpu.memory_space<vmem>>, %arg19: memref<128x128xbf16, #tpu.memory_space<vmem>>, %arg20: memref<128x128xbf16, #tpu.memory_space<vmem>>, %arg21: memref<128x128xbf16, #tpu.memory_space<vmem>>, %arg22: memref<128x128xbf16, #tpu.memory_space<vmem>>, %arg23: memref<1x128xf32, #tpu.memory_space<vmem>>, %arg24: memref<1x128xf32, #tpu.memory_space<vmem>>, %arg25: memref<1x128xf32, #tpu.memory_space<vmem>>, %arg26: memref<1x128xf32, #tpu.memory_space<vmem>>, %arg27: memref<128x256xbf16, #tpu.memory_space<vmem>>, %arg28: memref<1x256xf32, #tpu.memory_space<vmem>>, %arg29: memref<256x128xbf16, #tpu.memory_space<vmem>>, %arg30: memref<1x128xf32, #tpu.memory_space<vmem>>, %arg31: memref<1x128xf32, #tpu.memory_space<vmem>>, %arg32: memref<1x128xf32, #tpu.memory_space<vmem>>, %arg33: memref<1x8x128xf32, #tpu.memory_space<vmem>>) attributes {dimension_semantics = [#tpu.dimension_semantics<parallel>], iteration_bounds = array<i64: 2>, scalar_prefetch = 0 : i64, scratch_operands = 0 : i64, tpu.core_type = #tpu.core_type<tc>, window_params = [{transform_indices = @transform_0, window_bounds = array<i64: 1, 8, 128>}, {transform_indices = @transform_1, window_bounds = array<i64: 1, 8, 128>}, {transform_indices = @transform_2, window_bounds = array<i64: 1, 8, 8>}, {transform_indices = @transform_3, window_bounds = array<i64: 1, 8, 8>}, {pipeline_mode = #tpu.pipeline_mode<synchronous>, transform_indices = @transform_4, window_bounds = array<i64: 1, 128>}, {pipeline_mode = #tpu.pipeline_mode<synchronous>, transform_indices = @transform_5, window_bounds = array<i64: 1, 128>}, {pipeline_mode = #tpu.pipeline_mode<synchronous>, transform_indices = @transform_6, window_bounds = array<i64: 1, 128>}, {pipeline_mode = #tpu.pipeline_mode<synchronous>, transform_indices = @transform_7, window_bounds = array<i64: 1, 128>}, {pipeline_mode = #tpu.pipeline_mode<synchronous>, transform_indices = @transform_8, window_bounds = array<i64: 1, 128>}, {pipeline_mode = #tpu.pipeline_mode<synchronous>, transform_indices = @transform_9, window_bounds = array<i64: 1, 128>}, {pipeline_mode = #tpu.pipeline_mode<synchronous>, transform_indices = @transform_10, window_bounds = array<i64: 128, 128>}, {pipeline_mode = #tpu.pipeline_mode<synchronous>, transform_indices = @transform_11, window_bounds = array<i64: 128, 128>}, {pipeline_mode = #tpu.pipeline_mode<synchronous>, transform_indices = @transform_12, window_bounds = array<i64: 128, 128>}, {pipeline_mode = #tpu.pipeline_mode<synchronous>, transform_indices = @transform_13, window_bounds = array<i64: 128, 128>}, {pipeline_mode = #tpu.pipeline_mode<synchronous>, transform_indices = @transform_14, window_bounds = array<i64: 1, 128>}, {pipeline_mode = #tpu.pipeline_mode<synchronous>, transform_indices = @transform_15, window_bounds = array<i64: 1, 128>}, {pipeline_mode = #tpu.pipeline_mode<synchronous>, transform_indices = @transform_16, window_bounds = array<i64: 1, 128>}, {pipeline_mode = #tpu.pipeline_mode<synchronous>, transform_indices = @transform_17, window_bounds = array<i64: 1, 128>}, {pipeline_mode = #tpu.pipeline_mode<synchronous>, transform_indices = @transform_18, window_bounds = array<i64: 128, 128>}, {pipeline_mode = #tpu.pipeline_mode<synchronous>, transform_indices = @transform_19, window_bounds = array<i64: 128, 128>}, {pipeline_mode = #tpu.pipeline_mode<synchronous>, transform_indices = @transform_20, window_bounds = array<i64: 128, 128>}, {pipeline_mode = #tpu.pipeline_mode<synchronous>, transform_indices = @transform_21, window_bounds = array<i64: 128, 128>}, {pipeline_mode = #tpu.pipeline_mode<synchronous>, transform_indices = @transform_22, window_bounds = array<i64: 1, 128>}, {pipeline_mode = #tpu.pipeline_mode<synchronous>, transform_indices = @transform_23, window_bounds = array<i64: 1, 128>}, {pipeline_mode = #tpu.pipeline_mode<synchronous>, transform_indices = @transform_24, window_bounds = array<i64: 1, 128>}, {pipeline_mode = #tpu.pipeline_mode<synchronous>, transform_indices = @transform_25, window_bounds = array<i64: 1, 128>}, {pipeline_mode = #tpu.pipeline_mode<synchronous>, transform_indices = @transform_26, window_bounds = array<i64: 128, 256>}, {pipeline_mode = #tpu.pipeline_mode<synchronous>, transform_indices = @transform_27, window_bounds = array<i64: 1, 256>}, {pipeline_mode = #tpu.pipeline_mode<synchronous>, transform_indices = @transform_28, window_bounds = array<i64: 256, 128>}, {pipeline_mode = #tpu.pipeline_mode<synchronous>, transform_indices = @transform_29, window_bounds = array<i64: 1, 128>}, {pipeline_mode = #tpu.pipeline_mode<synchronous>, transform_indices = @transform_30, window_bounds = array<i64: 1, 128>}, {pipeline_mode = #tpu.pipeline_mode<synchronous>, transform_indices = @transform_31, window_bounds = array<i64: 1, 128>}, {transform_indices = @transform_32, window_bounds = array<i64: 1, 8, 128>}]} {
    %c0 = arith.constant 0 : index
    %c0_0 = arith.constant 0 : index
    %c0_1 = arith.constant 0 : index
    %0 = vector.load %arg1[%c0, %c0_0, %c0_1] : memref<1x8x128xf32, #tpu.memory_space<vmem>>, vector<1x8x128xf32>
    %1 = vector.shape_cast %0 : vector<1x8x128xf32> to vector<8x128xf32>
    %c0_2 = arith.constant 0 : index
    %c0_3 = arith.constant 0 : index
    %c0_4 = arith.constant 0 : index
    %2 = vector.load %arg2[%c0_2, %c0_3, %c0_4] : memref<1x8x128xf32, #tpu.memory_space<vmem>>, vector<1x8x128xf32>
    %3 = vector.shape_cast %2 : vector<1x8x128xf32> to vector<8x128xf32>
    %c0_5 = arith.constant 0 : index
    %c0_6 = arith.constant 0 : index
    %c0_7 = arith.constant 0 : index
    %4 = vector.load %arg3[%c0_5, %c0_6, %c0_7] : memref<1x8x8xi8, #tpu.memory_space<vmem>>, vector<1x8x8xi8>
    %5 = vector.shape_cast %4 : vector<1x8x8xi8> to vector<8x8xi8>
    %c0_i8 = arith.constant 0 : i8
    %6 = vector.broadcast %c0_i8 : i8 to vector<8x8xi8>
    %7 = arith.cmpi ne, %5, %6 : vector<8x8xi8>
    %c0_8 = arith.constant 0 : index
    %c0_9 = arith.constant 0 : index
    %c0_10 = arith.constant 0 : index
    %8 = vector.load %arg4[%c0_8, %c0_9, %c0_10] : memref<1x8x8xi8, #tpu.memory_space<vmem>>, vector<1x8x8xi8>
    %9 = vector.shape_cast %8 : vector<1x8x8xi8> to vector<8x8xi8>
    %c0_i8_11 = arith.constant 0 : i8
    %10 = vector.broadcast %c0_i8_11 : i8 to vector<8x8xi8>
    %11 = arith.cmpi ne, %9, %10 : vector<8x8xi8>
    %c0_12 = arith.constant 0 : index
    %c0_13 = arith.constant 0 : index
    %12 = vector.load %arg5[%c0_12, %c0_13] : memref<1x128xf32, #tpu.memory_space<vmem>>, vector<1x128xf32>
    %c0_14 = arith.constant 0 : index
    %c0_15 = arith.constant 0 : index
    %13 = vector.load %arg6[%c0_14, %c0_15] : memref<1x128xf32, #tpu.memory_space<vmem>>, vector<1x128xf32>
    %cst = arith.constant dense<0.000000e+00> : vector<8xf32>
    %14 = vector.multi_reduction <add>, %1, %cst [1] : vector<8x128xf32> to vector<8xf32>
    %15 = vector.shape_cast %14 : vector<8xf32> to vector<8x1xf32>
    %cst_16 = arith.constant 1.280000e+02 : f32
    %16 = vector.broadcast %cst_16 : f32 to vector<8x1xf32>
    %17 = arith.divf %15, %16 : vector<8x1xf32>
    %18 = vector.broadcast %17 : vector<8x1xf32> to vector<8x128xf32>
    %19 = arith.subf %1, %18 : vector<8x128xf32>
    %20 = arith.mulf %19, %19 : vector<8x128xf32>
    %cst_17 = arith.constant dense<0.000000e+00> : vector<8xf32>
    %21 = vector.multi_reduction <add>, %20, %cst_17 [1] : vector<8x128xf32> to vector<8xf32>
    %22 = vector.shape_cast %21 : vector<8xf32> to vector<8x1xf32>
    %cst_18 = arith.constant 0.00787401571 : f32
    %23 = vector.broadcast %cst_18 : f32 to vector<8x1xf32>
    %24 = arith.mulf %22, %23 : vector<8x1xf32>
    %25 = math.sqrt %24 : vector<8x1xf32>
    %cst_19 = arith.constant 9.99999997E-7 : f32
    %26 = vector.broadcast %cst_19 : f32 to vector<8x1xf32>
    %27 = arith.addf %25, %26 : vector<8x1xf32>
    %28 = tpu.reciprocal %27 {approx = true} : vector<8x1xf32> -> vector<8x1xf32>
    %29 = arith.mulf %27, %28 : vector<8x1xf32>
    %cst_20 = arith.constant 2.000000e+00 : f32
    %30 = vector.broadcast %cst_20 : f32 to vector<8x1xf32>
    %31 = arith.subf %30, %29 : vector<8x1xf32>
    %32 = arith.mulf %28, %31 : vector<8x1xf32>
    %33 = vector.broadcast %32 : vector<8x1xf32> to vector<8x128xf32>
    %34 = arith.mulf %19, %33 : vector<8x128xf32>
    %35 = vector.broadcast %12 : vector<1x128xf32> to vector<8x128xf32>
    %36 = arith.mulf %35, %34 : vector<8x128xf32>
    %37 = vector.broadcast %13 : vector<1x128xf32> to vector<8x128xf32>
    %38 = arith.addf %36, %37 : vector<8x128xf32>
    %c0_21 = arith.constant 0 : index
    %c0_22 = arith.constant 0 : index
    %39 = vector.load %arg11[%c0_21, %c0_22] : memref<128x128xbf16, #tpu.memory_space<vmem>>, vector<128x128xbf16>
    %c0_23 = arith.constant 0 : index
    %c0_24 = arith.constant 0 : index
    %40 = vector.load %arg12[%c0_23, %c0_24] : memref<128x128xbf16, #tpu.memory_space<vmem>>, vector<128x128xbf16>
    %c0_25 = arith.constant 0 : index
    %c0_26 = arith.constant 0 : index
    %41 = vector.load %arg13[%c0_25, %c0_26] : memref<128x128xbf16, #tpu.memory_space<vmem>>, vector<128x128xbf16>
    %c0_27 = arith.constant 0 : index
    %c0_28 = arith.constant 0 : index
    %42 = vector.load %arg14[%c0_27, %c0_28] : memref<128x128xbf16, #tpu.memory_space<vmem>>, vector<128x128xbf16>
    %c0_29 = arith.constant 0 : index
    %c0_30 = arith.constant 0 : index
    %43 = vector.load %arg15[%c0_29, %c0_30] : memref<1x128xf32, #tpu.memory_space<vmem>>, vector<1x128xf32>
    %c0_31 = arith.constant 0 : index
    %c0_32 = arith.constant 0 : index
    %44 = vector.load %arg16[%c0_31, %c0_32] : memref<1x128xf32, #tpu.memory_space<vmem>>, vector<1x128xf32>
    %c0_33 = arith.constant 0 : index
    %c0_34 = arith.constant 0 : index
    %45 = vector.load %arg17[%c0_33, %c0_34] : memref<1x128xf32, #tpu.memory_space<vmem>>, vector<1x128xf32>
    %c0_35 = arith.constant 0 : index
    %c0_36 = arith.constant 0 : index
    %46 = vector.load %arg18[%c0_35, %c0_36] : memref<1x128xf32, #tpu.memory_space<vmem>>, vector<1x128xf32>
    %47 = arith.truncf %38 : vector<8x128xf32> to vector<8x128xbf16>
    %48 = arith.truncf %38 : vector<8x128xf32> to vector<8x128xbf16>
    %cst_37 = arith.constant dense<0.000000e+00> : vector<8x128xf32>
    %49 = tpu.matmul %47, %39, %cst_37 {dimension_numbers = #tpu.dot_dimension_numbers<[1], [0], [0], [1], [0, 0, 1, 1], [], []>} : vector<8x128xbf16>, vector<128x128xbf16>, vector<8x128xf32> -> vector<8x128xf32>
    %50 = vector.broadcast %43 : vector<1x128xf32> to vector<8x128xf32>
    %51 = arith.addf %49, %50 : vector<8x128xf32>
    %cst_38 = arith.constant 0.176776692 : f32
    %52 = vector.broadcast %cst_38 : f32 to vector<8x128xf32>
    %53 = arith.mulf %51, %52 : vector<8x128xf32>
    %cst_39 = arith.constant dense<0.000000e+00> : vector<8x128xf32>
    %54 = tpu.matmul %48, %40, %cst_39 {dimension_numbers = #tpu.dot_dimension_numbers<[1], [0], [0], [1], [0, 0, 1, 1], [], []>} : vector<8x128xbf16>, vector<128x128xbf16>, vector<8x128xf32> -> vector<8x128xf32>
    %55 = vector.broadcast %44 : vector<1x128xf32> to vector<8x128xf32>
    %56 = arith.addf %54, %55 : vector<8x128xf32>
    %cst_40 = arith.constant dense<0.000000e+00> : vector<8x128xf32>
    %57 = tpu.matmul %48, %41, %cst_40 {dimension_numbers = #tpu.dot_dimension_numbers<[1], [0], [0], [1], [0, 0, 1, 1], [], []>} : vector<8x128xbf16>, vector<128x128xbf16>, vector<8x128xf32> -> vector<8x128xf32>
    %58 = vector.broadcast %45 : vector<1x128xf32> to vector<8x128xf32>
    %59 = arith.addf %57, %58 : vector<8x128xf32>
    %60 = vector.shape_cast %53 : vector<8x128xf32> to vector<8x4x32xf32>
    %61 = tpu.transpose %60, [1, 0, 2] : vector<8x4x32xf32> -> vector<4x8x32xf32>
    %62 = vector.shape_cast %56 : vector<8x128xf32> to vector<8x4x32xf32>
    %63 = tpu.transpose %62, [1, 0, 2] : vector<8x4x32xf32> -> vector<4x8x32xf32>
    %64 = vector.shape_cast %59 : vector<8x128xf32> to vector<8x4x32xf32>
    %65 = tpu.transpose %64, [1, 0, 2] : vector<8x4x32xf32> -> vector<4x8x32xf32>
    %66 = arith.truncf %61 : vector<4x8x32xf32> to vector<4x8x32xbf16>
    %67 = arith.truncf %63 : vector<4x8x32xf32> to vector<4x8x32xbf16>
    "tpu.trace_start"() <{level = 10 : i32, message = "hqd,hkd->hqk"}> : () -> ()
    %cst_41 = arith.constant dense<0.000000e+00> : vector<4x8x8xf32>
    %68 = tpu.matmul %66, %67, %cst_41 {dimension_numbers = #tpu.dot_dimension_numbers<[2], [2], [1], [1], [0, 0, 0, 1, 1, 1], [0], [0]>} : vector<4x8x32xbf16>, vector<4x8x32xbf16>, vector<4x8x8xf32> -> vector<4x8x8xf32>
    "tpu.trace_stop"() : () -> ()
    %69 = vector.shape_cast %7 : vector<8x8xi1> to vector<1x8x8xi1>
    %cst_42 = arith.constant -1.000000e+09 : f32
    %70 = vector.shape_cast %69 : vector<1x8x8xi1> to vector<1x8x8xi1>
    %71 = vector.broadcast %70 : vector<1x8x8xi1> to vector<4x8x8xi1>
    %72 = vector.broadcast %cst_42 : f32 to vector<4x8x8xf32>
    %73 = arith.select %71, %68, %72 : vector<4x8x8xi1>, vector<4x8x8xf32>
    %cst_43 = arith.constant dense<0xFF800000> : vector<4x8xf32>
    %74 = vector.multi_reduction <maximumf>, %73, %cst_43 [2] : vector<4x8x8xf32> to vector<4x8xf32>
    %75 = vector.shape_cast %74 : vector<4x8xf32> to vector<4x8x1xf32>
    %76 = vector.broadcast %75 : vector<4x8x1xf32> to vector<4x8x8xf32>
    %77 = arith.subf %73, %76 : vector<4x8x8xf32>
    %78 = math.exp %77 : vector<4x8x8xf32>
    %cst_44 = arith.constant dense<0.000000e+00> : vector<4x8xf32>
    %79 = vector.multi_reduction <add>, %78, %cst_44 [2] : vector<4x8x8xf32> to vector<4x8xf32>
    %80 = vector.shape_cast %79 : vector<4x8xf32> to vector<4x8x1xf32>
    %81 = tpu.reciprocal %80 {approx = true} : vector<4x8x1xf32> -> vector<4x8x1xf32>
    %82 = vector.broadcast %81 : vector<4x8x1xf32> to vector<4x8x8xf32>
    %83 = arith.mulf %78, %82 : vector<4x8x8xf32>
    %84 = arith.truncf %83 : vector<4x8x8xf32> to vector<4x8x8xbf16>
    %85 = arith.truncf %65 : vector<4x8x32xf32> to vector<4x8x32xbf16>
    "tpu.trace_start"() <{level = 10 : i32, message = "hqk,hkd->hqd"}> : () -> ()
    %cst_45 = arith.constant dense<0.000000e+00> : vector<4x8x32xf32>
    %86 = tpu.matmul %84, %85, %cst_45 {dimension_numbers = #tpu.dot_dimension_numbers<[2], [1], [1], [2], [0, 0, 0, 1, 1, 2], [0], [0]>} : vector<4x8x8xbf16>, vector<4x8x32xbf16>, vector<4x8x32xf32> -> vector<4x8x32xf32>
    "tpu.trace_stop"() : () -> ()
    %87 = tpu.transpose %86, [1, 0, 2] : vector<4x8x32xf32> -> vector<8x4x32xf32>
    %88 = vector.shape_cast %87 : vector<8x4x32xf32> to vector<8x128xf32>
    %89 = arith.truncf %88 : vector<8x128xf32> to vector<8x128xbf16>
    %cst_46 = arith.constant dense<0.000000e+00> : vector<8x128xf32>
    %90 = tpu.matmul %89, %42, %cst_46 {dimension_numbers = #tpu.dot_dimension_numbers<[1], [0], [0], [1], [0, 0, 1, 1], [], []>} : vector<8x128xbf16>, vector<128x128xbf16>, vector<8x128xf32> -> vector<8x128xf32>
    %91 = arith.addf %1, %90 : vector<8x128xf32>
    %92 = vector.broadcast %46 : vector<1x128xf32> to vector<8x128xf32>
    %93 = arith.addf %91, %92 : vector<8x128xf32>
    %c0_47 = arith.constant 0 : index
    %c0_48 = arith.constant 0 : index
    %94 = vector.load %arg7[%c0_47, %c0_48] : memref<1x128xf32, #tpu.memory_space<vmem>>, vector<1x128xf32>
    %c0_49 = arith.constant 0 : index
    %c0_50 = arith.constant 0 : index
    %95 = vector.load %arg8[%c0_49, %c0_50] : memref<1x128xf32, #tpu.memory_space<vmem>>, vector<1x128xf32>
    %cst_51 = arith.constant dense<0.000000e+00> : vector<8xf32>
    %96 = vector.multi_reduction <add>, %93, %cst_51 [1] : vector<8x128xf32> to vector<8xf32>
    %97 = vector.shape_cast %96 : vector<8xf32> to vector<8x1xf32>
    %cst_52 = arith.constant 1.280000e+02 : f32
    %98 = vector.broadcast %cst_52 : f32 to vector<8x1xf32>
    %99 = arith.divf %97, %98 : vector<8x1xf32>
    %100 = vector.broadcast %99 : vector<8x1xf32> to vector<8x128xf32>
    %101 = arith.subf %93, %100 : vector<8x128xf32>
    %102 = arith.mulf %101, %101 : vector<8x128xf32>
    %cst_53 = arith.constant dense<0.000000e+00> : vector<8xf32>
    %103 = vector.multi_reduction <add>, %102, %cst_53 [1] : vector<8x128xf32> to vector<8xf32>
    %104 = vector.shape_cast %103 : vector<8xf32> to vector<8x1xf32>
    %cst_54 = arith.constant 0.00787401571 : f32
    %105 = vector.broadcast %cst_54 : f32 to vector<8x1xf32>
    %106 = arith.mulf %104, %105 : vector<8x1xf32>
    %107 = math.sqrt %106 : vector<8x1xf32>
    %cst_55 = arith.constant 9.99999997E-7 : f32
    %108 = vector.broadcast %cst_55 : f32 to vector<8x1xf32>
    %109 = arith.addf %107, %108 : vector<8x1xf32>
    %110 = tpu.reciprocal %109 {approx = true} : vector<8x1xf32> -> vector<8x1xf32>
    %111 = arith.mulf %109, %110 : vector<8x1xf32>
    %cst_56 = arith.constant 2.000000e+00 : f32
    %112 = vector.broadcast %cst_56 : f32 to vector<8x1xf32>
    %113 = arith.subf %112, %111 : vector<8x1xf32>
    %114 = arith.mulf %110, %113 : vector<8x1xf32>
    %115 = vector.broadcast %114 : vector<8x1xf32> to vector<8x128xf32>
    %116 = arith.mulf %101, %115 : vector<8x128xf32>
    %117 = vector.broadcast %94 : vector<1x128xf32> to vector<8x128xf32>
    %118 = arith.mulf %117, %116 : vector<8x128xf32>
    %119 = vector.broadcast %95 : vector<1x128xf32> to vector<8x128xf32>
    %120 = arith.addf %118, %119 : vector<8x128xf32>
    %c0_57 = arith.constant 0 : index
    %c0_58 = arith.constant 0 : index
    %121 = vector.load %arg19[%c0_57, %c0_58] : memref<128x128xbf16, #tpu.memory_space<vmem>>, vector<128x128xbf16>
    %c0_59 = arith.constant 0 : index
    %c0_60 = arith.constant 0 : index
    %122 = vector.load %arg20[%c0_59, %c0_60] : memref<128x128xbf16, #tpu.memory_space<vmem>>, vector<128x128xbf16>
    %c0_61 = arith.constant 0 : index
    %c0_62 = arith.constant 0 : index
    %123 = vector.load %arg21[%c0_61, %c0_62] : memref<128x128xbf16, #tpu.memory_space<vmem>>, vector<128x128xbf16>
    %c0_63 = arith.constant 0 : index
    %c0_64 = arith.constant 0 : index
    %124 = vector.load %arg22[%c0_63, %c0_64] : memref<128x128xbf16, #tpu.memory_space<vmem>>, vector<128x128xbf16>
    %c0_65 = arith.constant 0 : index
    %c0_66 = arith.constant 0 : index
    %125 = vector.load %arg23[%c0_65, %c0_66] : memref<1x128xf32, #tpu.memory_space<vmem>>, vector<1x128xf32>
    %c0_67 = arith.constant 0 : index
    %c0_68 = arith.constant 0 : index
    %126 = vector.load %arg24[%c0_67, %c0_68] : memref<1x128xf32, #tpu.memory_space<vmem>>, vector<1x128xf32>
    %c0_69 = arith.constant 0 : index
    %c0_70 = arith.constant 0 : index
    %127 = vector.load %arg25[%c0_69, %c0_70] : memref<1x128xf32, #tpu.memory_space<vmem>>, vector<1x128xf32>
    %c0_71 = arith.constant 0 : index
    %c0_72 = arith.constant 0 : index
    %128 = vector.load %arg26[%c0_71, %c0_72] : memref<1x128xf32, #tpu.memory_space<vmem>>, vector<1x128xf32>
    %129 = arith.truncf %120 : vector<8x128xf32> to vector<8x128xbf16>
    %130 = arith.truncf %3 : vector<8x128xf32> to vector<8x128xbf16>
    %cst_73 = arith.constant dense<0.000000e+00> : vector<8x128xf32>
    %131 = tpu.matmul %129, %121, %cst_73 {dimension_numbers = #tpu.dot_dimension_numbers<[1], [0], [0], [1], [0, 0, 1, 1], [], []>} : vector<8x128xbf16>, vector<128x128xbf16>, vector<8x128xf32> -> vector<8x128xf32>
    %132 = vector.broadcast %125 : vector<1x128xf32> to vector<8x128xf32>
    %133 = arith.addf %131, %132 : vector<8x128xf32>
    %cst_74 = arith.constant 0.176776692 : f32
    %134 = vector.broadcast %cst_74 : f32 to vector<8x128xf32>
    %135 = arith.mulf %133, %134 : vector<8x128xf32>
    %cst_75 = arith.constant dense<0.000000e+00> : vector<8x128xf32>
    %136 = tpu.matmul %130, %122, %cst_75 {dimension_numbers = #tpu.dot_dimension_numbers<[1], [0], [0], [1], [0, 0, 1, 1], [], []>} : vector<8x128xbf16>, vector<128x128xbf16>, vector<8x128xf32> -> vector<8x128xf32>
    %137 = vector.broadcast %126 : vector<1x128xf32> to vector<8x128xf32>
    %138 = arith.addf %136, %137 : vector<8x128xf32>
    %cst_76 = arith.constant dense<0.000000e+00> : vector<8x128xf32>
    %139 = tpu.matmul %130, %123, %cst_76 {dimension_numbers = #tpu.dot_dimension_numbers<[1], [0], [0], [1], [0, 0, 1, 1], [], []>} : vector<8x128xbf16>, vector<128x128xbf16>, vector<8x128xf32> -> vector<8x128xf32>
    %140 = vector.broadcast %127 : vector<1x128xf32> to vector<8x128xf32>
    %141 = arith.addf %139, %140 : vector<8x128xf32>
    %142 = vector.shape_cast %135 : vector<8x128xf32> to vector<8x4x32xf32>
    %143 = tpu.transpose %142, [1, 0, 2] : vector<8x4x32xf32> -> vector<4x8x32xf32>
    %144 = vector.shape_cast %138 : vector<8x128xf32> to vector<8x4x32xf32>
    %145 = tpu.transpose %144, [1, 0, 2] : vector<8x4x32xf32> -> vector<4x8x32xf32>
    %146 = vector.shape_cast %141 : vector<8x128xf32> to vector<8x4x32xf32>
    %147 = tpu.transpose %146, [1, 0, 2] : vector<8x4x32xf32> -> vector<4x8x32xf32>
    %148 = arith.truncf %143 : vector<4x8x32xf32> to vector<4x8x32xbf16>
    %149 = arith.truncf %145 : vector<4x8x32xf32> to vector<4x8x32xbf16>
    "tpu.trace_start"() <{level = 10 : i32, message = "hqd,hkd->hqk"}> : () -> ()
    %cst_77 = arith.constant dense<0.000000e+00> : vector<4x8x8xf32>
    %150 = tpu.matmul %148, %149, %cst_77 {dimension_numbers = #tpu.dot_dimension_numbers<[2], [2], [1], [1], [0, 0, 0, 1, 1, 1], [0], [0]>} : vector<4x8x32xbf16>, vector<4x8x32xbf16>, vector<4x8x8xf32> -> vector<4x8x8xf32>
    "tpu.trace_stop"() : () -> ()
    %151 = vector.shape_cast %11 : vector<8x8xi1> to vector<1x8x8xi1>
    %cst_78 = arith.constant -1.000000e+09 : f32
    %152 = vector.shape_cast %151 : vector<1x8x8xi1> to vector<1x8x8xi1>
    %153 = vector.broadcast %152 : vector<1x8x8xi1> to vector<4x8x8xi1>
    %154 = vector.broadcast %cst_78 : f32 to vector<4x8x8xf32>
    %155 = arith.select %153, %150, %154 : vector<4x8x8xi1>, vector<4x8x8xf32>
    %cst_79 = arith.constant dense<0xFF800000> : vector<4x8xf32>
    %156 = vector.multi_reduction <maximumf>, %155, %cst_79 [2] : vector<4x8x8xf32> to vector<4x8xf32>
    %157 = vector.shape_cast %156 : vector<4x8xf32> to vector<4x8x1xf32>
    %158 = vector.broadcast %157 : vector<4x8x1xf32> to vector<4x8x8xf32>
    %159 = arith.subf %155, %158 : vector<4x8x8xf32>
    %160 = math.exp %159 : vector<4x8x8xf32>
    %cst_80 = arith.constant dense<0.000000e+00> : vector<4x8xf32>
    %161 = vector.multi_reduction <add>, %160, %cst_80 [2] : vector<4x8x8xf32> to vector<4x8xf32>
    %162 = vector.shape_cast %161 : vector<4x8xf32> to vector<4x8x1xf32>
    %163 = tpu.reciprocal %162 {approx = true} : vector<4x8x1xf32> -> vector<4x8x1xf32>
    %164 = vector.broadcast %163 : vector<4x8x1xf32> to vector<4x8x8xf32>
    %165 = arith.mulf %160, %164 : vector<4x8x8xf32>
    %166 = arith.truncf %165 : vector<4x8x8xf32> to vector<4x8x8xbf16>
    %167 = arith.truncf %147 : vector<4x8x32xf32> to vector<4x8x32xbf16>
    "tpu.trace_start"() <{level = 10 : i32, message = "hqk,hkd->hqd"}> : () -> ()
    %cst_81 = arith.constant dense<0.000000e+00> : vector<4x8x32xf32>
    %168 = tpu.matmul %166, %167, %cst_81 {dimension_numbers = #tpu.dot_dimension_numbers<[2], [1], [1], [2], [0, 0, 0, 1, 1, 2], [0], [0]>} : vector<4x8x8xbf16>, vector<4x8x32xbf16>, vector<4x8x32xf32> -> vector<4x8x32xf32>
    "tpu.trace_stop"() : () -> ()
    %169 = tpu.transpose %168, [1, 0, 2] : vector<4x8x32xf32> -> vector<8x4x32xf32>
    %170 = vector.shape_cast %169 : vector<8x4x32xf32> to vector<8x128xf32>
    %171 = arith.truncf %170 : vector<8x128xf32> to vector<8x128xbf16>
    %cst_82 = arith.constant dense<0.000000e+00> : vector<8x128xf32>
    %172 = tpu.matmul %171, %124, %cst_82 {dimension_numbers = #tpu.dot_dimension_numbers<[1], [0], [0], [1], [0, 0, 1, 1], [], []>} : vector<8x128xbf16>, vector<128x128xbf16>, vector<8x128xf32> -> vector<8x128xf32>
    %173 = arith.addf %93, %172 : vector<8x128xf32>
    %174 = vector.broadcast %128 : vector<1x128xf32> to vector<8x128xf32>
    %175 = arith.addf %173, %174 : vector<8x128xf32>
    %c0_83 = arith.constant 0 : index
    %c0_84 = arith.constant 0 : index
    %176 = vector.load %arg9[%c0_83, %c0_84] : memref<1x128xf32, #tpu.memory_space<vmem>>, vector<1x128xf32>
    %c0_85 = arith.constant 0 : index
    %c0_86 = arith.constant 0 : index
    %177 = vector.load %arg10[%c0_85, %c0_86] : memref<1x128xf32, #tpu.memory_space<vmem>>, vector<1x128xf32>
    %cst_87 = arith.constant dense<0.000000e+00> : vector<8xf32>
    %178 = vector.multi_reduction <add>, %175, %cst_87 [1] : vector<8x128xf32> to vector<8xf32>
    %179 = vector.shape_cast %178 : vector<8xf32> to vector<8x1xf32>
    %cst_88 = arith.constant 1.280000e+02 : f32
    %180 = vector.broadcast %cst_88 : f32 to vector<8x1xf32>
    %181 = arith.divf %179, %180 : vector<8x1xf32>
    %182 = vector.broadcast %181 : vector<8x1xf32> to vector<8x128xf32>
    %183 = arith.subf %175, %182 : vector<8x128xf32>
    %184 = arith.mulf %183, %183 : vector<8x128xf32>
    %cst_89 = arith.constant dense<0.000000e+00> : vector<8xf32>
    %185 = vector.multi_reduction <add>, %184, %cst_89 [1] : vector<8x128xf32> to vector<8xf32>
    %186 = vector.shape_cast %185 : vector<8xf32> to vector<8x1xf32>
    %cst_90 = arith.constant 0.00787401571 : f32
    %187 = vector.broadcast %cst_90 : f32 to vector<8x1xf32>
    %188 = arith.mulf %186, %187 : vector<8x1xf32>
    %189 = math.sqrt %188 : vector<8x1xf32>
    %cst_91 = arith.constant 9.99999997E-7 : f32
    %190 = vector.broadcast %cst_91 : f32 to vector<8x1xf32>
    %191 = arith.addf %189, %190 : vector<8x1xf32>
    %192 = tpu.reciprocal %191 {approx = true} : vector<8x1xf32> -> vector<8x1xf32>
    %193 = arith.mulf %191, %192 : vector<8x1xf32>
    %cst_92 = arith.constant 2.000000e+00 : f32
    %194 = vector.broadcast %cst_92 : f32 to vector<8x1xf32>
    %195 = arith.subf %194, %193 : vector<8x1xf32>
    %196 = arith.mulf %192, %195 : vector<8x1xf32>
    %197 = vector.broadcast %196 : vector<8x1xf32> to vector<8x128xf32>
    %198 = arith.mulf %183, %197 : vector<8x128xf32>
    %199 = vector.broadcast %176 : vector<1x128xf32> to vector<8x128xf32>
    %200 = arith.mulf %199, %198 : vector<8x128xf32>
    %201 = vector.broadcast %177 : vector<1x128xf32> to vector<8x128xf32>
    %202 = arith.addf %200, %201 : vector<8x128xf32>
    %c0_93 = arith.constant 0 : index
    %c0_94 = arith.constant 0 : index
    %203 = vector.load %arg27[%c0_93, %c0_94] : memref<128x256xbf16, #tpu.memory_space<vmem>>, vector<128x256xbf16>
    %c0_95 = arith.constant 0 : index
    %c0_96 = arith.constant 0 : index
    %204 = vector.load %arg28[%c0_95, %c0_96] : memref<1x256xf32, #tpu.memory_space<vmem>>, vector<1x256xf32>
    %c0_97 = arith.constant 0 : index
    %c0_98 = arith.constant 0 : index
    %205 = vector.load %arg29[%c0_97, %c0_98] : memref<256x128xbf16, #tpu.memory_space<vmem>>, vector<256x128xbf16>
    %c0_99 = arith.constant 0 : index
    %c0_100 = arith.constant 0 : index
    %206 = vector.load %arg30[%c0_99, %c0_100] : memref<1x128xf32, #tpu.memory_space<vmem>>, vector<1x128xf32>
    %207 = arith.truncf %202 : vector<8x128xf32> to vector<8x128xbf16>
    %cst_101 = arith.constant dense<0.000000e+00> : vector<8x256xf32>
    %208 = tpu.matmul %207, %203, %cst_101 {dimension_numbers = #tpu.dot_dimension_numbers<[1], [0], [0], [1], [0, 0, 1, 1], [], []>} : vector<8x128xbf16>, vector<128x256xbf16>, vector<8x256xf32> -> vector<8x256xf32>
    %209 = vector.broadcast %204 : vector<1x256xf32> to vector<8x256xf32>
    %210 = arith.addf %208, %209 : vector<8x256xf32>
    %cst_102 = arith.constant 0.000000e+00 : f32
    %211 = vector.broadcast %cst_102 : f32 to vector<8x256xf32>
    %212 = arith.maximumf %210, %211 : vector<8x256xf32>
    %213 = arith.truncf %212 : vector<8x256xf32> to vector<8x256xbf16>
    %cst_103 = arith.constant dense<0.000000e+00> : vector<8x128xf32>
    %214 = tpu.matmul %213, %205, %cst_103 {dimension_numbers = #tpu.dot_dimension_numbers<[1], [0], [0], [1], [0, 0, 1, 1], [], []>} : vector<8x256xbf16>, vector<256x128xbf16>, vector<8x128xf32> -> vector<8x128xf32>
    %215 = vector.broadcast %206 : vector<1x128xf32> to vector<8x128xf32>
    %216 = arith.addf %214, %215 : vector<8x128xf32>
    %217 = arith.addf %175, %216 : vector<8x128xf32>
    %c0_104 = arith.constant 0 : index
    %c0_105 = arith.constant 0 : index
    %c0_106 = arith.constant 0 : index
    %218 = vector.load %arg33[%c0_104, %c0_105, %c0_106] : memref<1x8x128xf32, #tpu.memory_space<vmem>>, vector<1x8x128xf32>
    %219 = vector.shape_cast %218 : vector<1x8x128xf32> to vector<8x128xf32>
    %220 = vector.shape_cast %217 : vector<8x128xf32> to vector<1x8x128xf32>
    tpu.vector_store %arg33[%c0_104, %c0_105, %c0_106], %220 {strides = array<i32>} : memref<1x8x128xf32, #tpu.memory_space<vmem>>, vector<1x8x128xf32>,
    return
  }
  func.func @transform_0(%arg0: i32) -> (i32, i32, i32) {
    %c0_i32 = arith.constant 0 : i32
    %c0_i32_0 = arith.constant 0 : i32
    %c0_i32_1 = arith.constant 0 : i32
    return %arg0, %c0_i32, %c0_i32_0 : i32, i32, i32
  }
  func.func @transform_1(%arg0: i32) -> (i32, i32, i32) {
    %c0_i32 = arith.constant 0 : i32
    %c0_i32_0 = arith.constant 0 : i32
    %c0_i32_1 = arith.constant 0 : i32
    return %arg0, %c0_i32, %c0_i32_0 : i32, i32, i32
  }
  func.func @transform_2(%arg0: i32) -> (i32, i32, i32) {
    %c0_i32 = arith.constant 0 : i32
    %c0_i32_0 = arith.constant 0 : i32
    %c0_i32_1 = arith.constant 0 : i32
    return %arg0, %c0_i32, %c0_i32_0 : i32, i32, i32
  }
  func.func @transform_3(%arg0: i32) -> (i32, i32, i32) {
    %c0_i32 = arith.constant 0 : i32
    %c0_i32_0 = arith.constant 0 : i32
    %c0_i32_1 = arith.constant 0 : i32
    return %arg0, %c0_i32, %c0_i32_0 : i32, i32, i32
  }
  func.func @transform_4(%arg0: i32) -> (i32, i32) {
    %c0_i32 = arith.constant 0 : i32
    %c0_i32_0 = arith.constant 0 : i32
    %c0_i32_1 = arith.constant 0 : i32
    return %c0_i32, %c0_i32_0 : i32, i32
  }
  func.func @transform_5(%arg0: i32) -> (i32, i32) {
    %c0_i32 = arith.constant 0 : i32
    %c0_i32_0 = arith.constant 0 : i32
    %c0_i32_1 = arith.constant 0 : i32
    return %c0_i32, %c0_i32_0 : i32, i32
  }
  func.func @transform_6(%arg0: i32) -> (i32, i32) {
    %c0_i32 = arith.constant 0 : i32
    %c0_i32_0 = arith.constant 0 : i32
    %c0_i32_1 = arith.constant 0 : i32
    return %c0_i32, %c0_i32_0 : i32, i32
  }
  func.func @transform_7(%arg0: i32) -> (i32, i32) {
    %c0_i32 = arith.constant 0 : i32
    %c0_i32_0 = arith.constant 0 : i32
    %c0_i32_1 = arith.constant 0 : i32
    return %c0_i32, %c0_i32_0 : i32, i32
  }
  func.func @transform_8(%arg0: i32) -> (i32, i32) {
    %c0_i32 = arith.constant 0 : i32
    %c0_i32_0 = arith.constant 0 : i32
    %c0_i32_1 = arith.constant 0 : i32
    return %c0_i32, %c0_i32_0 : i32, i32
  }
  func.func @transform_9(%arg0: i32) -> (i32, i32) {
    %c0_i32 = arith.constant 0 : i32
    %c0_i32_0 = arith.constant 0 : i32
    %c0_i32_1 = arith.constant 0 : i32
    return %c0_i32, %c0_i32_0 : i32, i32
  }
  func.func @transform_10(%arg0: i32) -> (i32, i32) {
    %c0_i32 = arith.constant 0 : i32
    %c0_i32_0 = arith.constant 0 : i32
    %c0_i32_1 = arith.constant 0 : i32
    return %c0_i32, %c0_i32_0 : i32, i32
  }
  func.func @transform_11(%arg0: i32) -> (i32, i32) {
    %c0_i32 = arith.constant 0 : i32
    %c0_i32_0 = arith.constant 0 : i32
    %c0_i32_1 = arith.constant 0 : i32
    return %c0_i32, %c0_i32_0 : i32, i32
  }
  func.func @transform_12(%arg0: i32) -> (i32, i32) {
    %c0_i32 = arith.constant 0 : i32
    %c0_i32_0 = arith.constant 0 : i32
    %c0_i32_1 = arith.constant 0 : i32
    return %c0_i32, %c0_i32_0 : i32, i32
  }
  func.func @transform_13(%arg0: i32) -> (i32, i32) {
    %c0_i32 = arith.constant 0 : i32
    %c0_i32_0 = arith.constant 0 : i32
    %c0_i32_1 = arith.constant 0 : i32
    return %c0_i32, %c0_i32_0 : i32, i32
  }
  func.func @transform_14(%arg0: i32) -> (i32, i32) {
    %c0_i32 = arith.constant 0 : i32
    %c0_i32_0 = arith.constant 0 : i32
    %c0_i32_1 = arith.constant 0 : i32
    return %c0_i32, %c0_i32_0 : i32, i32
  }
  func.func @transform_15(%arg0: i32) -> (i32, i32) {
    %c0_i32 = arith.constant 0 : i32
    %c0_i32_0 = arith.constant 0 : i32
    %c0_i32_1 = arith.constant 0 : i32
    return %c0_i32, %c0_i32_0 : i32, i32
  }
  func.func @transform_16(%arg0: i32) -> (i32, i32) {
    %c0_i32 = arith.constant 0 : i32
    %c0_i32_0 = arith.constant 0 : i32
    %c0_i32_1 = arith.constant 0 : i32
    return %c0_i32, %c0_i32_0 : i32, i32
  }
  func.func @transform_17(%arg0: i32) -> (i32, i32) {
    %c0_i32 = arith.constant 0 : i32
    %c0_i32_0 = arith.constant 0 : i32
    %c0_i32_1 = arith.constant 0 : i32
    return %c0_i32, %c0_i32_0 : i32, i32
  }
  func.func @transform_18(%arg0: i32) -> (i32, i32) {
    %c0_i32 = arith.constant 0 : i32
    %c0_i32_0 = arith.constant 0 : i32
    %c0_i32_1 = arith.constant 0 : i32
    return %c0_i32, %c0_i32_0 : i32, i32
  }
  func.func @transform_19(%arg0: i32) -> (i32, i32) {
    %c0_i32 = arith.constant 0 : i32
    %c0_i32_0 = arith.constant 0 : i32
    %c0_i32_1 = arith.constant 0 : i32
    return %c0_i32, %c0_i32_0 : i32, i32
  }
  func.func @transform_20(%arg0: i32) -> (i32, i32) {
    %c0_i32 = arith.constant 0 : i32
    %c0_i32_0 = arith.constant 0 : i32
    %c0_i32_1 = arith.constant 0 : i32
    return %c0_i32, %c0_i32_0 : i32, i32
  }
  func.func @transform_21(%arg0: i32) -> (i32, i32) {
    %c0_i32 = arith.constant 0 : i32
    %c0_i32_0 = arith.constant 0 : i32
    %c0_i32_1 = arith.constant 0 : i32
    return %c0_i32, %c0_i32_0 : i32, i32
  }
  func.func @transform_22(%arg0: i32) -> (i32, i32) {
    %c0_i32 = arith.constant 0 : i32
    %c0_i32_0 = arith.constant 0 : i32
    %c0_i32_1 = arith.constant 0 : i32
    return %c0_i32, %c0_i32_0 : i32, i32
  }
  func.func @transform_23(%arg0: i32) -> (i32, i32) {
    %c0_i32 = arith.constant 0 : i32
    %c0_i32_0 = arith.constant 0 : i32
    %c0_i32_1 = arith.constant 0 : i32
    return %c0_i32, %c0_i32_0 : i32, i32
  }
  func.func @transform_24(%arg0: i32) -> (i32, i32) {
    %c0_i32 = arith.constant 0 : i32
    %c0_i32_0 = arith.constant 0 : i32
    %c0_i32_1 = arith.constant 0 : i32
    return %c0_i32, %c0_i32_0 : i32, i32
  }
  func.func @transform_25(%arg0: i32) -> (i32, i32) {
    %c0_i32 = arith.constant 0 : i32
    %c0_i32_0 = arith.constant 0 : i32
    %c0_i32_1 = arith.constant 0 : i32
    return %c0_i32, %c0_i32_0 : i32, i32
  }
  func.func @transform_26(%arg0: i32) -> (i32, i32) {
    %c0_i32 = arith.constant 0 : i32
    %c0_i32_0 = arith.constant 0 : i32
    %c0_i32_1 = arith.constant 0 : i32
    return %c0_i32, %c0_i32_0 : i32, i32
  }
  func.func @transform_27(%arg0: i32) -> (i32, i32) {
    %c0_i32 = arith.constant 0 : i32
    %c0_i32_0 = arith.constant 0 : i32
    %c0_i32_1 = arith.constant 0 : i32
    return %c0_i32, %c0_i32_0 : i32, i32
  }
  func.func @transform_28(%arg0: i32) -> (i32, i32) {
    %c0_i32 = arith.constant 0 : i32
    %c0_i32_0 = arith.constant 0 : i32
    %c0_i32_1 = arith.constant 0 : i32
    return %c0_i32, %c0_i32_0 : i32, i32
  }
  func.func @transform_29(%arg0: i32) -> (i32, i32) {
    %c0_i32 = arith.constant 0 : i32
    %c0_i32_0 = arith.constant 0 : i32
    %c0_i32_1 = arith.constant 0 : i32
    return %c0_i32, %c0_i32_0 : i32, i32
  }
  func.func @transform_30(%arg0: i32) -> (i32, i32) {
    %c0_i32 = arith.constant 0 : i32
    %c0_i32_0 = arith.constant 0 : i32
    %c0_i32_1 = arith.constant 0 : i32
    return %c0_i32, %c0_i32_0 : i32, i32
  }
  func.func @transform_31(%arg0: i32) -> (i32, i32) {
    %c0_i32 = arith.constant 0 : i32
    %c0_i32_0 = arith.constant 0 : i32
    %c0_i32_1 = arith.constant 0 : i32
    return %c0_i32, %c0_i32_0 : i32, i32
  }
  func.func @transform_32(%arg0: i32) -> (i32, i32, i32) {
    %c0_i32 = arith.constant 0 : i32
    %c0_i32_0 = arith.constant 0 : i32
    %c0_i32_1 = arith.constant 0 : i32
    return %arg0, %c0_i32, %c0_i32_0 : i32, i32, i32
  }
}

</mosaic_0001>

<llo_original>
// kernel: tpu_custom_call.1
$region0: #{tpu_custom_call.1}
  #allocation0 [shape = 'u32[]', space=smem, size = 0x4, offset = 0x4, fixed_abs, tag = 'smem constant byte address 0x4 - core index']
  #allocation1 [shape = 'u32[144,128]{1,0:T(1,128)}', space=vmem, size = 0x12000, scoped, tag = 'internal scratch']
  %s0 = inlined_call_operand.smem [shape: u32[33], index: -1, kind: input, shape index: {}]
  %s1 = sld [smem:[%s0]]
  %s2 = scalar_lea.smem %s0, 1
  %s3 = sld [smem:[%s2]]
  %s4 = scalar_lea.smem %s0, 2
  %s5 = sld [smem:[%s4]]
  %s6 = scalar_lea.smem %s0, 3
  %s7 = sld [smem:[%s6]]
  %s8 = scalar_lea.smem %s0, 4
  %s9 = sld [smem:[%s8]]
  %s10 = scalar_lea.smem %s0, 5
  %s11 = sld [smem:[%s10]]
  %s12 = scalar_lea.smem %s0, 6
  %s13 = sld [smem:[%s12]]
  %s14 = scalar_lea.smem %s0, 7
  %s15 = sld [smem:[%s14]]
  %s16 = scalar_lea.smem %s0, 8
  %s17 = sld [smem:[%s16]]
  %s18 = scalar_lea.smem %s0, 9
  %s19 = sld [smem:[%s18]]
  %s20 = scalar_lea.smem %s0, 10
  %s21 = sld [smem:[%s20]]
  %s22 = scalar_lea.smem %s0, 11
  %s23 = sld [smem:[%s22]]
  %s24 = scalar_lea.smem %s0, 12
  %s25 = sld [smem:[%s24]]
  %s26 = scalar_lea.smem %s0, 13
  %s27 = sld [smem:[%s26]]
  %s28 = scalar_lea.smem %s0, 14
  %s29 = sld [smem:[%s28]]
  %s30 = scalar_lea.smem %s0, 15
  %s31 = sld [smem:[%s30]]
  %s32 = scalar_lea.smem %s0, 16
  %s33 = sld [smem:[%s32]]
  %s34 = scalar_lea.smem %s0, 17
  %s35 = sld [smem:[%s34]]
  %s36 = scalar_lea.smem %s0, 18
  %s37 = sld [smem:[%s36]]
  %s38 = scalar_lea.smem %s0, 19
  %s39 = sld [smem:[%s38]]
  %s40 = scalar_lea.smem %s0, 20
  %s41 = sld [smem:[%s40]]
  %s42 = scalar_lea.smem %s0, 21
  %s43 = sld [smem:[%s42]]
  %s44 = scalar_lea.smem %s0, 22
  %s45 = sld [smem:[%s44]]
  %s46 = scalar_lea.smem %s0, 23
  %s47 = sld [smem:[%s46]]
  %s48 = scalar_lea.smem %s0, 24
  %s49 = sld [smem:[%s48]]
  %s50 = scalar_lea.smem %s0, 25
  %s51 = sld [smem:[%s50]]
  %s52 = scalar_lea.smem %s0, 26
  %s53 = sld [smem:[%s52]]
  %s54 = scalar_lea.smem %s0, 27
  %s55 = sld [smem:[%s54]]
  %s56 = scalar_lea.smem %s0, 28
  %s57 = sld [smem:[%s56]]
  %s58 = scalar_lea.smem %s0, 29
  %s59 = sld [smem:[%s58]]
  %s60 = scalar_lea.smem %s0, 30
  %s61 = sld [smem:[%s60]]
  %s62 = scalar_lea.smem %s0, 31
  %s63 = sld [smem:[%s62]]
  %s64 = scalar_lea.smem %s0, 32
  %s65 = sld [smem:[%s64]]
  %s66 = sld [smem:[#allocation0]]
  $region249: #{tpu_custom_call.1} parent=0
    _
  %s68 = ssub.s32 1, %s66
  %s69 = scalar_select 0, %s68, %s66
  $region1: #{tpu_custom_call.1} parent=0
    #allocation2 [shape = 'u8[8192]{0}', space=vmem, size = 0x2000, scoped, tag = 'input window, operand 0']
    #allocation3 [shape = 's32[2]{0}', space=sflag, size = 0x8, scoped, tag = 'scoped memory for tpu_custom_call.1']
    #allocation4 [shape = 's32[2]{0}', space=sflag, size = 0x8, scoped, tag = 'scoped memory for tpu_custom_call.1']
    #allocation5 [shape = 'u8[8192]{0}', space=vmem, size = 0x2000, scoped, tag = 'input window, operand 1']
    #allocation6 [shape = 's32[2]{0}', space=sflag, size = 0x8, scoped, tag = 'scoped memory for tpu_custom_call.1']
    #allocation7 [shape = 'u8[2048]{0}', space=vmem, size = 0x800, scoped, tag = 'input window, operand 3']
    #allocation8 [shape = 'u8[512]{0}', space=vmem, size = 0x400, scoped, tag = 'input window, operand 4, single buffered']
    #allocation9 [shape = 's32[1]{0}', space=sflag, size = 0x4, scoped, tag = 'scoped memory for tpu_custom_call.1']
    #allocation10 [shape = 'u8[512]{0}', space=vmem, size = 0x400, scoped, tag = 'input window, operand 5, single buffered']
    #allocation11 [shape = 'u8[512]{0}', space=vmem, size = 0x400, scoped, tag = 'input window, operand 6, single buffered']
    #allocation12 [shape = 's32[1]{0}', space=sflag, size = 0x4, scoped, tag = 'scoped memory for tpu_custom_call.1']
    #allocation13 [shape = 'u8[512]{0}', space=vmem, size = 0x400, scoped, tag = 'input window, operand 7, single buffered']
    #allocation14 [shape = 'u8[512]{0}', space=vmem, size = 0x400, scoped, tag = 'input window, operand 8, single buffered']
    #allocation15 [shape = 's32[1]{0}', space=sflag, size = 0x4, scoped, tag = 'scoped memory for tpu_custom_call.1']
    #allocation16 [shape = 'u8[512]{0}', space=vmem, size = 0x400, scoped, tag = 'input window, operand 9, single buffered']
    #allocation17 [shape = 'u8[32768]{0}', space=vmem, size = 0x8000, scoped, tag = 'input window, operand 10, single buffered']
    #allocation18 [shape = 's32[1]{0}', space=sflag, size = 0x4, scoped, tag = 'scoped memory for tpu_custom_call.1']
    #allocation19 [shape = 'u8[32768]{0}', space=vmem, size = 0x8000, scoped, tag = 'input window, operand 11, single buffered']
    #allocation20 [shape = 'u8[32768]{0}', space=vmem, size = 0x8000, scoped, tag = 'input window, operand 12, single buffered']
    #allocation21 [shape = 's32[1]{0}', space=sflag, size = 0x4, scoped, tag = 'scoped memory for tpu_custom_call.1']
    #allocation22 [shape = 'u8[32768]{0}', space=vmem, size = 0x8000, scoped, tag = 'input window, operand 13, single buffered']
    #allocation23 [shape = 'u8[512]{0}', space=vmem, size = 0x400, scoped, tag = 'input window, operand 14, single buffered']
    #allocation24 [shape = 's32[1]{0}', space=sflag, size = 0x4, scoped, tag = 'scoped memory for tpu_custom_call.1']
    #allocation25 [shape = 'u8[512]{0}', space=vmem, size = 0x400, scoped, tag = 'input window, operand 15, single buffered']
    #allocation26 [shape = 'u8[512]{0}', space=vmem, size = 0x400, scoped, tag = 'input window, operand 16, single buffered']
    #allocation27 [shape = 's32[1]{0}', space=sflag, size = 0x4, scoped, tag = 'scoped memory for tpu_custom_call.1']
    #allocation28 [shape = 'u8[512]{0}', space=vmem, size = 0x400, scoped, tag = 'input window, operand 17, single buffered']
    #allocation29 [shape = 'u8[32768]{0}', space=vmem, size = 0x8000, scoped, tag = 'input window, operand 19, single buffered']
    #allocation30 [shape = 's32[1]{0}', space=sflag, size = 0x4, scoped, tag = 'scoped memory for tpu_custom_call.1']
    #allocation31 [shape = 'u8[32768]{0}', space=vmem, size = 0x8000, scoped, tag = 'input window, operand 20, single buffered']
    #allocation32 [shape = 'u8[32768]{0}', space=vmem, size = 0x8000, scoped, tag = 'input window, operand 21, single buffered']
    #allocation33 [shape = 's32[1]{0}', space=sflag, size = 0x4, scoped, tag = 'scoped memory for tpu_custom_call.1']
    #allocation34 [shape = 'u8[65536]{0}', space=vmem, size = 0x10000, scoped, tag = 'input window, operand 26, single buffered']
    #allocation35 [shape = 'u8[65536]{0}', space=vmem, size = 0x10000, scoped, tag = 'input window, operand 28, single buffered']
    #allocation36 [shape = 's32[1]{0}', space=sflag, size = 0x4, scoped, tag = 'scoped memory for tpu_custom_call.1']
    #allocation37 [shape = 'u8[8192]{0}', space=vmem, size = 0x2000, scoped, tag = 'output window, operand 0']
    %70 = vsyncpa [#allocation3], 0
    %s71 = scalar_lea.sflag [#allocation3], 1
    %72 = vsyncpa %s71, 0
    %73 = vsyncpa [#allocation6], 0
    %s74 = scalar_lea.sflag [#allocation6], 1
    %75 = vsyncpa %s74, 0
    %76 = vsyncpa [#allocation9], 0
    %77 = vsyncpa [#allocation12], 0
    %78 = vsyncpa [#allocation15], 0
    %79 = vsyncpa [#allocation18], 0
    %80 = vsyncpa [#allocation21], 0
    %81 = vsyncpa [#allocation24], 0
    %82 = vsyncpa [#allocation27], 0
    %83 = vsyncpa [#allocation30], 0
    %84 = vsyncpa [#allocation33], 0
    %85 = vsyncpa [#allocation36], 0
    %86 = vsyncpa [#allocation4], 0
    %s87 = scalar_lea.sflag [#allocation4], 1
    %88 = vsyncpa %s87, 0
    loop: start=0, step=1, limit=4
    $region2: #{tpu_custom_call.1} parent=1 // loop_pre_header
      _
    $region3: #{tpu_custom_call.1} parent=1 // loop_header
      %s90 = sphi 0, %s94
      %p91 = scmp.ge.s32.totalorder %s90, 4
      %s100 = sphi 0, %s102
      %s103 = sphi 0, %s100
      %s104 = sphi 0, %s103
      %s120 = sphi 0, %s104
      %s126 = sphi 0, %s128
      %s129 = sphi 0, %s126
      %s130 = sphi 0, %s129
      %s146 = sphi 0, %s130
      %s152 = sphi 0, %s154
      %s155 = sphi 0, %s152
      %s156 = sphi 0, %s155
      %s172 = sphi 0, %s156
      %s178 = sphi 0, %s180
      %s181 = sphi 0, %s178
      %s182 = sphi 0, %s181
      %s198 = sphi 0, %s182
      %s202 = sphi 0, %s202
      %s204 = sphi 0, %s202
      %s205 = sphi 0, %s204
      %s219 = sphi 0, %s205
      %s223 = sphi 0, %s223
      %s225 = sphi 0, %s223
      %s226 = sphi 0, %s225
      %s240 = sphi 0, %s226
      %s244 = sphi 0, %s244
      %s246 = sphi 0, %s244
      %s247 = sphi 0, %s246
      %s261 = sphi 0, %s247
      %s265 = sphi 0, %s265
      %s267 = sphi 0, %s265
      %s268 = sphi 0, %s267
      %s282 = sphi 0, %s268
      %s286 = sphi 0, %s286
      %s288 = sphi 0, %s286
      %s289 = sphi 0, %s288
      %s303 = sphi 0, %s289
      %s307 = sphi 0, %s307
      %s309 = sphi 0, %s307
      %s310 = sphi 0, %s309
      %s324 = sphi 0, %s310
      %s328 = sphi 0, %s328
      %s330 = sphi 0, %s328
      %s331 = sphi 0, %s330
      %s345 = sphi 0, %s331
      %s349 = sphi 0, %s349
      %s351 = sphi 0, %s349
      %s352 = sphi 0, %s351
      %s366 = sphi 0, %s352
      %s370 = sphi 0, %s370
      %s372 = sphi 0, %s370
      %s373 = sphi 0, %s372
      %s387 = sphi 0, %s373
      %s391 = sphi 0, %s391
      %s393 = sphi 0, %s391
      %s394 = sphi 0, %s393
      %s408 = sphi 0, %s394
      %s412 = sphi 0, %s412
      %s414 = sphi 0, %s412
      %s415 = sphi 0, %s414
      %s429 = sphi 0, %s415
      %s433 = sphi 0, %s433
      %s435 = sphi 0, %s433
      %s436 = sphi 0, %s435
      %s450 = sphi 0, %s436
      %s454 = sphi 0, %s454
      %s456 = sphi 0, %s454
      %s457 = sphi 0, %s456
      %s471 = sphi 0, %s457
      %s475 = sphi 0, %s475
      %s477 = sphi 0, %s475
      %s478 = sphi 0, %s477
      %s492 = sphi 0, %s478
      %s496 = sphi 0, %s496
      %s498 = sphi 0, %s496
      %s499 = sphi 0, %s498
      %s513 = sphi 0, %s499
      %s517 = sphi 0, %s517
      %s519 = sphi 0, %s517
      %s520 = sphi 0, %s519
      %s534 = sphi 0, %s520
      %s538 = sphi 0, %s538
      %s540 = sphi 0, %s538
      %s541 = sphi 0, %s540
      %s555 = sphi 0, %s541
      %s559 = sphi 0, %s559
      %s561 = sphi 0, %s559
      %s562 = sphi 0, %s561
      %s576 = sphi 0, %s562
      %s580 = sphi 0, %s580
      %s582 = sphi 0, %s580
      %s583 = sphi 0, %s582
      %s597 = sphi 0, %s583
      %s601 = sphi 0, %s601
      %s603 = sphi 0, %s601
      %s604 = sphi 0, %s603
      %s618 = sphi 0, %s604
      %s622 = sphi 0, %s622
      %s624 = sphi 0, %s622
      %s625 = sphi 0, %s624
      %s639 = sphi 0, %s625
      %s643 = sphi 0, %s643
      %s645 = sphi 0, %s643
      %s646 = sphi 0, %s645
      %s660 = sphi 0, %s646
      %s664 = sphi 0, %s664
      %s666 = sphi 0, %s664
      %s667 = sphi 0, %s666
      %s681 = sphi 0, %s667
      %s685 = sphi 0, %s685
      %s687 = sphi 0, %s685
      %s688 = sphi 0, %s687
      %s702 = sphi 0, %s688
      %s706 = sphi 0, %s706
      %s708 = sphi 0, %s706
      %s709 = sphi 0, %s708
      %s723 = sphi 0, %s709
      %s727 = sphi 0, %s727
      %s729 = sphi 0, %s727
      %s730 = sphi 0, %s729
      %s744 = sphi 0, %s730
      %s748 = sphi 0, %s748
      %s750 = sphi 0, %s748
      %s751 = sphi 0, %s750
      %s765 = sphi 0, %s751
      %s769 = sphi 0, %s769
      %s771 = sphi 0, %s769
      %s772 = sphi 0, %s771
      %s786 = sphi 0, %s772
      %s792 = sphi 0, %s794
      %s795 = sphi 0, %s792
      %s796 = sphi 0, %s795
      %s812 = sphi 0, %s796
    $region4: #{tpu_custom_call.1} parent=1 // loop_header_branch
      %93 = sbr.rel (%p91) target = $region8
    $region5: #{tpu_custom_call.1} parent=1 // loop_body
      %s95 = ssub.s32 %s90, 1
      %s96 = ssub.s32 %s90, 2
      %s97 = sadd.s32 %s90, 1
      %s98 = ssub.s32 %s90, %s97
      %p99 = scmp.eq.s32.totalorder %s98, 0
      %s101 = sadd.s32 %s100, 1
      %s102 = scalar_select %p99, %s100, %s101
      %p105 = pneg %p99
      %p106 = scmp.eq.s32.totalorder %s90, 1
      %p107 = por %p105, %p106
      %p108 = scmp.ne.s32.totalorder %s100, %s103
      %p109 = scmp.eq.s32.totalorder %s90, 0
      %p110 = por %p108, %p109
      %p111 = scmp.ne.s32.totalorder %s100, %s103
      %p112 = scmp.eq.s32.totalorder %s95, 1
      %p113 = por %p111, %p112
      %p114 = scmp.ne.s32.totalorder %s103, %s104
      %p115 = scmp.eq.s32.totalorder %s95, 0
      %p116 = por %p114, %p115
      %p117 = scmp.ne.s32.totalorder %s103, %s104
      %p118 = scmp.eq.s32.totalorder %s96, 1
      %p119 = por %p117, %p118
      %p121 = scmp.ne.s32.totalorder %s104, %s120
      %p122 = scmp.eq.s32.totalorder %s96, 0
      %p123 = por %p121, %p122
      %s124 = ssub.s32 %s90, %s97
      %p125 = scmp.eq.s32.totalorder %s124, 0
      %s127 = sadd.s32 %s126, 1
      %s128 = scalar_select %p125, %s126, %s127
      %p131 = pneg %p125
      %p132 = scmp.eq.s32.totalorder %s90, 1
      %p133 = por %p131, %p132
      %p134 = scmp.ne.s32.totalorder %s126, %s129
      %p135 = scmp.eq.s32.totalorder %s90, 0
      %p136 = por %p134, %p135
      %p137 = scmp.ne.s32.totalorder %s126, %s129
      %p138 = scmp.eq.s32.totalorder %s95, 1
      %p139 = por %p137, %p138
      %p140 = scmp.ne.s32.totalorder %s129, %s130
      %p141 = scmp.eq.s32.totalorder %s95, 0
      %p142 = por %p140, %p141
      %p143 = scmp.ne.s32.totalorder %s129, %s130
      %p144 = scmp.eq.s32.totalorder %s96, 1
      %p145 = por %p143, %p144
      %p147 = scmp.ne.s32.totalorder %s130, %s146
      %p148 = scmp.eq.s32.totalorder %s96, 0
      %p149 = por %p147, %p148
      %s150 = ssub.s32 %s90, %s97
      %p151 = scmp.eq.s32.totalorder %s150, 0
      %s153 = sadd.s32 %s152, 1
      %s154 = scalar_select %p151, %s152, %s153
      %p157 = pneg %p151
      %p158 = scmp.eq.s32.totalorder %s90, 1
      %p159 = por %p157, %p158
      %p160 = scmp.ne.s32.totalorder %s152, %s155
      %p161 = scmp.eq.s32.totalorder %s90, 0
      %p162 = por %p160, %p161
      %p163 = scmp.ne.s32.totalorder %s152, %s155
      %p164 = scmp.eq.s32.totalorder %s95, 1
      %p165 = por %p163, %p164
      %p166 = scmp.ne.s32.totalorder %s155, %s156
      %p167 = scmp.eq.s32.totalorder %s95, 0
      %p168 = por %p166, %p167
      %p169 = scmp.ne.s32.totalorder %s155, %s156
      %p170 = scmp.eq.s32.totalorder %s96, 1
      %p171 = por %p169, %p170
      %p173 = scmp.ne.s32.totalorder %s156, %s172
      %p174 = scmp.eq.s32.totalorder %s96, 0
      %p175 = por %p173, %p174
      %s176 = ssub.s32 %s90, %s97
      %p177 = scmp.eq.s32.totalorder %s176, 0
      %s179 = sadd.s32 %s178, 1
      %s180 = scalar_select %p177, %s178, %s179
      %p183 = pneg %p177
      %p184 = scmp.eq.s32.totalorder %s90, 1
      %p185 = por %p183, %p184
      %p186 = scmp.ne.s32.totalorder %s178, %s181
      %p187 = scmp.eq.s32.totalorder %s90, 0
      %p188 = por %p186, %p187
      %p189 = scmp.ne.s32.totalorder %s178, %s181
      %p190 = scmp.eq.s32.totalorder %s95, 1
      %p191 = por %p189, %p190
      %p192 = scmp.ne.s32.totalorder %s181, %s182
      %p193 = scmp.eq.s32.totalorder %s95, 0
      %p194 = por %p192, %p193
      %p195 = scmp.ne.s32.totalorder %s181, %s182
      %p196 = scmp.eq.s32.totalorder %s96, 1
      %p197 = por %p195, %p196
      %p199 = scmp.ne.s32.totalorder %s182, %s198
      %p200 = scmp.eq.s32.totalorder %s96, 0
      %p201 = por %p199, %p200
      %s203 = sadd.s32 %s202, 1
      %p206 = scmp.eq.s32.totalorder %s90, 1
      %p207 = scmp.ne.s32.totalorder %s202, %s204
      %p208 = scmp.eq.s32.totalorder %s90, 0
      %p209 = por %p207, %p208
      %p210 = scmp.ne.s32.totalorder %s202, %s204
      %p211 = scmp.eq.s32.totalorder %s95, 1
      %p212 = por %p210, %p211
      %p213 = scmp.ne.s32.totalorder %s204, %s205
      %p214 = scmp.eq.s32.totalorder %s95, 0
      %p215 = por %p213, %p214
      %p216 = scmp.ne.s32.totalorder %s204, %s205
      %p217 = scmp.eq.s32.totalorder %s96, 1
      %p218 = por %p216, %p217
      %p220 = scmp.ne.s32.totalorder %s205, %s219
      %p221 = scmp.eq.s32.totalorder %s96, 0
      %p222 = por %p220, %p221
      %s224 = sadd.s32 %s223, 1
      %p227 = scmp.eq.s32.totalorder %s90, 1
      %p228 = scmp.ne.s32.totalorder %s223, %s225
      %p229 = scmp.eq.s32.totalorder %s90, 0
      %p230 = por %p228, %p229
      %p231 = scmp.ne.s32.totalorder %s223, %s225
      %p232 = scmp.eq.s32.totalorder %s95, 1
      %p233 = por %p231, %p232
      %p234 = scmp.ne.s32.totalorder %s225, %s226
      %p235 = scmp.eq.s32.totalorder %s95, 0
      %p236 = por %p234, %p235
      %p237 = scmp.ne.s32.totalorder %s225, %s226
      %p238 = scmp.eq.s32.totalorder %s96, 1
      %p239 = por %p237, %p238
      %p241 = scmp.ne.s32.totalorder %s226, %s240
      %p242 = scmp.eq.s32.totalorder %s96, 0
      %p243 = por %p241, %p242
      %s245 = sadd.s32 %s244, 1
      %p248 = scmp.eq.s32.totalorder %s90, 1
      %p249 = scmp.ne.s32.totalorder %s244, %s246
      %p250 = scmp.eq.s32.totalorder %s90, 0
      %p251 = por %p249, %p250
      %p252 = scmp.ne.s32.totalorder %s244, %s246
      %p253 = scmp.eq.s32.totalorder %s95, 1
      %p254 = por %p252, %p253
      %p255 = scmp.ne.s32.totalorder %s246, %s247
      %p256 = scmp.eq.s32.totalorder %s95, 0
      %p257 = por %p255, %p256
      %p258 = scmp.ne.s32.totalorder %s246, %s247
      %p259 = scmp.eq.s32.totalorder %s96, 1
      %p260 = por %p258, %p259
      %p262 = scmp.ne.s32.totalorder %s247, %s261
      %p263 = scmp.eq.s32.totalorder %s96, 0
      %p264 = por %p262, %p263
      %s266 = sadd.s32 %s265, 1
      %p269 = scmp.eq.s32.totalorder %s90, 1
      %p270 = scmp.ne.s32.totalorder %s265, %s267
      %p271 = scmp.eq.s32.totalorder %s90, 0
      %p272 = por %p270, %p271
      %p273 = scmp.ne.s32.totalorder %s265, %s267
      %p274 = scmp.eq.s32.totalorder %s95, 1
      %p275 = por %p273, %p274
      %p276 = scmp.ne.s32.totalorder %s267, %s268
      %p277 = scmp.eq.s32.totalorder %s95, 0
      %p278 = por %p276, %p277
      %p279 = scmp.ne.s32.totalorder %s267, %s268
      %p280 = scmp.eq.s32.totalorder %s96, 1
      %p281 = por %p279, %p280
      %p283 = scmp.ne.s32.totalorder %s268, %s282
      %p284 = scmp.eq.s32.totalorder %s96, 0
      %p285 = por %p283, %p284
      %s287 = sadd.s32 %s286, 1
      %p290 = scmp.eq.s32.totalorder %s90, 1
      %p291 = scmp.ne.s32.totalorder %s286, %s288
      %p292 = scmp.eq.s32.totalorder %s90, 0
      %p293 = por %p291, %p292
      %p294 = scmp.ne.s32.totalorder %s286, %s288
      %p295 = scmp.eq.s32.totalorder %s95, 1
      %p296 = por %p294, %p295
      %p297 = scmp.ne.s32.totalorder %s288, %s289
      %p298 = scmp.eq.s32.totalorder %s95, 0
      %p299 = por %p297, %p298
      %p300 = scmp.ne.s32.totalorder %s288, %s289
      %p301 = scmp.eq.s32.totalorder %s96, 1
      %p302 = por %p300, %p301
      %p304 = scmp.ne.s32.totalorder %s289, %s303
      %p305 = scmp.eq.s32.totalorder %s96, 0
      %p306 = por %p304, %p305
      %s308 = sadd.s32 %s307, 1
      %p311 = scmp.eq.s32.totalorder %s90, 1
      %p312 = scmp.ne.s32.totalorder %s307, %s309
      %p313 = scmp.eq.s32.totalorder %s90, 0
      %p314 = por %p312, %p313
      %p315 = scmp.ne.s32.totalorder %s307, %s309
      %p316 = scmp.eq.s32.totalorder %s95, 1
      %p317 = por %p315, %p316
      %p318 = scmp.ne.s32.totalorder %s309, %s310
      %p319 = scmp.eq.s32.totalorder %s95, 0
      %p320 = por %p318, %p319
      %p321 = scmp.ne.s32.totalorder %s309, %s310
      %p322 = scmp.eq.s32.totalorder %s96, 1
      %p323 = por %p321, %p322
      %p325 = scmp.ne.s32.totalorder %s310, %s324
      %p326 = scmp.eq.s32.totalorder %s96, 0
      %p327 = por %p325, %p326
      %s329 = sadd.s32 %s328, 1
      %p332 = scmp.eq.s32.totalorder %s90, 1
      %p333 = scmp.ne.s32.totalorder %s328, %s330
      %p334 = scmp.eq.s32.totalorder %s90, 0
      %p335 = por %p333, %p334
      %p336 = scmp.ne.s32.totalorder %s328, %s330
      %p337 = scmp.eq.s32.totalorder %s95, 1
      %p338 = por %p336, %p337
      %p339 = scmp.ne.s32.totalorder %s330, %s331
      %p340 = scmp.eq.s32.totalorder %s95, 0
      %p341 = por %p339, %p340
      %p342 = scmp.ne.s32.totalorder %s330, %s331
      %p343 = scmp.eq.s32.totalorder %s96, 1
      %p344 = por %p342, %p343
      %p346 = scmp.ne.s32.totalorder %s331, %s345
      %p347 = scmp.eq.s32.totalorder %s96, 0
      %p348 = por %p346, %p347
      %s350 = sadd.s32 %s349, 1
      %p353 = scmp.eq.s32.totalorder %s90, 1
      %p354 = scmp.ne.s32.totalorder %s349, %s351
      %p355 = scmp.eq.s32.totalorder %s90, 0
      %p356 = por %p354, %p355
      %p357 = scmp.ne.s32.totalorder %s349, %s351
      %p358 = scmp.eq.s32.totalorder %s95, 1
      %p359 = por %p357, %p358
      %p360 = scmp.ne.s32.totalorder %s351, %s352
      %p361 = scmp.eq.s32.totalorder %s95, 0
      %p362 = por %p360, %p361
      %p363 = scmp.ne.s32.totalorder %s351, %s352
      %p364 = scmp.eq.s32.totalorder %s96, 1
      %p365 = por %p363, %p364
      %p367 = scmp.ne.s32.totalorder %s352, %s366
      %p368 = scmp.eq.s32.totalorder %s96, 0
      %p369 = por %p367, %p368
      %s371 = sadd.s32 %s370, 1
      %p374 = scmp.eq.s32.totalorder %s90, 1
      %p375 = scmp.ne.s32.totalorder %s370, %s372
      %p376 = scmp.eq.s32.totalorder %s90, 0
      %p377 = por %p375, %p376
      %p378 = scmp.ne.s32.totalorder %s370, %s372
      %p379 = scmp.eq.s32.totalorder %s95, 1
      %p380 = por %p378, %p379
      %p381 = scmp.ne.s32.totalorder %s372, %s373
      %p382 = scmp.eq.s32.totalorder %s95, 0
      %p383 = por %p381, %p382
      %p384 = scmp.ne.s32.totalorder %s372, %s373
      %p385 = scmp.eq.s32.totalorder %s96, 1
      %p386 = por %p384, %p385
      %p388 = scmp.ne.s32.totalorder %s373, %s387
      %p389 = scmp.eq.s32.totalorder %s96, 0
      %p390 = por %p388, %p389
      %s392 = sadd.s32 %s391, 1
      %p395 = scmp.eq.s32.totalorder %s90, 1
      %p396 = scmp.ne.s32.totalorder %s391, %s393
      %p397 = scmp.eq.s32.totalorder %s90, 0
      %p398 = por %p396, %p397
      %p399 = scmp.ne.s32.totalorder %s391, %s393
      %p400 = scmp.eq.s32.totalorder %s95, 1
      %p401 = por %p399, %p400
      %p402 = scmp.ne.s32.totalorder %s393, %s394
      %p403 = scmp.eq.s32.totalorder %s95, 0
      %p404 = por %p402, %p403
      %p405 = scmp.ne.s32.totalorder %s393, %s394
      %p406 = scmp.eq.s32.totalorder %s96, 1
      %p407 = por %p405, %p406
      %p409 = scmp.ne.s32.totalorder %s394, %s408
      %p410 = scmp.eq.s32.totalorder %s96, 0
      %p411 = por %p409, %p410
      %s413 = sadd.s32 %s412, 1
      %p416 = scmp.eq.s32.totalorder %s90, 1
      %p417 = scmp.ne.s32.totalorder %s412, %s414
      %p418 = scmp.eq.s32.totalorder %s90, 0
      %p419 = por %p417, %p418
      %p420 = scmp.ne.s32.totalorder %s412, %s414
      %p421 = scmp.eq.s32.totalorder %s95, 1
      %p422 = por %p420, %p421
      %p423 = scmp.ne.s32.totalorder %s414, %s415
      %p424 = scmp.eq.s32.totalorder %s95, 0
      %p425 = por %p423, %p424
      %p426 = scmp.ne.s32.totalorder %s414, %s415
      %p427 = scmp.eq.s32.totalorder %s96, 1
      %p428 = por %p426, %p427
      %p430 = scmp.ne.s32.totalorder %s415, %s429
      %p431 = scmp.eq.s32.totalorder %s96, 0
      %p432 = por %p430, %p431
      %s434 = sadd.s32 %s433, 1
      %p437 = scmp.eq.s32.totalorder %s90, 1
      %p438 = scmp.ne.s32.totalorder %s433, %s435
      %p439 = scmp.eq.s32.totalorder %s90, 0
      %p440 = por %p438, %p439
      %p441 = scmp.ne.s32.totalorder %s433, %s435
      %p442 = scmp.eq.s32.totalorder %s95, 1
      %p443 = por %p441, %p442
      %p444 = scmp.ne.s32.totalorder %s435, %s436
      %p445 = scmp.eq.s32.totalorder %s95, 0
      %p446 = por %p444, %p445
      %p447 = scmp.ne.s32.totalorder %s435, %s436
      %p448 = scmp.eq.s32.totalorder %s96, 1
      %p449 = por %p447, %p448
      %p451 = scmp.ne.s32.totalorder %s436, %s450
      %p452 = scmp.eq.s32.totalorder %s96, 0
      %p453 = por %p451, %p452
      %s455 = sadd.s32 %s454, 1
      %p458 = scmp.eq.s32.totalorder %s90, 1
      %p459 = scmp.ne.s32.totalorder %s454, %s456
      %p460 = scmp.eq.s32.totalorder %s90, 0
      %p461 = por %p459, %p460
      %p462 = scmp.ne.s32.totalorder %s454, %s456
      %p463 = scmp.eq.s32.totalorder %s95, 1
      %p464 = por %p462, %p463
      %p465 = scmp.ne.s32.totalorder %s456, %s457
      %p466 = scmp.eq.s32.totalorder %s95, 0
      %p467 = por %p465, %p466
      %p468 = scmp.ne.s32.totalorder %s456, %s457
      %p469 = scmp.eq.s32.totalorder %s96, 1
      %p470 = por %p468, %p469
      %p472 = scmp.ne.s32.totalorder %s457, %s471
      %p473 = scmp.eq.s32.totalorder %s96, 0
      %p474 = por %p472, %p473
      %s476 = sadd.s32 %s475, 1
      %p479 = scmp.eq.s32.totalorder %s90, 1
      %p480 = scmp.ne.s32.totalorder %s475, %s477
      %p481 = scmp.eq.s32.totalorder %s90, 0
      %p482 = por %p480, %p481
      %p483 = scmp.ne.s32.totalorder %s475, %s477
      %p484 = scmp.eq.s32.totalorder %s95, 1
      %p485 = por %p483, %p484
      %p486 = scmp.ne.s32.totalorder %s477, %s478
      %p487 = scmp.eq.s32.totalorder %s95, 0
      %p488 = por %p486, %p487
      %p489 = scmp.ne.s32.totalorder %s477, %s478
      %p490 = scmp.eq.s32.totalorder %s96, 1
      %p491 = por %p489, %p490
      %p493 = scmp.ne.s32.totalorder %s478, %s492
      %p494 = scmp.eq.s32.totalorder %s96, 0
      %p495 = por %p493, %p494
      %s497 = sadd.s32 %s496, 1
      %p500 = scmp.eq.s32.totalorder %s90, 1
      %p501 = scmp.ne.s32.totalorder %s496, %s498
      %p502 = scmp.eq.s32.totalorder %s90, 0
      %p503 = por %p501, %p502
      %p504 = scmp.ne.s32.totalorder %s496, %s498
      %p505 = scmp.eq.s32.totalorder %s95, 1
      %p506 = por %p504, %p505
      %p507 = scmp.ne.s32.totalorder %s498, %s499
      %p508 = scmp.eq.s32.totalorder %s95, 0
      %p509 = por %p507, %p508
      %p510 = scmp.ne.s32.totalorder %s498, %s499
      %p511 = scmp.eq.s32.totalorder %s96, 1
      %p512 = por %p510, %p511
      %p514 = scmp.ne.s32.totalorder %s499, %s513
      %p515 = scmp.eq.s32.totalorder %s96, 0
      %p516 = por %p514, %p515
      %s518 = sadd.s32 %s517, 1
      %p521 = scmp.eq.s32.totalorder %s90, 1
      %p522 = scmp.ne.s32.totalorder %s517, %s519
      %p523 = scmp.eq.s32.totalorder %s90, 0
      %p524 = por %p522, %p523
      %p525 = scmp.ne.s32.totalorder %s517, %s519
      %p526 = scmp.eq.s32.totalorder %s95, 1
      %p527 = por %p525, %p526
      %p528 = scmp.ne.s32.totalorder %s519, %s520
      %p529 = scmp.eq.s32.totalorder %s95, 0
      %p530 = por %p528, %p529
      %p531 = scmp.ne.s32.totalorder %s519, %s520
      %p532 = scmp.eq.s32.totalorder %s96, 1
      %p533 = por %p531, %p532
      %p535 = scmp.ne.s32.totalorder %s520, %s534
      %p536 = scmp.eq.s32.totalorder %s96, 0
      %p537 = por %p535, %p536
      %s539 = sadd.s32 %s538, 1
      %p542 = scmp.eq.s32.totalorder %s90, 1
      %p543 = scmp.ne.s32.totalorder %s538, %s540
      %p544 = scmp.eq.s32.totalorder %s90, 0
      %p545 = por %p543, %p544
      %p546 = scmp.ne.s32.totalorder %s538, %s540
      %p547 = scmp.eq.s32.totalorder %s95, 1
      %p548 = por %p546, %p547
      %p549 = scmp.ne.s32.totalorder %s540, %s541
      %p550 = scmp.eq.s32.totalorder %s95, 0
      %p551 = por %p549, %p550
      %p552 = scmp.ne.s32.totalorder %s540, %s541
      %p553 = scmp.eq.s32.totalorder %s96, 1
      %p554 = por %p552, %p553
      %p556 = scmp.ne.s32.totalorder %s541, %s555
      %p557 = scmp.eq.s32.totalorder %s96, 0
      %p558 = por %p556, %p557
      %s560 = sadd.s32 %s559, 1
      %p563 = scmp.eq.s32.totalorder %s90, 1
      %p564 = scmp.ne.s32.totalorder %s559, %s561
      %p565 = scmp.eq.s32.totalorder %s90, 0
      %p566 = por %p564, %p565
      %p567 = scmp.ne.s32.totalorder %s559, %s561
      %p568 = scmp.eq.s32.totalorder %s95, 1
      %p569 = por %p567, %p568
      %p570 = scmp.ne.s32.totalorder %s561, %s562
      %p571 = scmp.eq.s32.totalorder %s95, 0
      %p572 = por %p570, %p571
      %p573 = scmp.ne.s32.totalorder %s561, %s562
      %p574 = scmp.eq.s32.totalorder %s96, 1
      %p575 = por %p573, %p574
      %p577 = scmp.ne.s32.totalorder %s562, %s576
      %p578 = scmp.eq.s32.totalorder %s96, 0
      %p579 = por %p577, %p578
      %s581 = sadd.s32 %s580, 1
      %p584 = scmp.eq.s32.totalorder %s90, 1
      %p585 = scmp.ne.s32.totalorder %s580, %s582
      %p586 = scmp.eq.s32.totalorder %s90, 0
      %p587 = por %p585, %p586
      %p588 = scmp.ne.s32.totalorder %s580, %s582
      %p589 = scmp.eq.s32.totalorder %s95, 1
      %p590 = por %p588, %p589
      %p591 = scmp.ne.s32.totalorder %s582, %s583
      %p592 = scmp.eq.s32.totalorder %s95, 0
      %p593 = por %p591, %p592
      %p594 = scmp.ne.s32.totalorder %s582, %s583
      %p595 = scmp.eq.s32.totalorder %s96, 1
      %p596 = por %p594, %p595
      %p598 = scmp.ne.s32.totalorder %s583, %s597
      %p599 = scmp.eq.s32.totalorder %s96, 0
      %p600 = por %p598, %p599
      %s602 = sadd.s32 %s601, 1
      %p605 = scmp.eq.s32.totalorder %s90, 1
      %p606 = scmp.ne.s32.totalorder %s601, %s603
      %p607 = scmp.eq.s32.totalorder %s90, 0
      %p608 = por %p606, %p607
      %p609 = scmp.ne.s32.totalorder %s601, %s603
      %p610 = scmp.eq.s32.totalorder %s95, 1
      %p611 = por %p609, %p610
      %p612 = scmp.ne.s32.totalorder %s603, %s604
      %p613 = scmp.eq.s32.totalorder %s95, 0
      %p614 = por %p612, %p613
      %p615 = scmp.ne.s32.totalorder %s603, %s604
      %p616 = scmp.eq.s32.totalorder %s96, 1
      %p617 = por %p615, %p616
      %p619 = scmp.ne.s32.totalorder %s604, %s618
      %p620 = scmp.eq.s32.totalorder %s96, 0
      %p621 = por %p619, %p620
      %s623 = sadd.s32 %s622, 1
      %p626 = scmp.eq.s32.totalorder %s90, 1
      %p627 = scmp.ne.s32.totalorder %s622, %s624
      %p628 = scmp.eq.s32.totalorder %s90, 0
      %p629 = por %p627, %p628
      %p630 = scmp.ne.s32.totalorder %s622, %s624
      %p631 = scmp.eq.s32.totalorder %s95, 1
      %p632 = por %p630, %p631
      %p633 = scmp.ne.s32.totalorder %s624, %s625
      %p634 = scmp.eq.s32.totalorder %s95, 0
      %p635 = por %p633, %p634
      %p636 = scmp.ne.s32.totalorder %s624, %s625
      %p637 = scmp.eq.s32.totalorder %s96, 1
      %p638 = por %p636, %p637
      %p640 = scmp.ne.s32.totalorder %s625, %s639
      %p641 = scmp.eq.s32.totalorder %s96, 0
      %p642 = por %p640, %p641
      %s644 = sadd.s32 %s643, 1
      %p647 = scmp.eq.s32.totalorder %s90, 1
      %p648 = scmp.ne.s32.totalorder %s643, %s645
      %p649 = scmp.eq.s32.totalorder %s90, 0
      %p650 = por %p648, %p649
      %p651 = scmp.ne.s32.totalorder %s643, %s645
      %p652 = scmp.eq.s32.totalorder %s95, 1
      %p653 = por %p651, %p652
      %p654 = scmp.ne.s32.totalorder %s645, %s646
      %p655 = scmp.eq.s32.totalorder %s95, 0
      %p656 = por %p654, %p655
      %p657 = scmp.ne.s32.totalorder %s645, %s646
      %p658 = scmp.eq.s32.totalorder %s96, 1
      %p659 = por %p657, %p658
      %p661 = scmp.ne.s32.totalorder %s646, %s660
      %p662 = scmp.eq.s32.totalorder %s96, 0
      %p663 = por %p661, %p662
      %s665 = sadd.s32 %s664, 1
      %p668 = scmp.eq.s32.totalorder %s90, 1
      %p669 = scmp.ne.s32.totalorder %s664, %s666
      %p670 = scmp.eq.s32.totalorder %s90, 0
      %p671 = por %p669, %p670
      %p672 = scmp.ne.s32.totalorder %s664, %s666
      %p673 = scmp.eq.s32.totalorder %s95, 1
      %p674 = por %p672, %p673
      %p675 = scmp.ne.s32.totalorder %s666, %s667
      %p676 = scmp.eq.s32.totalorder %s95, 0
      %p677 = por %p675, %p676
      %p678 = scmp.ne.s32.totalorder %s666, %s667
      %p679 = scmp.eq.s32.totalorder %s96, 1
      %p680 = por %p678, %p679
      %p682 = scmp.ne.s32.totalorder %s667, %s681
      %p683 = scmp.eq.s32.totalorder %s96, 0
      %p684 = por %p682, %p683
      %s686 = sadd.s32 %s685, 1
      %p689 = scmp.eq.s32.totalorder %s90, 1
      %p690 = scmp.ne.s32.totalorder %s685, %s687
      %p691 = scmp.eq.s32.totalorder %s90, 0
      %p692 = por %p690, %p691
      %p693 = scmp.ne.s32.totalorder %s685, %s687
      %p694 = scmp.eq.s32.totalorder %s95, 1
      %p695 = por %p693, %p694
      %p696 = scmp.ne.s32.totalorder %s687, %s688
      %p697 = scmp.eq.s32.totalorder %s95, 0
      %p698 = por %p696, %p697
      %p699 = scmp.ne.s32.totalorder %s687, %s688
      %p700 = scmp.eq.s32.totalorder %s96, 1
      %p701 = por %p699, %p700
      %p703 = scmp.ne.s32.totalorder %s688, %s702
      %p704 = scmp.eq.s32.totalorder %s96, 0
      %p705 = por %p703, %p704
      %s707 = sadd.s32 %s706, 1
      %p710 = scmp.eq.s32.totalorder %s90, 1
      %p711 = scmp.ne.s32.totalorder %s706, %s708
      %p712 = scmp.eq.s32.totalorder %s90, 0
      %p713 = por %p711, %p712
      %p714 = scmp.ne.s32.totalorder %s706, %s708
      %p715 = scmp.eq.s32.totalorder %s95, 1
      %p716 = por %p714, %p715
      %p717 = scmp.ne.s32.totalorder %s708, %s709
      %p718 = scmp.eq.s32.totalorder %s95, 0
      %p719 = por %p717, %p718
      %p720 = scmp.ne.s32.totalorder %s708, %s709
      %p721 = scmp.eq.s32.totalorder %s96, 1
      %p722 = por %p720, %p721
      %p724 = scmp.ne.s32.totalorder %s709, %s723
      %p725 = scmp.eq.s32.totalorder %s96, 0
      %p726 = por %p724, %p725
      %s728 = sadd.s32 %s727, 1
      %p731 = scmp.eq.s32.totalorder %s90, 1
      %p732 = scmp.ne.s32.totalorder %s727, %s729
      %p733 = scmp.eq.s32.totalorder %s90, 0
      %p734 = por %p732, %p733
      %p735 = scmp.ne.s32.totalorder %s727, %s729
      %p736 = scmp.eq.s32.totalorder %s95, 1
      %p737 = por %p735, %p736
      %p738 = scmp.ne.s32.totalorder %s729, %s730
      %p739 = scmp.eq.s32.totalorder %s95, 0
      %p740 = por %p738, %p739
      %p741 = scmp.ne.s32.totalorder %s729, %s730
      %p742 = scmp.eq.s32.totalorder %s96, 1
      %p743 = por %p741, %p742
      %p745 = scmp.ne.s32.totalorder %s730, %s744
      %p746 = scmp.eq.s32.totalorder %s96, 0
      %p747 = por %p745, %p746
      %s749 = sadd.s32 %s748, 1
      %p752 = scmp.eq.s32.totalorder %s90, 1
      %p753 = scmp.ne.s32.totalorder %s748, %s750
      %p754 = scmp.eq.s32.totalorder %s90, 0
      %p755 = por %p753, %p754
      %p756 = scmp.ne.s32.totalorder %s748, %s750
      %p757 = scmp.eq.s32.totalorder %s95, 1
      %p758 = por %p756, %p757
      %p759 = scmp.ne.s32.totalorder %s750, %s751
      %p760 = scmp.eq.s32.totalorder %s95, 0
      %p761 = por %p759, %p760
      %p762 = scmp.ne.s32.totalorder %s750, %s751
      %p763 = scmp.eq.s32.totalorder %s96, 1
      %p764 = por %p762, %p763
      %p766 = scmp.ne.s32.totalorder %s751, %s765
      %p767 = scmp.eq.s32.totalorder %s96, 0
      %p768 = por %p766, %p767
      %s770 = sadd.s32 %s769, 1
      %p773 = scmp.eq.s32.totalorder %s90, 1
      %p774 = scmp.ne.s32.totalorder %s769, %s771
      %p775 = scmp.eq.s32.totalorder %s90, 0
      %p776 = por %p774, %p775
      %p777 = scmp.ne.s32.totalorder %s769, %s771
      %p778 = scmp.eq.s32.totalorder %s95, 1
      %p779 = por %p777, %p778
      %p780 = scmp.ne.s32.totalorder %s771, %s772
      %p781 = scmp.eq.s32.totalorder %s95, 0
      %p782 = por %p780, %p781
      %p783 = scmp.ne.s32.totalorder %s771, %s772
      %p784 = scmp.eq.s32.totalorder %s96, 1
      %p785 = por %p783, %p784
      %p787 = scmp.ne.s32.totalorder %s772, %s786
      %p788 = scmp.eq.s32.totalorder %s96, 0
      %p789 = por %p787, %p788
      %s790 = ssub.s32 %s90, %s97
      %p791 = scmp.eq.s32.totalorder %s790, 0
      %s793 = sadd.s32 %s792, 1
      %s794 = scalar_select %p791, %s792, %s793
      %p797 = pneg %p791
      %p798 = scmp.eq.s32.totalorder %s90, 1
      %p799 = por %p797, %p798
      %p800 = scmp.ne.s32.totalorder %s792, %s795
      %p801 = scmp.eq.s32.totalorder %s90, 0
      %p802 = por %p800, %p801
      %p803 = scmp.ne.s32.totalorder %s792, %s795
      %p804 = scmp.eq.s32.totalorder %s95, 1
      %p805 = por %p803, %p804
      %p806 = scmp.ne.s32.totalorder %s795, %s796
      %p807 = scmp.eq.s32.totalorder %s95, 0
      %p808 = por %p806, %p807
      %p809 = scmp.ne.s32.totalorder %s795, %s796
      %p810 = scmp.eq.s32.totalorder %s96, 1
      %p811 = por %p809, %p810
      %p813 = scmp.ne.s32.totalorder %s796, %s812
      %p814 = scmp.eq.s32.totalorder %s96, 0
      %p815 = por %p813, %p814
      %p816 = scmp.le.s32.totalorder 1, %s90
      %p817 = scmp.lt.s32.totalorder %s90, 3
      %p818 = pnand %p816, %p817
      %p819 = pneg %p818
      // Predicated region
      $region9: #{tpu_custom_call.1} parent=5 // pred_check
        _
      $region10: #{tpu_custom_call.1} parent=5 // pred_check_branch
        %821 = sbr.rel (%p818) target = $region12
      $region11: #{tpu_custom_call.1} parent=5 // pred_region
        %s822 = ssub.s32 %s90, 1
        // Predicated region
        $region13: #{tpu_custom_call.1} parent=11 // pred_check
          %p823 = pneg %p215
        $region14: #{tpu_custom_call.1} parent=11 // pred_check_branch
          %825 = sbr.rel (%p823) target = $region16
        $region15: #{tpu_custom_call.1} parent=11 // pred_region
          %s827 = ssub.s32 16, 16
          %828 = vsyncadd [#allocation9], %s827
          %s830 = sshll.u32 [#allocation8], 4
          %s831 = int_to_ptr.vmem [resolvable:$true] %s830
          %833 = dma.hbm_to_vmem [thread:$0]  %s9, 16, %s831, [#allocation9]
        $region16: #{tpu_custom_call.1} parent=11 // pred_fallthru
          _
        // Predicated region
        $region17: #{tpu_custom_call.1} parent=11 // pred_check
          %p834 = pneg %p236
        $region18: #{tpu_custom_call.1} parent=11 // pred_check_branch
          %836 = sbr.rel (%p834) target = $region20
        $region19: #{tpu_custom_call.1} parent=11 // pred_region
          %s838 = ssub.s32 16, 16
          %839 = vsyncadd [#allocation9], %s838
          %s841 = sshll.u32 [#allocation10], 4
          %s842 = int_to_ptr.vmem [resolvable:$true] %s841
          %844 = dma.hbm_to_vmem [thread:$0]  %s11, 16, %s842, [#allocation9]
        $region20: #{tpu_custom_call.1} parent=11 // pred_fallthru
          _
        // Predicated region
        $region21: #{tpu_custom_call.1} parent=11 // pred_check
          %p845 = pneg %p257
        $region22: #{tpu_custom_call.1} parent=11 // pred_check_branch
          %847 = sbr.rel (%p845) target = $region24
        $region23: #{tpu_custom_call.1} parent=11 // pred_region
          %s849 = ssub.s32 16, 16
          %850 = vsyncadd [#allocation12], %s849
          %s852 = sshll.u32 [#allocation11], 4
          %s853 = int_to_ptr.vmem [resolvable:$true] %s852
          %855 = dma.hbm_to_vmem [thread:$0]  %s13, 16, %s853, [#allocation12]
        $region24: #{tpu_custom_call.1} parent=11 // pred_fallthru
          _
        // Predicated region
        $region25: #{tpu_custom_call.1} parent=11 // pred_check
          %p856 = pneg %p278
        $region26: #{tpu_custom_call.1} parent=11 // pred_check_branch
          %858 = sbr.rel (%p856) target = $region28
        $region27: #{tpu_custom_call.1} parent=11 // pred_region
          %s860 = ssub.s32 16, 16
          %861 = vsyncadd [#allocation12], %s860
          %s863 = sshll.u32 [#allocation13], 4
          %s864 = int_to_ptr.vmem [resolvable:$true] %s863
          %866 = dma.hbm_to_vmem [thread:$0]  %s15, 16, %s864, [#allocation12]
        $region28: #{tpu_custom_call.1} parent=11 // pred_fallthru
          _
        // Predicated region
        $region29: #{tpu_custom_call.1} parent=11 // pred_check
          %p867 = pneg %p299
        $region30: #{tpu_custom_call.1} parent=11 // pred_check_branch
          %869 = sbr.rel (%p867) target = $region32
        $region31: #{tpu_custom_call.1} parent=11 // pred_region
          %s871 = ssub.s32 16, 16
          %872 = vsyncadd [#allocation15], %s871
          %s874 = sshll.u32 [#allocation14], 4
          %s875 = int_to_ptr.vmem [resolvable:$true] %s874
          %877 = dma.hbm_to_vmem [thread:$0]  %s17, 16, %s875, [#allocation15]
        $region32: #{tpu_custom_call.1} parent=11 // pred_fallthru
          _
        // Predicated region
        $region33: #{tpu_custom_call.1} parent=11 // pred_check
          %p878 = pneg %p320
        $region34: #{tpu_custom_call.1} parent=11 // pred_check_branch
          %880 = sbr.rel (%p878) target = $region36
        $region35: #{tpu_custom_call.1} parent=11 // pred_region
          %s882 = ssub.s32 16, 16
          %883 = vsyncadd [#allocation15], %s882
          %s885 = sshll.u32 [#allocation16], 4
          %s886 = int_to_ptr.vmem [resolvable:$true] %s885
          %888 = dma.hbm_to_vmem [thread:$0]  %s19, 16, %s886, [#allocation15]
        $region36: #{tpu_custom_call.1} parent=11 // pred_fallthru
          _
        // Predicated region
        $region37: #{tpu_custom_call.1} parent=11 // pred_check
          %p889 = pneg %p341
        $region38: #{tpu_custom_call.1} parent=11 // pred_check_branch
          %891 = sbr.rel (%p889) target = $region40
        $region39: #{tpu_custom_call.1} parent=11 // pred_region
          %s893 = ssub.s32 1024, 1024
          %894 = vsyncadd [#allocation18], %s893
          %s895 = sshll.u32 [#allocation17], 4
          %s896 = int_to_ptr.vmem [resolvable:$true] %s895
          %901 = dma.hbm_to_vmem [thread:$0]  %s21, 1024, %s896, [#allocation18], 64, 64, 4
        $region40: #{tpu_custom_call.1} parent=11 // pred_fallthru
          _
        // Predicated region
        $region41: #{tpu_custom_call.1} parent=11 // pred_check
          %p902 = pneg %p362
        $region42: #{tpu_custom_call.1} parent=11 // pred_check_branch
          %904 = sbr.rel (%p902) target = $region44
        $region43: #{tpu_custom_call.1} parent=11 // pred_region
          %s906 = ssub.s32 1024, 1024
          %907 = vsyncadd [#allocation18], %s906
          %s908 = sshll.u32 [#allocation19], 4
          %s909 = int_to_ptr.vmem [resolvable:$true] %s908
          %914 = dma.hbm_to_vmem [thread:$0]  %s23, 1024, %s909, [#allocation18], 64, 64, 4
        $region44: #{tpu_custom_call.1} parent=11 // pred_fallthru
          _
        // Predicated region
        $region45: #{tpu_custom_call.1} parent=11 // pred_check
          %p915 = pneg %p383
        $region46: #{tpu_custom_call.1} parent=11 // pred_check_branch
          %917 = sbr.rel (%p915) target = $region48
        $region47: #{tpu_custom_call.1} parent=11 // pred_region
          %s919 = ssub.s32 1024, 1024
          %920 = vsyncadd [#allocation21], %s919
          %s921 = sshll.u32 [#allocation20], 4
          %s922 = int_to_ptr.vmem [resolvable:$true] %s921
          %927 = dma.hbm_to_vmem [thread:$0]  %s25, 1024, %s922, [#allocation21], 64, 64, 4
        $region48: #{tpu_custom_call.1} parent=11 // pred_fallthru
          _
        // Predicated region
        $region49: #{tpu_custom_call.1} parent=11 // pred_check
          %p928 = pneg %p404
        $region50: #{tpu_custom_call.1} parent=11 // pred_check_branch
          %930 = sbr.rel (%p928) target = $region52
        $region51: #{tpu_custom_call.1} parent=11 // pred_region
          %s932 = ssub.s32 1024, 1024
          %933 = vsyncadd [#allocation21], %s932
          %s934 = sshll.u32 [#allocation22], 4
          %s935 = int_to_ptr.vmem [resolvable:$true] %s934
          %940 = dma.hbm_to_vmem [thread:$0]  %s27, 1024, %s935, [#allocation21], 64, 64, 4
        $region52: #{tpu_custom_call.1} parent=11 // pred_fallthru
          _
        // Predicated region
        $region53: #{tpu_custom_call.1} parent=11 // pred_check
          %p941 = pneg %p425
        $region54: #{tpu_custom_call.1} parent=11 // pred_check_branch
          %943 = sbr.rel (%p941) target = $region56
        $region55: #{tpu_custom_call.1} parent=11 // pred_region
          %s945 = ssub.s32 16, 16
          %946 = vsyncadd [#allocation24], %s945
          %s948 = sshll.u32 [#allocation23], 4
          %s949 = int_to_ptr.vmem [resolvable:$true] %s948
          %951 = dma.hbm_to_vmem [thread:$0]  %s29, 16, %s949, [#allocation24]
        $region56: #{tpu_custom_call.1} parent=11 // pred_fallthru
          _
        // Predicated region
        $region57: #{tpu_custom_call.1} parent=11 // pred_check
          %p952 = pneg %p446
        $region58: #{tpu_custom_call.1} parent=11 // pred_check_branch
          %954 = sbr.rel (%p952) target = $region60
        $region59: #{tpu_custom_call.1} parent=11 // pred_region
          %s956 = ssub.s32 16, 16
          %957 = vsyncadd [#allocation24], %s956
          %s959 = sshll.u32 [#allocation25], 4
          %s960 = int_to_ptr.vmem [resolvable:$true] %s959
          %962 = dma.hbm_to_vmem [thread:$0]  %s31, 16, %s960, [#allocation24]
        $region60: #{tpu_custom_call.1} parent=11 // pred_fallthru
          _
        // Predicated region
        $region61: #{tpu_custom_call.1} parent=11 // pred_check
          %p963 = pneg %p467
        $region62: #{tpu_custom_call.1} parent=11 // pred_check_branch
          %965 = sbr.rel (%p963) target = $region64
        $region63: #{tpu_custom_call.1} parent=11 // pred_region
          %s967 = ssub.s32 16, 16
          %968 = vsyncadd [#allocation27], %s967
          %s970 = sshll.u32 [#allocation26], 4
          %s971 = int_to_ptr.vmem [resolvable:$true] %s970
          %973 = dma.hbm_to_vmem [thread:$0]  %s33, 16, %s971, [#allocation27]
        $region64: #{tpu_custom_call.1} parent=11 // pred_fallthru
          _
        // Predicated region
        $region65: #{tpu_custom_call.1} parent=11 // pred_check
          %p974 = pneg %p488
        $region66: #{tpu_custom_call.1} parent=11 // pred_check_branch
          %976 = sbr.rel (%p974) target = $region68
        $region67: #{tpu_custom_call.1} parent=11 // pred_region
          %s978 = ssub.s32 16, 16
          %979 = vsyncadd [#allocation27], %s978
          %s981 = sshll.u32 [#allocation28], 4
          %s982 = int_to_ptr.vmem [resolvable:$true] %s981
          %984 = dma.hbm_to_vmem [thread:$0]  %s35, 16, %s982, [#allocation27]
        $region68: #{tpu_custom_call.1} parent=11 // pred_fallthru
          _
        // Predicated region
        $region69: #{tpu_custom_call.1} parent=11 // pred_check
          %p985 = pneg %p509
        $region70: #{tpu_custom_call.1} parent=11 // pred_check_branch
          %987 = sbr.rel (%p985) target = $region72
        $region71: #{tpu_custom_call.1} parent=11 // pred_region
          _
        $region72: #{tpu_custom_call.1} parent=11 // pred_fallthru
          _
        // Predicated region
        $region73: #{tpu_custom_call.1} parent=11 // pred_check
          %p988 = pneg %p530
        $region74: #{tpu_custom_call.1} parent=11 // pred_check_branch
          %990 = sbr.rel (%p988) target = $region76
        $region75: #{tpu_custom_call.1} parent=11 // pred_region
          %s992 = ssub.s32 1024, 1024
          %993 = vsyncadd [#allocation30], %s992
          %s994 = sshll.u32 [#allocation29], 4
          %s995 = int_to_ptr.vmem [resolvable:$true] %s994
          %1000 = dma.hbm_to_vmem [thread:$0]  %s39, 1024, %s995, [#allocation30], 64, 64, 4
        $region76: #{tpu_custom_call.1} parent=11 // pred_fallthru
          _
        // Predicated region
        $region77: #{tpu_custom_call.1} parent=11 // pred_check
          %p1001 = pneg %p551
        $region78: #{tpu_custom_call.1} parent=11 // pred_check_branch
          %1003 = sbr.rel (%p1001) target = $region80
        $region79: #{tpu_custom_call.1} parent=11 // pred_region
          %s1005 = ssub.s32 1024, 1024
          %1006 = vsyncadd [#allocation30], %s1005
          %s1007 = sshll.u32 [#allocation31], 4
          %s1008 = int_to_ptr.vmem [resolvable:$true] %s1007
          %1013 = dma.hbm_to_vmem [thread:$0]  %s41, 1024, %s1008, [#allocation30], 64, 64, 4
        $region80: #{tpu_custom_call.1} parent=11 // pred_fallthru
          _
        // Predicated region
        $region81: #{tpu_custom_call.1} parent=11 // pred_check
          %p1014 = pneg %p572
        $region82: #{tpu_custom_call.1} parent=11 // pred_check_branch
          %1016 = sbr.rel (%p1014) target = $region84
        $region83: #{tpu_custom_call.1} parent=11 // pred_region
          %s1018 = ssub.s32 1024, 1024
          %1019 = vsyncadd [#allocation33], %s1018
          %s1020 = sshll.u32 [#allocation32], 4
          %s1021 = int_to_ptr.vmem [resolvable:$true] %s1020
          %1026 = dma.hbm_to_vmem [thread:$0]  %s43, 1024, %s1021, [#allocation33], 64, 64, 4
        $region84: #{tpu_custom_call.1} parent=11 // pred_fallthru
          _
        // Predicated region
        $region85: #{tpu_custom_call.1} parent=11 // pred_check
          %p1027 = pneg %p593
        $region86: #{tpu_custom_call.1} parent=11 // pred_check_branch
          %1029 = sbr.rel (%p1027) target = $region88
        $region87: #{tpu_custom_call.1} parent=11 // pred_region
          _
        $region88: #{tpu_custom_call.1} parent=11 // pred_fallthru
          _
        // Predicated region
        $region89: #{tpu_custom_call.1} parent=11 // pred_check
          %p1030 = pneg %p614
        $region90: #{tpu_custom_call.1} parent=11 // pred_check_branch
          %1032 = sbr.rel (%p1030) target = $region92
        $region91: #{tpu_custom_call.1} parent=11 // pred_region
          _
        $region92: #{tpu_custom_call.1} parent=11 // pred_fallthru
          _
        // Predicated region
        $region93: #{tpu_custom_call.1} parent=11 // pred_check
          %p1033 = pneg %p635
        $region94: #{tpu_custom_call.1} parent=11 // pred_check_branch
          %1035 = sbr.rel (%p1033) target = $region96
        $region95: #{tpu_custom_call.1} parent=11 // pred_region
          _
        $region96: #{tpu_custom_call.1} parent=11 // pred_fallthru
          _
        // Predicated region
        $region97: #{tpu_custom_call.1} parent=11 // pred_check
          %p1036 = pneg %p656
        $region98: #{tpu_custom_call.1} parent=11 // pred_check_branch
          %1038 = sbr.rel (%p1036) target = $region100
        $region99: #{tpu_custom_call.1} parent=11 // pred_region
          _
        $region100: #{tpu_custom_call.1} parent=11 // pred_fallthru
          _
        // Predicated region
        $region101: #{tpu_custom_call.1} parent=11 // pred_check
          %p1039 = pneg %p677
        $region102: #{tpu_custom_call.1} parent=11 // pred_check_branch
          %1041 = sbr.rel (%p1039) target = $region104
        $region103: #{tpu_custom_call.1} parent=11 // pred_region
          %s1043 = ssub.s32 2048, 2048
          %1044 = vsyncadd [#allocation33], %s1043
          %s1045 = sshll.u32 [#allocation34], 4
          %s1046 = int_to_ptr.vmem [resolvable:$true] %s1045
          %1051 = dma.hbm_to_vmem [thread:$0]  %s53, 2048, %s1046, [#allocation33], 128, 128, 8
        $region104: #{tpu_custom_call.1} parent=11 // pred_fallthru
          _
        // Predicated region
        $region105: #{tpu_custom_call.1} parent=11 // pred_check
          %p1052 = pneg %p698
        $region106: #{tpu_custom_call.1} parent=11 // pred_check_branch
          %1054 = sbr.rel (%p1052) target = $region108
        $region107: #{tpu_custom_call.1} parent=11 // pred_region
          _
        $region108: #{tpu_custom_call.1} parent=11 // pred_fallthru
          _
        // Predicated region
        $region109: #{tpu_custom_call.1} parent=11 // pred_check
          %p1055 = pneg %p719
        $region110: #{tpu_custom_call.1} parent=11 // pred_check_branch
          %1057 = sbr.rel (%p1055) target = $region112
        $region111: #{tpu_custom_call.1} parent=11 // pred_region
          %s1059 = ssub.s32 2048, 2048
          %1060 = vsyncadd [#allocation36], %s1059
          %s1061 = sshll.u32 [#allocation35], 4
          %s1062 = int_to_ptr.vmem [resolvable:$true] %s1061
          %1067 = dma.hbm_to_vmem [thread:$0]  %s57, 2048, %s1062, [#allocation36], 64, 64, 4
        $region112: #{tpu_custom_call.1} parent=11 // pred_fallthru
          _
        // Predicated region
        $region113: #{tpu_custom_call.1} parent=11 // pred_check
          %p1068 = pneg %p740
        $region114: #{tpu_custom_call.1} parent=11 // pred_check_branch
          %1070 = sbr.rel (%p1068) target = $region116
        $region115: #{tpu_custom_call.1} parent=11 // pred_region
          _
        $region116: #{tpu_custom_call.1} parent=11 // pred_fallthru
          _
        // Predicated region
        $region117: #{tpu_custom_call.1} parent=11 // pred_check
          %p1071 = pneg %p761
        $region118: #{tpu_custom_call.1} parent=11 // pred_check_branch
          %1073 = sbr.rel (%p1071) target = $region120
        $region119: #{tpu_custom_call.1} parent=11 // pred_region
          _
        $region120: #{tpu_custom_call.1} parent=11 // pred_fallthru
          _
        // Predicated region
        $region121: #{tpu_custom_call.1} parent=11 // pred_check
          %p1074 = pneg %p782
        $region122: #{tpu_custom_call.1} parent=11 // pred_check_branch
          %1076 = sbr.rel (%p1074) target = $region124
        $region123: #{tpu_custom_call.1} parent=11 // pred_region
          _
        $region124: #{tpu_custom_call.1} parent=11 // pred_fallthru
          _
      $region12: #{tpu_custom_call.1} parent=5 // pred_fallthru
        _
      %p1077 = scmp.lt.s32.totalorder %s90, 2
      // Predicated region
      $region125: #{tpu_custom_call.1} parent=5 // pred_check
        %p1078 = pneg %p1077
      $region126: #{tpu_custom_call.1} parent=5 // pred_check_branch
        %1080 = sbr.rel (%p1078) target = $region128
      $region127: #{tpu_custom_call.1} parent=5 // pred_region
        // Predicated region
        $region129: #{tpu_custom_call.1} parent=127 // pred_check
          %p1081 = pneg %p110
        $region130: #{tpu_custom_call.1} parent=127 // pred_check_branch
          %1083 = sbr.rel (%p1081) target = $region132
        $region131: #{tpu_custom_call.1} parent=127 // pred_region
          %s1084 = sand.u32 %s100, 1
          %s1085 = scalar_lea.sflag [#allocation3], %s1084
          %s1086 = sand.u32 %s100, 1
          %s1087 = smul.addr %s1086, 8
          %s1088 = scalar_lea.vmem [#allocation2], %s1087
          %s1090 = ssub.s32 128, 128
          %1091 = vsyncadd %s1085, %s1090
          %s1092 = smul.addr %s90, 128
          %s1093 = scalar_lea.hbm %s1, %s1092
          %s1095 = sshll.u32 %s1088, 4
          %s1096 = int_to_ptr.vmem [resolvable:$true] %s1095
          %1098 = dma.hbm_to_vmem [thread:$0]  %s1093, 128, %s1096, %s1085
        $region132: #{tpu_custom_call.1} parent=127 // pred_fallthru
          _
        // Predicated region
        $region133: #{tpu_custom_call.1} parent=127 // pred_check
          %p1099 = pneg %p136
        $region134: #{tpu_custom_call.1} parent=127 // pred_check_branch
          %1101 = sbr.rel (%p1099) target = $region136
        $region135: #{tpu_custom_call.1} parent=127 // pred_region
          %s1102 = sand.u32 %s90, 1
          %s1103 = scalar_lea.sflag [#allocation6], %s1102
          %s1104 = sand.u32 %s126, 1
          %s1105 = smul.addr %s1104, 8
          %s1106 = scalar_lea.vmem [#allocation5], %s1105
          %s1108 = ssub.s32 128, 128
          %1109 = vsyncadd %s1103, %s1108
          %s1110 = smul.addr %s90, 128
          %s1111 = scalar_lea.hbm %s3, %s1110
          %s1113 = sshll.u32 %s1106, 4
          %s1114 = int_to_ptr.vmem [resolvable:$true] %s1113
          %1116 = dma.hbm_to_vmem [thread:$0]  %s1111, 128, %s1114, %s1103
        $region136: #{tpu_custom_call.1} parent=127 // pred_fallthru
          _
        // Predicated region
        $region137: #{tpu_custom_call.1} parent=127 // pred_check
          %p1117 = pneg %p162
        $region138: #{tpu_custom_call.1} parent=127 // pred_check_branch
          %1119 = sbr.rel (%p1117) target = $region140
        $region139: #{tpu_custom_call.1} parent=127 // pred_region
          %p1120 = scmp.lt.s32.totalorder %s90, 1
          %s1121 = scalar_select %p1120, %s90, 1
          %s1122 = smul.addr %s1121, 2
          %s1123 = scalar_lea.vmem %s5, %s1122
        $region140: #{tpu_custom_call.1} parent=127 // pred_fallthru
          _
        // Predicated region
        $region141: #{tpu_custom_call.1} parent=127 // pred_check
          %p1124 = pneg %p188
        $region142: #{tpu_custom_call.1} parent=127 // pred_check_branch
          %1126 = sbr.rel (%p1124) target = $region144
        $region143: #{tpu_custom_call.1} parent=127 // pred_region
          %s1127 = sand.u32 %s90, 1
          %s1128 = scalar_lea.sflag [#allocation6], %s1127
          %s1129 = sand.u32 %s178, 1
          %s1130 = smul.addr %s1129, 2
          %s1131 = scalar_lea.vmem [#allocation7], %s1130
          %s1133 = ssub.s32 32, 32
          %1134 = vsyncadd %s1128, %s1133
          %s1135 = smul.addr %s90, 32
          %s1136 = scalar_lea.hbm %s7, %s1135
          %s1138 = sshll.u32 %s1131, 4
          %s1139 = int_to_ptr.vmem [resolvable:$true] %s1138
          %1141 = dma.hbm_to_vmem [thread:$0]  %s1136, 32, %s1139, %s1128
        $region144: #{tpu_custom_call.1} parent=127 // pred_fallthru
          _
      $region128: #{tpu_custom_call.1} parent=5 // pred_fallthru
        _
      %p1142 = scmp.le.s32.totalorder 1, %s90
      %p1143 = scmp.lt.s32.totalorder %s90, 3
      %p1144 = pnand %p1142, %p1143
      %p1145 = pneg %p1144
      // Predicated region
      $region145: #{tpu_custom_call.1} parent=5 // pred_check
        _
      $region146: #{tpu_custom_call.1} parent=5 // pred_check_branch
        %1147 = sbr.rel (%p1144) target = $region148
      $region147: #{tpu_custom_call.1} parent=5 // pred_region
        %s1148 = ssub.s32 %s90, 1
        %s1149 = sand.u32 %s103, 1
        %s1150 = scalar_lea.sflag [#allocation3], %s1149
        %s1151 = sand.u32 %s103, 1
        %s1152 = smul.addr %s1151, 8
        %s1153 = scalar_lea.vmem [#allocation2], %s1152
        // Predicated region
        $region149: #{tpu_custom_call.1} parent=147 // pred_check
          %p1154 = pneg %p116
        $region150: #{tpu_custom_call.1} parent=147 // pred_check_branch
          %1156 = sbr.rel (%p1154) target = $region152
        $region151: #{tpu_custom_call.1} parent=147 // pred_region
          %1157 = dma.done %s1150, 128
        $region152: #{tpu_custom_call.1} parent=147 // pred_fallthru
          _
        %s1158 = sand.u32 %s95, 1
        %s1159 = scalar_lea.sflag [#allocation6], %s1158
        %s1160 = sand.u32 %s129, 1
        %s1161 = smul.addr %s1160, 8
        %s1162 = scalar_lea.vmem [#allocation5], %s1161
        // Predicated region
        $region153: #{tpu_custom_call.1} parent=147 // pred_check
          %p1163 = pneg %p142
        $region154: #{tpu_custom_call.1} parent=147 // pred_check_branch
          %1165 = sbr.rel (%p1163) target = $region156
        $region155: #{tpu_custom_call.1} parent=147 // pred_region
          %1166 = dma.done %s1159, 128
        $region156: #{tpu_custom_call.1} parent=147 // pred_fallthru
          _
        %s1167 = sand.u32 %s95, 1
        %s1168 = scalar_lea.sflag [#allocation6], %s1167
        %s1169 = sand.u32 %s181, 1
        %s1170 = smul.addr %s1169, 2
        %s1171 = scalar_lea.vmem [#allocation7], %s1170
        // Predicated region
        $region157: #{tpu_custom_call.1} parent=147 // pred_check
          %p1172 = pneg %p194
        $region158: #{tpu_custom_call.1} parent=147 // pred_check_branch
          %1174 = sbr.rel (%p1172) target = $region160
        $region159: #{tpu_custom_call.1} parent=147 // pred_region
          %1175 = dma.done %s1168, 32
        $region160: #{tpu_custom_call.1} parent=147 // pred_fallthru
          _
        // Predicated region
        $region161: #{tpu_custom_call.1} parent=147 // pred_check
          %p1176 = pneg %p215
        $region162: #{tpu_custom_call.1} parent=147 // pred_check_branch
          %1178 = sbr.rel (%p1176) target = $region164
        $region163: #{tpu_custom_call.1} parent=147 // pred_region
          %1179 = dma.done [#allocation9], 16
        $region164: #{tpu_custom_call.1} parent=147 // pred_fallthru
          _
        // Predicated region
        $region165: #{tpu_custom_call.1} parent=147 // pred_check
          %p1180 = pneg %p236
        $region166: #{tpu_custom_call.1} parent=147 // pred_check_branch
          %1182 = sbr.rel (%p1180) target = $region168
        $region167: #{tpu_custom_call.1} parent=147 // pred_region
          %1183 = dma.done [#allocation9], 16
        $region168: #{tpu_custom_call.1} parent=147 // pred_fallthru
          _
        // Predicated region
        $region169: #{tpu_custom_call.1} parent=147 // pred_check
          %p1184 = pneg %p257
        $region170: #{tpu_custom_call.1} parent=147 // pred_check_branch
          %1186 = sbr.rel (%p1184) target = $region172
        $region171: #{tpu_custom_call.1} parent=147 // pred_region
          %1187 = dma.done [#allocation12], 16
        $region172: #{tpu_custom_call.1} parent=147 // pred_fallthru
          _
        // Predicated region
        $region173: #{tpu_custom_call.1} parent=147 // pred_check
          %p1188 = pneg %p278
        $region174: #{tpu_custom_call.1} parent=147 // pred_check_branch
          %1190 = sbr.rel (%p1188) target = $region176
        $region175: #{tpu_custom_call.1} parent=147 // pred_region
          %1191 = dma.done [#allocation12], 16
        $region176: #{tpu_custom_call.1} parent=147 // pred_fallthru
          _
        // Predicated region
        $region177: #{tpu_custom_call.1} parent=147 // pred_check
          %p1192 = pneg %p299
        $region178: #{tpu_custom_call.1} parent=147 // pred_check_branch
          %1194 = sbr.rel (%p1192) target = $region180
        $region179: #{tpu_custom_call.1} parent=147 // pred_region
          %1195 = dma.done [#allocation15], 16
        $region180: #{tpu_custom_call.1} parent=147 // pred_fallthru
          _
        // Predicated region
        $region181: #{tpu_custom_call.1} parent=147 // pred_check
          %p1196 = pneg %p320
        $region182: #{tpu_custom_call.1} parent=147 // pred_check_branch
          %1198 = sbr.rel (%p1196) target = $region184
        $region183: #{tpu_custom_call.1} parent=147 // pred_region
          %1199 = dma.done [#allocation15], 16
        $region184: #{tpu_custom_call.1} parent=147 // pred_fallthru
          _
        // Predicated region
        $region185: #{tpu_custom_call.1} parent=147 // pred_check
          %p1200 = pneg %p341
        $region186: #{tpu_custom_call.1} parent=147 // pred_check_branch
          %1202 = sbr.rel (%p1200) target = $region188
        $region187: #{tpu_custom_call.1} parent=147 // pred_region
          %1203 = dma.done [#allocation18], 1024
        $region188: #{tpu_custom_call.1} parent=147 // pred_fallthru
          _
        // Predicated region
        $region189: #{tpu_custom_call.1} parent=147 // pred_check
          %p1204 = pneg %p362
        $region190: #{tpu_custom_call.1} parent=147 // pred_check_branch
          %1206 = sbr.rel (%p1204) target = $region192
        $region191: #{tpu_custom_call.1} parent=147 // pred_region
          %1207 = dma.done [#allocation18], 1024
        $region192: #{tpu_custom_call.1} parent=147 // pred_fallthru
          _
        // Predicated region
        $region193: #{tpu_custom_call.1} parent=147 // pred_check
          %p1208 = pneg %p383
        $region194: #{tpu_custom_call.1} parent=147 // pred_check_branch
          %1210 = sbr.rel (%p1208) target = $region196
        $region195: #{tpu_custom_call.1} parent=147 // pred_region
          %1211 = dma.done [#allocation21], 1024
        $region196: #{tpu_custom_call.1} parent=147 // pred_fallthru
          _
        // Predicated region
        $region197: #{tpu_custom_call.1} parent=147 // pred_check
          %p1212 = pneg %p404
        $region198: #{tpu_custom_call.1} parent=147 // pred_check_branch
          %1214 = sbr.rel (%p1212) target = $region200
        $region199: #{tpu_custom_call.1} parent=147 // pred_region
          %1215 = dma.done [#allocation21], 1024
        $region200: #{tpu_custom_call.1} parent=147 // pred_fallthru
          _
        // Predicated region
        $region201: #{tpu_custom_call.1} parent=147 // pred_check
          %p1216 = pneg %p425
        $region202: #{tpu_custom_call.1} parent=147 // pred_check_branch
          %1218 = sbr.rel (%p1216) target = $region204
        $region203: #{tpu_custom_call.1} parent=147 // pred_region
          %1219 = dma.done [#allocation24], 16
        $region204: #{tpu_custom_call.1} parent=147 // pred_fallthru
          _
        // Predicated region
        $region205: #{tpu_custom_call.1} parent=147 // pred_check
          %p1220 = pneg %p446
        $region206: #{tpu_custom_call.1} parent=147 // pred_check_branch
          %1222 = sbr.rel (%p1220) target = $region208
        $region207: #{tpu_custom_call.1} parent=147 // pred_region
          %1223 = dma.done [#allocation24], 16
        $region208: #{tpu_custom_call.1} parent=147 // pred_fallthru
          _
        // Predicated region
        $region209: #{tpu_custom_call.1} parent=147 // pred_check
          %p1224 = pneg %p467
        $region210: #{tpu_custom_call.1} parent=147 // pred_check_branch
          %1226 = sbr.rel (%p1224) target = $region212
        $region211: #{tpu_custom_call.1} parent=147 // pred_region
          %1227 = dma.done [#allocation27], 16
        $region212: #{tpu_custom_call.1} parent=147 // pred_fallthru
          _
        // Predicated region
        $region213: #{tpu_custom_call.1} parent=147 // pred_check
          %p1228 = pneg %p488
        $region214: #{tpu_custom_call.1} parent=147 // pred_check_branch
          %1230 = sbr.rel (%p1228) target = $region216
        $region215: #{tpu_custom_call.1} parent=147 // pred_region
          %1231 = dma.done [#allocation27], 16
        $region216: #{tpu_custom_call.1} parent=147 // pred_fallthru
          _
        // Predicated region
        $region217: #{tpu_custom_call.1} parent=147 // pred_check
          %p1232 = pneg %p530
        $region218: #{tpu_custom_call.1} parent=147 // pred_check_branch
          %1234 = sbr.rel (%p1232) target = $region220
        $region219: #{tpu_custom_call.1} parent=147 // pred_region
          %1235 = dma.done [#allocation30], 1024
        $region220: #{tpu_custom_call.1} parent=147 // pred_fallthru
          _
        // Predicated region
        $region221: #{tpu_custom_call.1} parent=147 // pred_check
          %p1236 = pneg %p551
        $region222: #{tpu_custom_call.1} parent=147 // pred_check_branch
          %1238 = sbr.rel (%p1236) target = $region224
        $region223: #{tpu_custom_call.1} parent=147 // pred_region
          %1239 = dma.done [#allocation30], 1024
        $region224: #{tpu_custom_call.1} parent=147 // pred_fallthru
          _
        // Predicated region
        $region225: #{tpu_custom_call.1} parent=147 // pred_check
          %p1240 = pneg %p572
        $region226: #{tpu_custom_call.1} parent=147 // pred_check_branch
          %1242 = sbr.rel (%p1240) target = $region228
        $region227: #{tpu_custom_call.1} parent=147 // pred_region
          %1243 = dma.done [#allocation33], 1024
        $region228: #{tpu_custom_call.1} parent=147 // pred_fallthru
          _
        // Predicated region
        $region229: #{tpu_custom_call.1} parent=147 // pred_check
          %p1244 = pneg %p677
        $region230: #{tpu_custom_call.1} parent=147 // pred_check_branch
          %1246 = sbr.rel (%p1244) target = $region232
        $region231: #{tpu_custom_call.1} parent=147 // pred_region
          %1247 = dma.done [#allocation33], 2048
        $region232: #{tpu_custom_call.1} parent=147 // pred_fallthru
          _
        // Predicated region
        $region233: #{tpu_custom_call.1} parent=147 // pred_check
          %p1248 = pneg %p719
        $region234: #{tpu_custom_call.1} parent=147 // pred_check_branch
          %1250 = sbr.rel (%p1248) target = $region236
        $region235: #{tpu_custom_call.1} parent=147 // pred_region
          %1251 = dma.done [#allocation36], 2048
        $region236: #{tpu_custom_call.1} parent=147 // pred_fallthru
          _
        %s1252 = sand.u32 %s103, 1
        %s1253 = scalar_lea.sflag [#allocation3], %s1252
        %s1254 = sand.u32 %s103, 1
        %s1255 = smul.addr %s1254, 8
        %s1256 = scalar_lea.vmem [#allocation2], %s1255
        %p1257 = pneg %p116
        %p1258 = pneg %p113
        %s1259 = sand.u32 %s95, 1
        %s1260 = scalar_lea.sflag [#allocation6], %s1259
        %s1261 = sand.u32 %s129, 1
        %s1262 = smul.addr %s1261, 8
        %s1263 = scalar_lea.vmem [#allocation5], %s1262
        %p1264 = pneg %p142
        %p1265 = pneg %p139
        %p1266 = scmp.lt.s32.totalorder %s95, 1
        %s1267 = scalar_select %p1266, %s95, 1
        %s1268 = smul.addr %s1267, 2
        %s1269 = scalar_lea.vmem %s5, %s1268
        %p1270 = pneg %p168
        %p1271 = pneg %p165
        %s1272 = sand.u32 %s95, 1
        %s1273 = scalar_lea.sflag [#allocation6], %s1272
        %s1274 = sand.u32 %s181, 1
        %s1275 = smul.addr %s1274, 2
        %s1276 = scalar_lea.vmem [#allocation7], %s1275
        %p1277 = pneg %p194
        %p1278 = pneg %p191
        %p1279 = pneg %p215
        %p1280 = pneg %p212
        %p1281 = pneg %p236
        %p1282 = pneg %p233
        %p1283 = pneg %p257
        %p1284 = pneg %p254
        %p1285 = pneg %p278
        %p1286 = pneg %p275
        %p1287 = pneg %p299
        %p1288 = pneg %p296
        %p1289 = pneg %p320
        %p1290 = pneg %p317
        %p1291 = pneg %p341
        %p1292 = pneg %p338
        %p1293 = pneg %p362
        %p1294 = pneg %p359
        %p1295 = pneg %p383
        %p1296 = pneg %p380
        %p1297 = pneg %p404
        %p1298 = pneg %p401
        %p1299 = pneg %p425
        %p1300 = pneg %p422
        %p1301 = pneg %p446
        %p1302 = pneg %p443
        %p1303 = pneg %p467
        %p1304 = pneg %p464
        %p1305 = pneg %p488
        %p1306 = pneg %p485
        %p1307 = pneg %p509
        %p1308 = pneg %p506
        %p1309 = pneg %p530
        %p1310 = pneg %p527
        %p1311 = pneg %p551
        %p1312 = pneg %p548
        %p1313 = pneg %p572
        %p1314 = pneg %p569
        %p1315 = pneg %p593
        %p1316 = pneg %p590
        %p1317 = pneg %p614
        %p1318 = pneg %p611
        %p1319 = pneg %p635
        %p1320 = pneg %p632
        %p1321 = pneg %p656
        %p1322 = pneg %p653
        %p1323 = pneg %p677
        %p1324 = pneg %p674
        %p1325 = pneg %p698
        %p1326 = pneg %p695
        %p1327 = pneg %p719
        %p1328 = pneg %p716
        %p1329 = pneg %p740
        %p1330 = pneg %p737
        %p1331 = pneg %p761
        %p1332 = pneg %p758
        %p1333 = pneg %p782
        %p1334 = pneg %p779
        %p1335 = pneg %p808
        %p1336 = pneg %p805
        %s1337 = sand.u32 %s795, 1
        %s1338 = scalar_lea.sflag [#allocation4], %s1337
        %s1339 = sand.u32 %s795, 1
        %s1340 = smul.addr %s1339, 8
        %s1341 = scalar_lea.vmem [#allocation37], %s1340
        %p1342 = scmp.lt.s32.totalorder %s95, 1
        %s1343 = scalar_select %p1342, %s95, 1
        %s1344 = smul.addr %s1343, 2
        %s1345 = scalar_lea.vmem %s5, %s1344
        %v1349 = vld [vmem:[%s1153] sm:$0xff]
        %v1350 = vld [vmem:[%s1162] sm:$0xff]
        %v1351 = vld [vmem:[%s1345] sm:$0x3]
        %vm1352 = vnez %v1351
        %v1353 = vld [vmem:[%s1171] sm:$0x3]
        %vm1354 = vnez %v1353
        %v1355 = vld [vmem:[#allocation8] sm:$0x1]
        %v1356 = vld [vmem:[#allocation10] sm:$0x1]
        %1357 = vadd.xlane.f32.xlu0 %v1349
        %v1358 = vpop.xlane.xlu0 %1357
        %v1359 = vrcp.pop 128.0
        %v1360 = vmul.f32 %v1358, %v1359
        %v1361 = vsub.f32 %v1349, %v1360
        %v1362 = vmul.f32 %v1361, %v1361
        %1363 = vadd.xlane.f32.xlu0 %v1362
        %v1364 = vpop.xlane.xlu0 %1363
        %v1365 = vmul.f32 %v1364, 0.007874016
        %v1366 = vrsqrt.pop %v1365
        %v1367 = vmul.f32 %v1365, %v1366
        %vm1368 = vcmp.eq.f32.partialorder %v1365, inf
        %v1369 = vsel %vm1368, %v1365, %v1367
        %vm1370 = vcmp.eq.f32.partialorder %v1365, 0.0
        %v1371 = vand.u32 %v1365, 2147483648
        %v1372 = vsel %vm1370, %v1371, %v1369
        %v1373 = vadd.f32 %v1372, 1e-06
        %v1374 = vrcp.pop %v1373
        %v1375 = vmul.f32 %v1373, %v1374
        %v1376 = vsub.f32 2.0, %v1375
        %v1377 = vmul.f32 %v1374, %v1376
        %v1378 = vmul.f32 %v1361, %v1377
        %v1380 = vlaneseq
        %v1381 = vshrl.u32 %v1380, 7
        %v1382 = vsub.s32 0, %v1381
        %v1383 = vrot.slane %v1355, %v1382
        %v1385 = vmul.f32 %v1383, %v1378
        %v1387 = vlaneseq
        %v1388 = vshrl.u32 %v1387, 7
        %v1389 = vsub.s32 0, %v1388
        %v1390 = vrot.slane %v1356, %v1389
        %v1392 = vadd.f32 %v1385, %v1390
        %v1393 = vld [vmem:[#allocation17] sm:$0xf]
        %v1394 = vld [vmem:[#allocation17 + $0x4] sm:$0xf]
        %v1395 = vld [vmem:[#allocation17 + $0x8] sm:$0xf]
        %v1396 = vld [vmem:[#allocation17 + $0xc] sm:$0xf]
        %v1397 = vld [vmem:[#allocation17 + $0x10] sm:$0xf]
        %v1398 = vld [vmem:[#allocation17 + $0x14] sm:$0xf]
        %v1399 = vld [vmem:[#allocation17 + $0x18] sm:$0xf]
        %v1400 = vld [vmem:[#allocation17 + $0x1c] sm:$0xf]
        %v1401 = vld [vmem:[#allocation17 + $0x20] sm:$0xf]
        %v1402 = vld [vmem:[#allocation17 + $0x24] sm:$0xf]
        %v1403 = vld [vmem:[#allocation17 + $0x28] sm:$0xf]
        %v1404 = vld [vmem:[#allocation17 + $0x2c] sm:$0xf]
        %v1405 = vld [vmem:[#allocation17 + $0x30] sm:$0xf]
        %v1406 = vld [vmem:[#allocation17 + $0x34] sm:$0xf]
        %v1407 = vld [vmem:[#allocation17 + $0x38] sm:$0xf]
        %v1408 = vld [vmem:[#allocation17 + $0x3c] sm:$0xf]
        %v1409 = vld [vmem:[#allocation19] sm:$0xf]
        %v1410 = vld [vmem:[#allocation19 + $0x4] sm:$0xf]
        %v1411 = vld [vmem:[#allocation19 + $0x8] sm:$0xf]
        %v1412 = vld [vmem:[#allocation19 + $0xc] sm:$0xf]
        %v1413 = vld [vmem:[#allocation19 + $0x10] sm:$0xf]
        %v1414 = vld [vmem:[#allocation19 + $0x14] sm:$0xf]
        %v1415 = vld [vmem:[#allocation19 + $0x18] sm:$0xf]
        %v1416 = vld [vmem:[#allocation19 + $0x1c] sm:$0xf]
        %v1417 = vld [vmem:[#allocation19 + $0x20] sm:$0xf]
        %v1418 = vld [vmem:[#allocation19 + $0x24] sm:$0xf]
        %v1419 = vld [vmem:[#allocation19 + $0x28] sm:$0xf]
        %v1420 = vld [vmem:[#allocation19 + $0x2c] sm:$0xf]
        %v1421 = vld [vmem:[#allocation19 + $0x30] sm:$0xf]
        %v1422 = vld [vmem:[#allocation19 + $0x34] sm:$0xf]
        %v1423 = vld [vmem:[#allocation19 + $0x38] sm:$0xf]
        %v1424 = vld [vmem:[#allocation19 + $0x3c] sm:$0xf]
        %v1425 = vld [vmem:[#allocation20] sm:$0xf]
        %v1426 = vld [vmem:[#allocation20 + $0x4] sm:$0xf]
        %v1427 = vld [vmem:[#allocation20 + $0x8] sm:$0xf]
        %v1428 = vld [vmem:[#allocation20 + $0xc] sm:$0xf]
        %v1429 = vld [vmem:[#allocation20 + $0x10] sm:$0xf]
        %v1430 = vld [vmem:[#allocation20 + $0x14] sm:$0xf]
        %v1431 = vld [vmem:[#allocation20 + $0x18] sm:$0xf]
        %v1432 = vld [vmem:[#allocation20 + $0x1c] sm:$0xf]
        %v1433 = vld [vmem:[#allocation20 + $0x20] sm:$0xf]
        %v1434 = vld [vmem:[#allocation20 + $0x24] sm:$0xf]
        %v1435 = vld [vmem:[#allocation20 + $0x28] sm:$0xf]
        %v1436 = vld [vmem:[#allocation20 + $0x2c] sm:$0xf]
        %v1437 = vld [vmem:[#allocation20 + $0x30] sm:$0xf]
        %v1438 = vld [vmem:[#allocation20 + $0x34] sm:$0xf]
        %v1439 = vld [vmem:[#allocation20 + $0x38] sm:$0xf]
        %v1440 = vld [vmem:[#allocation20 + $0x3c] sm:$0xf]
        %v1441 = vld [vmem:[#allocation22] sm:$0xf]
        %v1442 = vld [vmem:[#allocation22 + $0x4] sm:$0xf]
        %v1443 = vld [vmem:[#allocation22 + $0x8] sm:$0xf]
        %v1444 = vld [vmem:[#allocation22 + $0xc] sm:$0xf]
        %v1445 = vld [vmem:[#allocation22 + $0x10] sm:$0xf]
        %v1446 = vld [vmem:[#allocation22 + $0x14] sm:$0xf]
        %v1447 = vld [vmem:[#allocation22 + $0x18] sm:$0xf]
        %v1448 = vld [vmem:[#allocation22 + $0x1c] sm:$0xf]
        %v1449 = vld [vmem:[#allocation22 + $0x20] sm:$0xf]
        %v1450 = vld [vmem:[#allocation22 + $0x24] sm:$0xf]
        %v1451 = vld [vmem:[#allocation22 + $0x28] sm:$0xf]
        %v1452 = vld [vmem:[#allocation22 + $0x2c] sm:$0xf]
        %v1453 = vld [vmem:[#allocation22 + $0x30] sm:$0xf]
        %v1454 = vld [vmem:[#allocation22 + $0x34] sm:$0xf]
        %v1455 = vld [vmem:[#allocation22 + $0x38] sm:$0xf]
        %v1456 = vld [vmem:[#allocation22 + $0x3c] sm:$0xf]
        %v1457 = vld [vmem:[#allocation23] sm:$0x1]
        %v1458 = vld [vmem:[#allocation25] sm:$0x1]
        %v1459 = vld [vmem:[#allocation26] sm:$0x1]
        %v1460 = vld [vmem:[#allocation28] sm:$0x1]
        %v1461 = vpack.c.bf16 %v1392, %v1392
        %v1463 = vlaneseq
        %v1464 = vshrl.u32 %v1463, 7
        %v1465 = vsub.s32 0, %v1464
        %v1466 = vrot.slane %v1457, %v1465
        %v1484 = vunpack.c.l.b16 %v1393
        %v1485 = vunpack.c.l.b16 %v1394
        %v1486 = vunpack.c.l.b16 %v1395
        %v1487 = vunpack.c.l.b16 %v1396
        %v1488 = vunpack.c.l.b16 %v1397
        %v1489 = vunpack.c.l.b16 %v1398
        %v1490 = vunpack.c.l.b16 %v1399
        %v1491 = vunpack.c.l.b16 %v1400
        %v1492 = vunpack.c.l.b16 %v1401
        %v1493 = vunpack.c.l.b16 %v1402
        %v1494 = vunpack.c.l.b16 %v1403
        %v1495 = vunpack.c.l.b16 %v1404
        %v1496 = vunpack.c.l.b16 %v1405
        %v1497 = vunpack.c.l.b16 %v1406
        %v1498 = vunpack.c.l.b16 %v1407
        %v1499 = vunpack.c.l.b16 %v1408
        %v1500 = vpack.c.b16 %v1485, %v1484
        %v1501 = vpack.c.b16 %v1487, %v1486
        %v1502 = vpack.c.b16 %v1489, %v1488
        %v1503 = vpack.c.b16 %v1491, %v1490
        %v1504 = vpack.c.b16 %v1493, %v1492
        %v1505 = vpack.c.b16 %v1495, %v1494
        %v1506 = vpack.c.b16 %v1497, %v1496
        %v1507 = vpack.c.b16 %v1499, %v1498
        %1516 = vmatprep.subr.bf16.mxu0 0
        %1517 = vmatpush1.bf16.msra.mxu0 %v1500
        %1518 = vmatprep.subr.bf16.mxu0 0
        %1519 = vmatpush1.bf16.msra.mxu0 %v1501
        %1520 = vmatprep.subr.bf16.mxu0 0
        %1521 = vmatpush1.bf16.msra.mxu0 %v1502
        %1522 = vmatprep.subr.bf16.mxu0 0
        %1523 = vmatpush1.bf16.msra.mxu0 %v1503
        %1524 = vmatprep.subr.bf16.mxu0 0
        %1525 = vmatpush1.bf16.msra.mxu0 %v1504
        %1526 = vmatprep.subr.bf16.mxu0 0
        %1527 = vmatpush1.bf16.msra.mxu0 %v1505
        %1528 = vmatprep.subr.bf16.mxu0 0
        %1529 = vmatpush1.bf16.msra.mxu0 %v1506
        %1530 = vmatprep.subr.bf16.mxu0 0
        %1531 = vmatpush1.bf16.msra.mxu0 %v1507
        %1532 = vmatprep.subr.bf16.mxu0 0
        %1533 = vmatpush1.bf16.msra.mxu0 0
        %1534 = vmatprep.subr.bf16.mxu0 0
        %1535 = vmatpush1.bf16.msra.mxu0 0
        %1536 = vmatprep.subr.bf16.mxu0 0
        %1537 = vmatpush1.bf16.msra.mxu0 0
        %1538 = vmatprep.subr.bf16.mxu0 0
        %1539 = vmatpush1.bf16.msra.mxu0 0
        %1540 = vmatprep.subr.bf16.mxu0 0
        %1541 = vmatpush1.bf16.msra.mxu0 0
        %1542 = vmatprep.subr.bf16.mxu0 0
        %1543 = vmatpush1.bf16.msra.mxu0 0
        %1544 = vmatprep.subr.bf16.mxu0 0
        %1545 = vmatpush1.bf16.msra.mxu0 0
        %1546 = vmatprep.subr.bf16.mxu0 0
        %1547 = vmatpush1.bf16.msra.mxu0 0
        %1548 = vmatprep.mubr.bf16.mxu0 0
        %1549 = vmatmul.mubr.bf16.gmra.mrb[0].mxu0 %v1461
        %v1550 = vpop.f32.mrb[0].mxu0
        %v1551 = vadd.f32 %v1466, %v1550
        %v1552 = vpop.f32.mrb[0].mxu0
        %v1553 = vpop.f32.mrb[0].mxu0
        %v1554 = vpop.f32.mrb[0].mxu0
        %1555 = vdwg.mxu0
        %v1556 = vmul.f32 %v1551, 0.17677669
        %v1558 = vlaneseq
        %v1559 = vshrl.u32 %v1558, 7
        %v1560 = vsub.s32 0, %v1559
        %v1561 = vrot.slane %v1458, %v1560
        %v1579 = vunpack.c.l.b16 %v1409
        %v1580 = vunpack.c.l.b16 %v1410
        %v1581 = vunpack.c.l.b16 %v1411
        %v1582 = vunpack.c.l.b16 %v1412
        %v1583 = vunpack.c.l.b16 %v1413
        %v1584 = vunpack.c.l.b16 %v1414
        %v1585 = vunpack.c.l.b16 %v1415
        %v1586 = vunpack.c.l.b16 %v1416
        %v1587 = vunpack.c.l.b16 %v1417
        %v1588 = vunpack.c.l.b16 %v1418
        %v1589 = vunpack.c.l.b16 %v1419
        %v1590 = vunpack.c.l.b16 %v1420
        %v1591 = vunpack.c.l.b16 %v1421
        %v1592 = vunpack.c.l.b16 %v1422
        %v1593 = vunpack.c.l.b16 %v1423
        %v1594 = vunpack.c.l.b16 %v1424
        %v1595 = vpack.c.b16 %v1580, %v1579
        %v1596 = vpack.c.b16 %v1582, %v1581
        %v1597 = vpack.c.b16 %v1584, %v1583
        %v1598 = vpack.c.b16 %v1586, %v1585
        %v1599 = vpack.c.b16 %v1588, %v1587
        %v1600 = vpack.c.b16 %v1590, %v1589
        %v1601 = vpack.c.b16 %v1592, %v1591
        %v1602 = vpack.c.b16 %v1594, %v1593
        %1611 = vmatprep.subr.bf16.mxu0 0
        %1612 = vmatpush1.bf16.msra.mxu0 %v1595
        %1613 = vmatprep.subr.bf16.mxu0 0
        %1614 = vmatpush1.bf16.msra.mxu0 %v1596
        %1615 = vmatprep.subr.bf16.mxu0 0
        %1616 = vmatpush1.bf16.msra.mxu0 %v1597
        %1617 = vmatprep.subr.bf16.mxu0 0
        %1618 = vmatpush1.bf16.msra.mxu0 %v1598
        %1619 = vmatprep.subr.bf16.mxu0 0
        %1620 = vmatpush1.bf16.msra.mxu0 %v1599
        %1621 = vmatprep.subr.bf16.mxu0 0
        %1622 = vmatpush1.bf16.msra.mxu0 %v1600
        %1623 = vmatprep.subr.bf16.mxu0 0
        %1624 = vmatpush1.bf16.msra.mxu0 %v1601
        %1625 = vmatprep.subr.bf16.mxu0 0
        %1626 = vmatpush1.bf16.msra.mxu0 %v1602
        %1627 = vmatprep.subr.bf16.mxu0 0
        %1628 = vmatpush1.bf16.msra.mxu0 0
        %1629 = vmatprep.subr.bf16.mxu0 0
        %1630 = vmatpush1.bf16.msra.mxu0 0
        %1631 = vmatprep.subr.bf16.mxu0 0
        %1632 = vmatpush1.bf16.msra.mxu0 0
        %1633 = vmatprep.subr.bf16.mxu0 0
        %1634 = vmatpush1.bf16.msra.mxu0 0
        %1635 = vmatprep.subr.bf16.mxu0 0
        %1636 = vmatpush1.bf16.msra.mxu0 0
        %1637 = vmatprep.subr.bf16.mxu0 0
        %1638 = vmatpush1.bf16.msra.mxu0 0
        %1639 = vmatprep.subr.bf16.mxu0 0
        %1640 = vmatpush1.bf16.msra.mxu0 0
        %1641 = vmatprep.subr.bf16.mxu0 0
        %1642 = vmatpush1.bf16.msra.mxu0 0
        %1643 = vmatprep.mubr.bf16.mxu0 0
        %1644 = vmatmul.mubr.bf16.gmra.mrb[0].mxu0 %v1461
        %v1645 = vpop.f32.mrb[0].mxu0
        %v1646 = vadd.f32 %v1561, %v1645
        %v1647 = vpop.f32.mrb[0].mxu0
        %v1648 = vpop.f32.mrb[0].mxu0
        %v1649 = vpop.f32.mrb[0].mxu0
        %1650 = vdwg.mxu0
        %v1652 = vlaneseq
        %v1653 = vshrl.u32 %v1652, 7
        %v1654 = vsub.s32 0, %v1653
        %v1655 = vrot.slane %v1459, %v1654
        %v1673 = vunpack.c.l.b16 %v1425
        %v1674 = vunpack.c.l.b16 %v1426
        %v1675 = vunpack.c.l.b16 %v1427
        %v1676 = vunpack.c.l.b16 %v1428
        %v1677 = vunpack.c.l.b16 %v1429
        %v1678 = vunpack.c.l.b16 %v1430
        %v1679 = vunpack.c.l.b16 %v1431
        %v1680 = vunpack.c.l.b16 %v1432
        %v1681 = vunpack.c.l.b16 %v1433
        %v1682 = vunpack.c.l.b16 %v1434
        %v1683 = vunpack.c.l.b16 %v1435
        %v1684 = vunpack.c.l.b16 %v1436
        %v1685 = vunpack.c.l.b16 %v1437
        %v1686 = vunpack.c.l.b16 %v1438
        %v1687 = vunpack.c.l.b16 %v1439
        %v1688 = vunpack.c.l.b16 %v1440
        %v1689 = vpack.c.b16 %v1674, %v1673
        %v1690 = vpack.c.b16 %v1676, %v1675
        %v1691 = vpack.c.b16 %v1678, %v1677
        %v1692 = vpack.c.b16 %v1680, %v1679
        %v1693 = vpack.c.b16 %v1682, %v1681
        %v1694 = vpack.c.b16 %v1684, %v1683
        %v1695 = vpack.c.b16 %v1686, %v1685
        %v1696 = vpack.c.b16 %v1688, %v1687
        %1705 = vmatprep.subr.bf16.mxu0 0
        %1706 = vmatpush1.bf16.msra.mxu0 %v1689
        %1707 = vmatprep.subr.bf16.mxu0 0
        %1708 = vmatpush1.bf16.msra.mxu0 %v1690
        %1709 = vmatprep.subr.bf16.mxu0 0
        %1710 = vmatpush1.bf16.msra.mxu0 %v1691
        %1711 = vmatprep.subr.bf16.mxu0 0
        %1712 = vmatpush1.bf16.msra.mxu0 %v1692
        %1713 = vmatprep.subr.bf16.mxu0 0
        %1714 = vmatpush1.bf16.msra.mxu0 %v1693
        %1715 = vmatprep.subr.bf16.mxu0 0
        %1716 = vmatpush1.bf16.msra.mxu0 %v1694
        %1717 = vmatprep.subr.bf16.mxu0 0
        %1718 = vmatpush1.bf16.msra.mxu0 %v1695
        %1719 = vmatprep.subr.bf16.mxu0 0
        %1720 = vmatpush1.bf16.msra.mxu0 %v1696
        %1721 = vmatprep.subr.bf16.mxu0 0
        %1722 = vmatpush1.bf16.msra.mxu0 0
        %1723 = vmatprep.subr.bf16.mxu0 0
        %1724 = vmatpush1.bf16.msra.mxu0 0
        %1725 = vmatprep.subr.bf16.mxu0 0
        %1726 = vmatpush1.bf16.msra.mxu0 0
        %1727 = vmatprep.subr.bf16.mxu0 0
        %1728 = vmatpush1.bf16.msra.mxu0 0
        %1729 = vmatprep.subr.bf16.mxu0 0
        %1730 = vmatpush1.bf16.msra.mxu0 0
        %1731 = vmatprep.subr.bf16.mxu0 0
        %1732 = vmatpush1.bf16.msra.mxu0 0
        %1733 = vmatprep.subr.bf16.mxu0 0
        %1734 = vmatpush1.bf16.msra.mxu0 0
        %1735 = vmatprep.subr.bf16.mxu0 0
        %1736 = vmatpush1.bf16.msra.mxu0 0
        %1737 = vmatprep.mubr.bf16.mxu0 0
        %1738 = vmatmul.mubr.bf16.gmra.mrb[0].mxu0 %v1461
        %v1739 = vpop.f32.mrb[0].mxu0
        %v1740 = vadd.f32 %v1655, %v1739
        %v1741 = vpop.f32.mrb[0].mxu0
        %v1742 = vpop.f32.mrb[0].mxu0
        %v1743 = vpop.f32.mrb[0].mxu0
        %1744 = vdwg.mxu0
        %1746 = vrot.lane.b32.xlu0 %v1556, 96
        %v1747 = vpop.permute.xlu0 %1746
        %1749 = vrot.lane.b32.xlu0 %v1556, 64
        %v1750 = vpop.permute.xlu0 %1749
        %1752 = vrot.lane.b32.xlu0 %v1556, 32
        %v1753 = vpop.permute.xlu0 %1752
        %v1755 = vcombine.low %v1556, %v1750
        %v1756 = vcombine.high %v1556, %v1750
        %v1758 = vunpack.c.l.s4 1983009808
        %v1759 = vunpack.c.0.s8 %v1758
        %v1760 = vlaneseq
        %v1761 = vshrl.u32 %v1760, 7
        %v1762 = vsub.s32 %v1759, %v1761
        %v1763 = vrot.slane %v1755, %v1762
        %v1765 = vunpack.c.l.s4 1983009808
        %v1766 = vunpack.c.0.s8 %v1765
        %v1767 = vlaneseq
        %v1768 = vshrl.u32 %v1767, 7
        %v1769 = vsub.s32 %v1766, %v1768
        %v1770 = vrot.slane %v1756, %v1769
        %v1771 = vcombine.low %v1747, %v1753
        %v1772 = vcombine.high %v1747, %v1753
        %v1774 = vunpack.c.l.s4 1983009808
        %v1775 = vunpack.c.0.s8 %v1774
        %v1776 = vlaneseq
        %v1777 = vshrl.u32 %v1776, 7
        %v1778 = vsub.s32 %v1775, %v1777
        %v1779 = vrot.slane %v1771, %v1778
        %v1781 = vunpack.c.l.s4 1983009808
        %v1782 = vunpack.c.0.s8 %v1781
        %v1783 = vlaneseq
        %v1784 = vshrl.u32 %v1783, 7
        %v1785 = vsub.s32 %v1782, %v1784
        %v1786 = vrot.slane %v1772, %v1785
        %v1787 = vcombine.low %v1763, %v1779
        %v1788 = vcombine.high %v1763, %v1779
        %v1790 = vunpack.c.l.s4 1934713408
        %v1791 = vunpack.c.0.s8 %v1790
        %v1792 = vlaneseq
        %v1793 = vshrl.u32 %v1792, 7
        %v1794 = vsub.s32 %v1791, %v1793
        %v1795 = vrot.slane %v1787, %v1794
        %v1797 = vunpack.c.l.s4 1934713408
        %v1798 = vunpack.c.0.s8 %v1797
        %v1799 = vlaneseq
        %v1800 = vshrl.u32 %v1799, 7
        %v1801 = vsub.s32 %v1798, %v1800
        %v1802 = vrot.slane %v1788, %v1801
        %v1803 = vcombine.low %v1770, %v1786
        %v1804 = vcombine.high %v1770, %v1786
        %v1806 = vunpack.c.l.s4 1934713408
        %v1807 = vunpack.c.0.s8 %v1806
        %v1808 = vlaneseq
        %v1809 = vshrl.u32 %v1808, 7
        %v1810 = vsub.s32 %v1807, %v1809
        %v1811 = vrot.slane %v1803, %v1810
        %v1813 = vunpack.c.l.s4 1934713408
        %v1814 = vunpack.c.0.s8 %v1813
        %v1815 = vlaneseq
        %v1816 = vshrl.u32 %v1815, 7
        %v1817 = vsub.s32 %v1814, %v1816
        %v1818 = vrot.slane %v1804, %v1817
        %v1819 = vcombine.high %v1795, 0.0
        %v1820 = vcombine.high %v1802, 0.0
        %v1821 = vcombine.high %v1811, 0.0
        %v1822 = vcombine.high %v1818, 0.0
        %v1823 = vcombine.low %v1795, %v1802
        %v1825 = vunpack.c.l.s4 1983009808
        %v1826 = vunpack.c.0.s8 %v1825
        %v1827 = vlaneseq
        %v1828 = vshrl.u32 %v1827, 7
        %v1829 = vsub.s32 %v1826, %v1828
        %v1830 = vrot.slane %v1823, %v1829
        %v1831 = vcombine.low %v1819, %v1820
        %v1833 = vunpack.c.l.s4 1983009808
        %v1834 = vunpack.c.0.s8 %v1833
        %v1835 = vlaneseq
        %v1836 = vshrl.u32 %v1835, 7
        %v1837 = vsub.s32 %v1834, %v1836
        %v1838 = vrot.slane %v1831, %v1837
        %v1839 = vcombine.low %v1811, %v1818
        %v1841 = vunpack.c.l.s4 1983009808
        %v1842 = vunpack.c.0.s8 %v1841
        %v1843 = vlaneseq
        %v1844 = vshrl.u32 %v1843, 7
        %v1845 = vsub.s32 %v1842, %v1844
        %v1846 = vrot.slane %v1839, %v1845
        %v1847 = vcombine.low %v1821, %v1822
        %v1849 = vunpack.c.l.s4 1983009808
        %v1850 = vunpack.c.0.s8 %v1849
        %v1851 = vlaneseq
        %v1852 = vshrl.u32 %v1851, 7
        %v1853 = vsub.s32 %v1850, %v1852
        %v1854 = vrot.slane %v1847, %v1853
        %v1855 = vcombine.low %v1830, %v1838
        %v1856 = vcombine.high %v1830, %v1838
        %v1858 = vunpack.c.l.s4 1934713408
        %v1859 = vunpack.c.0.s8 %v1858
        %v1860 = vlaneseq
        %v1861 = vshrl.u32 %v1860, 7
        %v1862 = vsub.s32 %v1859, %v1861
        %v1863 = vrot.slane %v1855, %v1862
        %v1865 = vunpack.c.l.s4 1934713408
        %v1866 = vunpack.c.0.s8 %v1865
        %v1867 = vlaneseq
        %v1868 = vshrl.u32 %v1867, 7
        %v1869 = vsub.s32 %v1866, %v1868
        %v1870 = vrot.slane %v1856, %v1869
        %v1871 = vcombine.low %v1846, %v1854
        %v1872 = vcombine.high %v1846, %v1854
        %v1874 = vunpack.c.l.s4 1934713408
        %v1875 = vunpack.c.0.s8 %v1874
        %v1876 = vlaneseq
        %v1877 = vshrl.u32 %v1876, 7
        %v1878 = vsub.s32 %v1875, %v1877
        %v1879 = vrot.slane %v1871, %v1878
        %v1881 = vunpack.c.l.s4 1934713408
        %v1882 = vunpack.c.0.s8 %v1881
        %v1883 = vlaneseq
        %v1884 = vshrl.u32 %v1883, 7
        %v1885 = vsub.s32 %v1882, %v1884
        %v1886 = vrot.slane %v1872, %v1885
        %v1887 = vcombine.low %v1863, %v1879
        %v1888 = vcombine.high %v1863, %v1879
        %v1889 = vcombine.low %v1870, %v1886
        %v1890 = vcombine.high %v1870, %v1886
        %1892 = vrot.lane.b32.xlu0 %v1646, 96
        %v1893 = vpop.permute.xlu0 %1892
        %1895 = vrot.lane.b32.xlu0 %v1646, 64
        %v1896 = vpop.permute.xlu0 %1895
        %1898 = vrot.lane.b32.xlu0 %v1646, 32
        %v1899 = vpop.permute.xlu0 %1898
        %v1901 = vcombine.low %v1646, %v1896
        %v1902 = vcombine.high %v1646, %v1896
        %v1904 = vunpack.c.l.s4 1983009808
        %v1905 = vunpack.c.0.s8 %v1904
        %v1906 = vlaneseq
        %v1907 = vshrl.u32 %v1906, 7
        %v1908 = vsub.s32 %v1905, %v1907
        %v1909 = vrot.slane %v1901, %v1908
        %v1911 = vunpack.c.l.s4 1983009808
        %v1912 = vunpack.c.0.s8 %v1911
        %v1913 = vlaneseq
        %v1914 = vshrl.u32 %v1913, 7
        %v1915 = vsub.s32 %v1912, %v1914
        %v1916 = vrot.slane %v1902, %v1915
        %v1917 = vcombine.low %v1893, %v1899
        %v1918 = vcombine.high %v1893, %v1899
        %v1920 = vunpack.c.l.s4 1983009808
        %v1921 = vunpack.c.0.s8 %v1920
        %v1922 = vlaneseq
        %v1923 = vshrl.u32 %v1922, 7
        %v1924 = vsub.s32 %v1921, %v1923
        %v1925 = vrot.slane %v1917, %v1924
        %v1927 = vunpack.c.l.s4 1983009808
        %v1928 = vunpack.c.0.s8 %v1927
        %v1929 = vlaneseq
        %v1930 = vshrl.u32 %v1929, 7
        %v1931 = vsub.s32 %v1928, %v1930
        %v1932 = vrot.slane %v1918, %v1931
        %v1933 = vcombine.low %v1909, %v1925
        %v1934 = vcombine.high %v1909, %v1925
        %v1936 = vunpack.c.l.s4 1934713408
        %v1937 = vunpack.c.0.s8 %v1936
        %v1938 = vlaneseq
        %v1939 = vshrl.u32 %v1938, 7
        %v1940 = vsub.s32 %v1937, %v1939
        %v1941 = vrot.slane %v1933, %v1940
        %v1943 = vunpack.c.l.s4 1934713408
        %v1944 = vunpack.c.0.s8 %v1943
        %v1945 = vlaneseq
        %v1946 = vshrl.u32 %v1945, 7
        %v1947 = vsub.s32 %v1944, %v1946
        %v1948 = vrot.slane %v1934, %v1947
        %v1949 = vcombine.low %v1916, %v1932
        %v1950 = vcombine.high %v1916, %v1932
        %v1952 = vunpack.c.l.s4 1934713408
        %v1953 = vunpack.c.0.s8 %v1952
        %v1954 = vlaneseq
        %v1955 = vshrl.u32 %v1954, 7
        %v1956 = vsub.s32 %v1953, %v1955
        %v1957 = vrot.slane %v1949, %v1956
        %v1959 = vunpack.c.l.s4 1934713408
        %v1960 = vunpack.c.0.s8 %v1959
        %v1961 = vlaneseq
        %v1962 = vshrl.u32 %v1961, 7
        %v1963 = vsub.s32 %v1960, %v1962
        %v1964 = vrot.slane %v1950, %v1963
        %v1965 = vcombine.high %v1941, 0.0
        %v1966 = vcombine.high %v1948, 0.0
        %v1967 = vcombine.high %v1957, 0.0
        %v1968 = vcombine.high %v1964, 0.0
        %v1969 = vcombine.low %v1941, %v1948
        %v1971 = vunpack.c.l.s4 1983009808
        %v1972 = vunpack.c.0.s8 %v1971
        %v1973 = vlaneseq
        %v1974 = vshrl.u32 %v1973, 7
        %v1975 = vsub.s32 %v1972, %v1974
        %v1976 = vrot.slane %v1969, %v1975
        %v1977 = vcombine.low %v1965, %v1966
        %v1979 = vunpack.c.l.s4 1983009808
        %v1980 = vunpack.c.0.s8 %v1979
        %v1981 = vlaneseq
        %v1982 = vshrl.u32 %v1981, 7
        %v1983 = vsub.s32 %v1980, %v1982
        %v1984 = vrot.slane %v1977, %v1983
        %v1985 = vcombine.low %v1957, %v1964
        %v1987 = vunpack.c.l.s4 1983009808
        %v1988 = vunpack.c.0.s8 %v1987
        %v1989 = vlaneseq
        %v1990 = vshrl.u32 %v1989, 7
        %v1991 = vsub.s32 %v1988, %v1990
        %v1992 = vrot.slane %v1985, %v1991
        %v1993 = vcombine.low %v1967, %v1968
        %v1995 = vunpack.c.l.s4 1983009808
        %v1996 = vunpack.c.0.s8 %v1995
        %v1997 = vlaneseq
        %v1998 = vshrl.u32 %v1997, 7
        %v1999 = vsub.s32 %v1996, %v1998
        %v2000 = vrot.slane %v1993, %v1999
        %v2001 = vcombine.low %v1976, %v1984
        %v2002 = vcombine.high %v1976, %v1984
        %v2004 = vunpack.c.l.s4 1934713408
        %v2005 = vunpack.c.0.s8 %v2004
        %v2006 = vlaneseq
        %v2007 = vshrl.u32 %v2006, 7
        %v2008 = vsub.s32 %v2005, %v2007
        %v2009 = vrot.slane %v2001, %v2008
        %v2011 = vunpack.c.l.s4 1934713408
        %v2012 = vunpack.c.0.s8 %v2011
        %v2013 = vlaneseq
        %v2014 = vshrl.u32 %v2013, 7
        %v2015 = vsub.s32 %v2012, %v2014
        %v2016 = vrot.slane %v2002, %v2015
        %v2017 = vcombine.low %v1992, %v2000
        %v2018 = vcombine.high %v1992, %v2000
        %v2020 = vunpack.c.l.s4 1934713408
        %v2021 = vunpack.c.0.s8 %v2020
        %v2022 = vlaneseq
        %v2023 = vshrl.u32 %v2022, 7
        %v2024 = vsub.s32 %v2021, %v2023
        %v2025 = vrot.slane %v2017, %v2024
        %v2027 = vunpack.c.l.s4 1934713408
        %v2028 = vunpack.c.0.s8 %v2027
        %v2029 = vlaneseq
        %v2030 = vshrl.u32 %v2029, 7
        %v2031 = vsub.s32 %v2028, %v2030
        %v2032 = vrot.slane %v2018, %v2031
        %v2033 = vcombine.low %v2009, %v2025
        %v2034 = vcombine.high %v2009, %v2025
        %v2035 = vcombine.low %v2016, %v2032
        %v2036 = vcombine.high %v2016, %v2032
        %2038 = vrot.lane.b32.xlu0 %v1740, 96
        %v2039 = vpop.permute.xlu0 %2038
        %2041 = vrot.lane.b32.xlu0 %v1740, 64
        %v2042 = vpop.permute.xlu0 %2041
        %2044 = vrot.lane.b32.xlu0 %v1740, 32
        %v2045 = vpop.permute.xlu0 %2044
        %v2047 = vcombine.low %v1740, %v2042
        %v2048 = vcombine.high %v1740, %v2042
        %v2050 = vunpack.c.l.s4 1983009808
        %v2051 = vunpack.c.0.s8 %v2050
        %v2052 = vlaneseq
        %v2053 = vshrl.u32 %v2052, 7
        %v2054 = vsub.s32 %v2051, %v2053
        %v2055 = vrot.slane %v2047, %v2054
        %v2057 = vunpack.c.l.s4 1983009808
        %v2058 = vunpack.c.0.s8 %v2057
        %v2059 = vlaneseq
        %v2060 = vshrl.u32 %v2059, 7
        %v2061 = vsub.s32 %v2058, %v2060
        %v2062 = vrot.slane %v2048, %v2061
        %v2063 = vcombine.low %v2039, %v2045
        %v2064 = vcombine.high %v2039, %v2045
        %v2066 = vunpack.c.l.s4 1983009808
        %v2067 = vunpack.c.0.s8 %v2066
        %v2068 = vlaneseq
        %v2069 = vshrl.u32 %v2068, 7
        %v2070 = vsub.s32 %v2067, %v2069
        %v2071 = vrot.slane %v2063, %v2070
        %v2073 = vunpack.c.l.s4 1983009808
        %v2074 = vunpack.c.0.s8 %v2073
        %v2075 = vlaneseq
        %v2076 = vshrl.u32 %v2075, 7
        %v2077 = vsub.s32 %v2074, %v2076
        %v2078 = vrot.slane %v2064, %v2077
        %v2079 = vcombine.low %v2055, %v2071
        %v2080 = vcombine.high %v2055, %v2071
        %v2082 = vunpack.c.l.s4 1934713408
        %v2083 = vunpack.c.0.s8 %v2082
        %v2084 = vlaneseq
        %v2085 = vshrl.u32 %v2084, 7
        %v2086 = vsub.s32 %v2083, %v2085
        %v2087 = vrot.slane %v2079, %v2086
        %v2089 = vunpack.c.l.s4 1934713408
        %v2090 = vunpack.c.0.s8 %v2089
        %v2091 = vlaneseq
        %v2092 = vshrl.u32 %v2091, 7
        %v2093 = vsub.s32 %v2090, %v2092
        %v2094 = vrot.slane %v2080, %v2093
        %v2095 = vcombine.low %v2062, %v2078
        %v2096 = vcombine.high %v2062, %v2078
        %v2098 = vunpack.c.l.s4 1934713408
        %v2099 = vunpack.c.0.s8 %v2098
        %v2100 = vlaneseq
        %v2101 = vshrl.u32 %v2100, 7
        %v2102 = vsub.s32 %v2099, %v2101
        %v2103 = vrot.slane %v2095, %v2102
        %v2105 = vunpack.c.l.s4 1934713408
        %v2106 = vunpack.c.0.s8 %v2105
        %v2107 = vlaneseq
        %v2108 = vshrl.u32 %v2107, 7
        %v2109 = vsub.s32 %v2106, %v2108
        %v2110 = vrot.slane %v2096, %v2109
        %v2111 = vcombine.high %v2087, 0.0
        %v2112 = vcombine.high %v2094, 0.0
        %v2113 = vcombine.high %v2103, 0.0
        %v2114 = vcombine.high %v2110, 0.0
        %v2115 = vcombine.low %v2087, %v2094
        %v2117 = vunpack.c.l.s4 1983009808
        %v2118 = vunpack.c.0.s8 %v2117
        %v2119 = vlaneseq
        %v2120 = vshrl.u32 %v2119, 7
        %v2121 = vsub.s32 %v2118, %v2120
        %v2122 = vrot.slane %v2115, %v2121
        %v2123 = vcombine.low %v2111, %v2112
        %v2125 = vunpack.c.l.s4 1983009808
        %v2126 = vunpack.c.0.s8 %v2125
        %v2127 = vlaneseq
        %v2128 = vshrl.u32 %v2127, 7
        %v2129 = vsub.s32 %v2126, %v2128
        %v2130 = vrot.slane %v2123, %v2129
        %v2131 = vcombine.low %v2103, %v2110
        %v2133 = vunpack.c.l.s4 1983009808
        %v2134 = vunpack.c.0.s8 %v2133
        %v2135 = vlaneseq
        %v2136 = vshrl.u32 %v2135, 7
        %v2137 = vsub.s32 %v2134, %v2136
        %v2138 = vrot.slane %v2131, %v2137
        %v2139 = vcombine.low %v2113, %v2114
        %v2141 = vunpack.c.l.s4 1983009808
        %v2142 = vunpack.c.0.s8 %v2141
        %v2143 = vlaneseq
        %v2144 = vshrl.u32 %v2143, 7
        %v2145 = vsub.s32 %v2142, %v2144
        %v2146 = vrot.slane %v2139, %v2145
        %v2147 = vcombine.low %v2122, %v2130
        %v2148 = vcombine.high %v2122, %v2130
        %v2150 = vunpack.c.l.s4 1934713408
        %v2151 = vunpack.c.0.s8 %v2150
        %v2152 = vlaneseq
        %v2153 = vshrl.u32 %v2152, 7
        %v2154 = vsub.s32 %v2151, %v2153
        %v2155 = vrot.slane %v2147, %v2154
        %v2157 = vunpack.c.l.s4 1934713408
        %v2158 = vunpack.c.0.s8 %v2157
        %v2159 = vlaneseq
        %v2160 = vshrl.u32 %v2159, 7
        %v2161 = vsub.s32 %v2158, %v2160
        %v2162 = vrot.slane %v2148, %v2161
        %v2163 = vcombine.low %v2138, %v2146
        %v2164 = vcombine.high %v2138, %v2146
        %v2166 = vunpack.c.l.s4 1934713408
        %v2167 = vunpack.c.0.s8 %v2166
        %v2168 = vlaneseq
        %v2169 = vshrl.u32 %v2168, 7
        %v2170 = vsub.s32 %v2167, %v2169
        %v2171 = vrot.slane %v2163, %v2170
        %v2173 = vunpack.c.l.s4 1934713408
        %v2174 = vunpack.c.0.s8 %v2173
        %v2175 = vlaneseq
        %v2176 = vshrl.u32 %v2175, 7
        %v2177 = vsub.s32 %v2174, %v2176
        %v2178 = vrot.slane %v2164, %v2177
        %v2179 = vcombine.low %v2155, %v2171
        %v2180 = vcombine.high %v2155, %v2171
        %v2181 = vcombine.low %v2162, %v2178
        %v2182 = vcombine.high %v2162, %v2178
        %v2183 = vpack.c.bf16 %v1887, %v1887
        %v2184 = vpack.c.bf16 %v1888, %v1888
        %v2185 = vpack.c.bf16 %v1889, %v1889
        %v2186 = vpack.c.bf16 %v1890, %v1890
        %v2187 = vpack.c.bf16 %v2033, %v2033
        %v2188 = vpack.c.bf16 %v2034, %v2034
        %v2189 = vpack.c.bf16 %v2035, %v2035
        %v2190 = vpack.c.bf16 %v2036, %v2036
        %vm2191 = vcmask 261120
        %v2193 = vsel %vm2191, %v2183, 0
        %v2196 = vsel %vm2191, %v2187, 0
        %2198 = vmatprep.subr.bf16.mxu0 0
        %2199 = vmatpush1.bf16.xpose.msra.mxu0 %v2196
        %2200 = vmatprep.subr.bf16.mxu0 0
        %2201 = vmatpush1.bf16.xpose.msra.mxu0 0
        %2202 = vmatprep.subr.bf16.mxu0 0
        %2203 = vmatpush1.bf16.xpose.msra.mxu0 0
        %2204 = vmatprep.subr.bf16.mxu0 0
        %2205 = vmatpush1.bf16.xpose.msra.mxu0 0
        %2206 = vmatprep.subr.bf16.mxu0 0
        %2207 = vmatpush1.bf16.xpose.msra.mxu0 0
        %2208 = vmatprep.subr.bf16.mxu0 0
        %2209 = vmatpush1.bf16.xpose.msra.mxu0 0
        %2210 = vmatprep.subr.bf16.mxu0 0
        %2211 = vmatpush1.bf16.xpose.msra.mxu0 0
        %2212 = vmatprep.subr.bf16.mxu0 0
        %2213 = vmatpush1.bf16.xpose.msra.mxu0 0
        %2214 = vmatprep.subr.bf16.mxu0 0
        %2215 = vmatpush1.bf16.xpose.msra.mxu0 0
        %2216 = vmatprep.subr.bf16.mxu0 0
        %2217 = vmatpush1.bf16.xpose.msra.mxu0 0
        %2218 = vmatprep.subr.bf16.mxu0 0
        %2219 = vmatpush1.bf16.xpose.msra.mxu0 0
        %2220 = vmatprep.subr.bf16.mxu0 0
        %2221 = vmatpush1.bf16.xpose.msra.mxu0 0
        %2222 = vmatprep.subr.bf16.mxu0 0
        %2223 = vmatpush1.bf16.xpose.msra.mxu0 0
        %2224 = vmatprep.subr.bf16.mxu0 0
        %2225 = vmatpush1.bf16.xpose.msra.mxu0 0
        %2226 = vmatprep.subr.bf16.mxu0 0
        %2227 = vmatpush1.bf16.xpose.msra.mxu0 0
        %2228 = vmatprep.subr.bf16.mxu0 0
        %2229 = vmatpush1.bf16.xpose.msra.mxu0 0
        %2230 = vmatprep.mubr.bf16.mxu0 0
        %2231 = vmatmul.mubr.bf16.gmra.mrb[0].mxu0 %v2193
        %v2232 = vpop.f32.mrb[0].mxu0
        %v2233 = vadd.f32 0.0, %v2232
        %v2234 = vpop.f32.mrb[0].mxu0
        %v2235 = vpop.f32.mrb[0].mxu0
        %v2236 = vpop.f32.mrb[0].mxu0
        %2237 = vdwg.mxu0
        %v2239 = vsel %vm2191, %v2184, 0
        %v2242 = vsel %vm2191, %v2188, 0
        %2244 = vmatprep.subr.bf16.mxu0 0
        %2245 = vmatpush1.bf16.xpose.msra.mxu0 %v2242
        %2246 = vmatprep.subr.bf16.mxu0 0
        %2247 = vmatpush1.bf16.xpose.msra.mxu0 0
        %2248 = vmatprep.subr.bf16.mxu0 0
        %2249 = vmatpush1.bf16.xpose.msra.mxu0 0
        %2250 = vmatprep.subr.bf16.mxu0 0
        %2251 = vmatpush1.bf16.xpose.msra.mxu0 0
        %2252 = vmatprep.subr.bf16.mxu0 0
        %2253 = vmatpush1.bf16.xpose.msra.mxu0 0
        %2254 = vmatprep.subr.bf16.mxu0 0
        %2255 = vmatpush1.bf16.xpose.msra.mxu0 0
        %2256 = vmatprep.subr.bf16.mxu0 0
        %2257 = vmatpush1.bf16.xpose.msra.mxu0 0
        %2258 = vmatprep.subr.bf16.mxu0 0
        %2259 = vmatpush1.bf16.xpose.msra.mxu0 0
        %2260 = vmatprep.subr.bf16.mxu0 0
        %2261 = vmatpush1.bf16.xpose.msra.mxu0 0
        %2262 = vmatprep.subr.bf16.mxu0 0
        %2263 = vmatpush1.bf16.xpose.msra.mxu0 0
        %2264 = vmatprep.subr.bf16.mxu0 0
        %2265 = vmatpush1.bf16.xpose.msra.mxu0 0
        %2266 = vmatprep.subr.bf16.mxu0 0
        %2267 = vmatpush1.bf16.xpose.msra.mxu0 0
        %2268 = vmatprep.subr.bf16.mxu0 0
        %2269 = vmatpush1.bf16.xpose.msra.mxu0 0
        %2270 = vmatprep.subr.bf16.mxu0 0
        %2271 = vmatpush1.bf16.xpose.msra.mxu0 0
        %2272 = vmatprep.subr.bf16.mxu0 0
        %2273 = vmatpush1.bf16.xpose.msra.mxu0 0
        %2274 = vmatprep.subr.bf16.mxu0 0
        %2275 = vmatpush1.bf16.xpose.msra.mxu0 0
        %2276 = vmatprep.mubr.bf16.mxu0 0
        %2277 = vmatmul.mubr.bf16.gmra.mrb[0].mxu0 %v2239
        %v2278 = vpop.f32.mrb[0].mxu0
        %v2279 = vadd.f32 0.0, %v2278
        %v2280 = vpop.f32.mrb[0].mxu0
        %v2281 = vpop.f32.mrb[0].mxu0
        %v2282 = vpop.f32.mrb[0].mxu0
        %2283 = vdwg.mxu0
        %v2285 = vsel %vm2191, %v2185, 0
        %v2288 = vsel %vm2191, %v2189, 0
        %2290 = vmatprep.subr.bf16.mxu0 0
        %2291 = vmatpush1.bf16.xpose.msra.mxu0 %v2288
        %2292 = vmatprep.subr.bf16.mxu0 0
        %2293 = vmatpush1.bf16.xpose.msra.mxu0 0
        %2294 = vmatprep.subr.bf16.mxu0 0
        %2295 = vmatpush1.bf16.xpose.msra.mxu0 0
        %2296 = vmatprep.subr.bf16.mxu0 0
        %2297 = vmatpush1.bf16.xpose.msra.mxu0 0
        %2298 = vmatprep.subr.bf16.mxu0 0
        %2299 = vmatpush1.bf16.xpose.msra.mxu0 0
        %2300 = vmatprep.subr.bf16.mxu0 0
        %2301 = vmatpush1.bf16.xpose.msra.mxu0 0
        %2302 = vmatprep.subr.bf16.mxu0 0
        %2303 = vmatpush1.bf16.xpose.msra.mxu0 0
        %2304 = vmatprep.subr.bf16.mxu0 0
        %2305 = vmatpush1.bf16.xpose.msra.mxu0 0
        %2306 = vmatprep.subr.bf16.mxu0 0
        %2307 = vmatpush1.bf16.xpose.msra.mxu0 0
        %2308 = vmatprep.subr.bf16.mxu0 0
        %2309 = vmatpush1.bf16.xpose.msra.mxu0 0
        %2310 = vmatprep.subr.bf16.mxu0 0
        %2311 = vmatpush1.bf16.xpose.msra.mxu0 0
        %2312 = vmatprep.subr.bf16.mxu0 0
        %2313 = vmatpush1.bf16.xpose.msra.mxu0 0
        %2314 = vmatprep.subr.bf16.mxu0 0
        %2315 = vmatpush1.bf16.xpose.msra.mxu0 0
        %2316 = vmatprep.subr.bf16.mxu0 0
        %2317 = vmatpush1.bf16.xpose.msra.mxu0 0
        %2318 = vmatprep.subr.bf16.mxu0 0
        %2319 = vmatpush1.bf16.xpose.msra.mxu0 0
        %2320 = vmatprep.subr.bf16.mxu0 0
        %2321 = vmatpush1.bf16.xpose.msra.mxu0 0
        %2322 = vmatprep.mubr.bf16.mxu0 0
        %2323 = vmatmul.mubr.bf16.gmra.mrb[0].mxu0 %v2285
        %v2324 = vpop.f32.mrb[0].mxu0
        %v2325 = vadd.f32 0.0, %v2324
        %v2326 = vpop.f32.mrb[0].mxu0
        %v2327 = vpop.f32.mrb[0].mxu0
        %v2328 = vpop.f32.mrb[0].mxu0
        %2329 = vdwg.mxu0
        %v2331 = vsel %vm2191, %v2186, 0
        %v2334 = vsel %vm2191, %v2190, 0
        %2336 = vmatprep.subr.bf16.mxu0 0
        %2337 = vmatpush1.bf16.xpose.msra.mxu0 %v2334
        %2338 = vmatprep.subr.bf16.mxu0 0
        %2339 = vmatpush1.bf16.xpose.msra.mxu0 0
        %2340 = vmatprep.subr.bf16.mxu0 0
        %2341 = vmatpush1.bf16.xpose.msra.mxu0 0
        %2342 = vmatprep.subr.bf16.mxu0 0
        %2343 = vmatpush1.bf16.xpose.msra.mxu0 0
        %2344 = vmatprep.subr.bf16.mxu0 0
        %2345 = vmatpush1.bf16.xpose.msra.mxu0 0
        %2346 = vmatprep.subr.bf16.mxu0 0
        %2347 = vmatpush1.bf16.xpose.msra.mxu0 0
        %2348 = vmatprep.subr.bf16.mxu0 0
        %2349 = vmatpush1.bf16.xpose.msra.mxu0 0
        %2350 = vmatprep.subr.bf16.mxu0 0
        %2351 = vmatpush1.bf16.xpose.msra.mxu0 0
        %2352 = vmatprep.subr.bf16.mxu0 0
        %2353 = vmatpush1.bf16.xpose.msra.mxu0 0
        %2354 = vmatprep.subr.bf16.mxu0 0
        %2355 = vmatpush1.bf16.xpose.msra.mxu0 0
        %2356 = vmatprep.subr.bf16.mxu0 0
        %2357 = vmatpush1.bf16.xpose.msra.mxu0 0
        %2358 = vmatprep.subr.bf16.mxu0 0
        %2359 = vmatpush1.bf16.xpose.msra.mxu0 0
        %2360 = vmatprep.subr.bf16.mxu0 0
        %2361 = vmatpush1.bf16.xpose.msra.mxu0 0
        %2362 = vmatprep.subr.bf16.mxu0 0
        %2363 = vmatpush1.bf16.xpose.msra.mxu0 0
        %2364 = vmatprep.subr.bf16.mxu0 0
        %2365 = vmatpush1.bf16.xpose.msra.mxu0 0
        %2366 = vmatprep.subr.bf16.mxu0 0
        %2367 = vmatpush1.bf16.xpose.msra.mxu0 0
        %2368 = vmatprep.mubr.bf16.mxu0 0
        %2369 = vmatmul.mubr.bf16.gmra.mrb[0].mxu0 %v2331
        %v2370 = vpop.f32.mrb[0].mxu0
        %v2371 = vadd.f32 0.0, %v2370
        %v2372 = vpop.f32.mrb[0].mxu0
        %v2373 = vpop.f32.mrb[0].mxu0
        %v2374 = vpop.f32.mrb[0].mxu0
        %2375 = vdwg.mxu0
        %v2376 = vsel %vm1352, 16843009, 0
        %v2377 = vunpack.c.0.s8 %v2376
        %vm2378 = vcmp.ne.s32.totalorder %v2377, 0
        %v2379 = vsel %vm2378, 1, 0
        %vm2380 = vcmp.eq.s32.totalorder %v2379, 1
        %v2381 = vsel %vm2380, %v2233, -1e+09
        %v2382 = vsel %vm2380, %v2279, -1e+09
        %v2383 = vsel %vm2380, %v2325, -1e+09
        %v2384 = vsel %vm2380, %v2371, -1e+09
        %vm2385 = vcmask 64512
        %v2386 = vsel %vm2385, %v2381, -inf
        %2387 = vmax.xlane.f32.xlu0 %v2386
        %v2388 = vpop.xlane.xlu0 %2387
        %v2389 = vsel %vm2385, %v2382, -inf
        %2390 = vmax.xlane.f32.xlu0 %v2389
        %v2391 = vpop.xlane.xlu0 %2390
        %v2392 = vsel %vm2385, %v2383, -inf
        %2393 = vmax.xlane.f32.xlu0 %v2392
        %v2394 = vpop.xlane.xlu0 %2393
        %v2395 = vsel %vm2385, %v2384, -inf
        %2396 = vmax.xlane.f32.xlu0 %v2395
        %v2397 = vpop.xlane.xlu0 %2396
        %v2398 = vsub.f32 %v2381, %v2388
        %v2399 = vsub.f32 %v2382, %v2391
        %v2400 = vsub.f32 %v2383, %v2394
        %v2401 = vsub.f32 %v2384, %v2397
        %v2402 = vmul.f32 %v2398, 1.442695
        %v2403 = vpow.pop %v2402
        %v2404 = vmul.f32 %v2399, 1.442695
        %v2405 = vpow.pop %v2404
        %v2406 = vmul.f32 %v2400, 1.442695
        %v2407 = vpow.pop %v2406
        %v2408 = vmul.f32 %v2401, 1.442695
        %v2409 = vpow.pop %v2408
        %v2410 = vsel %vm2385, %v2403, 0.0
        %2411 = vadd.xlane.f32.xlu0 %v2410
        %v2412 = vpop.xlane.xlu0 %2411
        %v2413 = vsel %vm2385, %v2405, 0.0
        %2414 = vadd.xlane.f32.xlu0 %v2413
        %v2415 = vpop.xlane.xlu0 %2414
        %v2416 = vsel %vm2385, %v2407, 0.0
        %2417 = vadd.xlane.f32.xlu0 %v2416
        %v2418 = vpop.xlane.xlu0 %2417
        %v2419 = vsel %vm2385, %v2409, 0.0
        %2420 = vadd.xlane.f32.xlu0 %v2419
        %v2421 = vpop.xlane.xlu0 %2420
        %v2422 = vrcp.pop %v2412
        %v2423 = vrcp.pop %v2415
        %v2424 = vrcp.pop %v2418
        %v2425 = vrcp.pop %v2421
        %v2426 = vmul.f32 %v2403, %v2422
        %v2427 = vmul.f32 %v2405, %v2423
        %v2428 = vmul.f32 %v2407, %v2424
        %v2429 = vmul.f32 %v2409, %v2425
        %v2430 = vpack.c.bf16 %v2426, %v2426
        %v2431 = vpack.c.bf16 %v2427, %v2427
        %v2432 = vpack.c.bf16 %v2428, %v2428
        %v2433 = vpack.c.bf16 %v2429, %v2429
        %v2434 = vpack.c.bf16 %v2179, %v2179
        %v2435 = vpack.c.bf16 %v2180, %v2180
        %v2436 = vpack.c.bf16 %v2181, %v2181
        %v2437 = vpack.c.bf16 %v2182, %v2182
        %v2439 = vsel %vm2385, %v2430, 0
        %vm2441 = vcmask 1043456
        %v2443 = vsel %vm2441, %v2434, 0
        %2445 = vmatprep.subr.bf16.mxu0 0
        %2446 = vmatpush1.bf16.msra.mxu0 %v2443
        %2447 = vmatprep.subr.bf16.mxu0 0
        %2448 = vmatpush1.bf16.msra.mxu0 0
        %2449 = vmatprep.subr.bf16.mxu0 0
        %2450 = vmatpush1.bf16.msra.mxu0 0
        %2451 = vmatprep.subr.bf16.mxu0 0
        %2452 = vmatpush1.bf16.msra.mxu0 0
        %2453 = vmatprep.subr.bf16.mxu0 0
        %2454 = vmatpush1.bf16.msra.mxu0 0
        %2455 = vmatprep.subr.bf16.mxu0 0
        %2456 = vmatpush1.bf16.msra.mxu0 0
        %2457 = vmatprep.subr.bf16.mxu0 0
        %2458 = vmatpush1.bf16.msra.mxu0 0
        %2459 = vmatprep.subr.bf16.mxu0 0
        %2460 = vmatpush1.bf16.msra.mxu0 0
        %2461 = vmatprep.subr.bf16.mxu0 0
        %2462 = vmatpush1.bf16.msra.mxu0 0
        %2463 = vmatprep.subr.bf16.mxu0 0
        %2464 = vmatpush1.bf16.msra.mxu0 0
        %2465 = vmatprep.subr.bf16.mxu0 0
        %2466 = vmatpush1.bf16.msra.mxu0 0
        %2467 = vmatprep.subr.bf16.mxu0 0
        %2468 = vmatpush1.bf16.msra.mxu0 0
        %2469 = vmatprep.subr.bf16.mxu0 0
        %2470 = vmatpush1.bf16.msra.mxu0 0
        %2471 = vmatprep.subr.bf16.mxu0 0
        %2472 = vmatpush1.bf16.msra.mxu0 0
        %2473 = vmatprep.subr.bf16.mxu0 0
        %2474 = vmatpush1.bf16.msra.mxu0 0
        %2475 = vmatprep.subr.bf16.mxu0 0
        %2476 = vmatpush1.bf16.msra.mxu0 0
        %2477 = vmatprep.mubr.bf16.mxu0 0
        %2478 = vmatmul.mubr.bf16.gmra.mrb[0].mxu0 %v2439
        %v2479 = vpop.f32.mrb[0].mxu0
        %v2480 = vadd.f32 0.0, %v2479
        %v2481 = vpop.f32.mrb[0].mxu0
        %v2482 = vpop.f32.mrb[0].mxu0
        %v2483 = vpop.f32.mrb[0].mxu0
        %2484 = vdwg.mxu0
        %v2486 = vsel %vm2385, %v2431, 0
        %v2489 = vsel %vm2441, %v2435, 0
        %2491 = vmatprep.subr.bf16.mxu0 0
        %2492 = vmatpush1.bf16.msra.mxu0 %v2489
        %2493 = vmatprep.subr.bf16.mxu0 0
        %2494 = vmatpush1.bf16.msra.mxu0 0
        %2495 = vmatprep.subr.bf16.mxu0 0
        %2496 = vmatpush1.bf16.msra.mxu0 0
        %2497 = vmatprep.subr.bf16.mxu0 0
        %2498 = vmatpush1.bf16.msra.mxu0 0
        %2499 = vmatprep.subr.bf16.mxu0 0
        %2500 = vmatpush1.bf16.msra.mxu0 0
        %2501 = vmatprep.subr.bf16.mxu0 0
        %2502 = vmatpush1.bf16.msra.mxu0 0
        %2503 = vmatprep.subr.bf16.mxu0 0
        %2504 = vmatpush1.bf16.msra.mxu0 0
        %2505 = vmatprep.subr.bf16.mxu0 0
        %2506 = vmatpush1.bf16.msra.mxu0 0
        %2507 = vmatprep.subr.bf16.mxu0 0
        %2508 = vmatpush1.bf16.msra.mxu0 0
        %2509 = vmatprep.subr.bf16.mxu0 0
        %2510 = vmatpush1.bf16.msra.mxu0 0
        %2511 = vmatprep.subr.bf16.mxu0 0
        %2512 = vmatpush1.bf16.msra.mxu0 0
        %2513 = vmatprep.subr.bf16.mxu0 0
        %2514 = vmatpush1.bf16.msra.mxu0 0
        %2515 = vmatprep.subr.bf16.mxu0 0
        %2516 = vmatpush1.bf16.msra.mxu0 0
        %2517 = vmatprep.subr.bf16.mxu0 0
        %2518 = vmatpush1.bf16.msra.mxu0 0
        %2519 = vmatprep.subr.bf16.mxu0 0
        %2520 = vmatpush1.bf16.msra.mxu0 0
        %2521 = vmatprep.subr.bf16.mxu0 0
        %2522 = vmatpush1.bf16.msra.mxu0 0
        %2523 = vmatprep.mubr.bf16.mxu0 0
        %2524 = vmatmul.mubr.bf16.gmra.mrb[0].mxu0 %v2486
        %v2525 = vpop.f32.mrb[0].mxu0
        %v2526 = vadd.f32 0.0, %v2525
        %v2527 = vpop.f32.mrb[0].mxu0
        %v2528 = vpop.f32.mrb[0].mxu0
        %v2529 = vpop.f32.mrb[0].mxu0
        %2530 = vdwg.mxu0
        %v2532 = vsel %vm2385, %v2432, 0
        %v2535 = vsel %vm2441, %v2436, 0
        %2537 = vmatprep.subr.bf16.mxu0 0
        %2538 = vmatpush1.bf16.msra.mxu0 %v2535
        %2539 = vmatprep.subr.bf16.mxu0 0
        %2540 = vmatpush1.bf16.msra.mxu0 0
        %2541 = vmatprep.subr.bf16.mxu0 0
        %2542 = vmatpush1.bf16.msra.mxu0 0
        %2543 = vmatprep.subr.bf16.mxu0 0
        %2544 = vmatpush1.bf16.msra.mxu0 0
        %2545 = vmatprep.subr.bf16.mxu0 0
        %2546 = vmatpush1.bf16.msra.mxu0 0
        %2547 = vmatprep.subr.bf16.mxu0 0
        %2548 = vmatpush1.bf16.msra.mxu0 0
        %2549 = vmatprep.subr.bf16.mxu0 0
        %2550 = vmatpush1.bf16.msra.mxu0 0
        %2551 = vmatprep.subr.bf16.mxu0 0
        %2552 = vmatpush1.bf16.msra.mxu0 0
        %2553 = vmatprep.subr.bf16.mxu0 0
        %2554 = vmatpush1.bf16.msra.mxu0 0
        %2555 = vmatprep.subr.bf16.mxu0 0
        %2556 = vmatpush1.bf16.msra.mxu0 0
        %2557 = vmatprep.subr.bf16.mxu0 0
        %2558 = vmatpush1.bf16.msra.mxu0 0
        %2559 = vmatprep.subr.bf16.mxu0 0
        %2560 = vmatpush1.bf16.msra.mxu0 0
        %2561 = vmatprep.subr.bf16.mxu0 0
        %2562 = vmatpush1.bf16.msra.mxu0 0
        %2563 = vmatprep.subr.bf16.mxu0 0
        %2564 = vmatpush1.bf16.msra.mxu0 0
        %2565 = vmatprep.subr.bf16.mxu0 0
        %2566 = vmatpush1.bf16.msra.mxu0 0
        %2567 = vmatprep.subr.bf16.mxu0 0
        %2568 = vmatpush1.bf16.msra.mxu0 0
        %2569 = vmatprep.mubr.bf16.mxu0 0
        %2570 = vmatmul.mubr.bf16.gmra.mrb[0].mxu0 %v2532
        %v2571 = vpop.f32.mrb[0].mxu0
        %v2572 = vadd.f32 0.0, %v2571
        %v2573 = vpop.f32.mrb[0].mxu0
        %v2574 = vpop.f32.mrb[0].mxu0
        %v2575 = vpop.f32.mrb[0].mxu0
        %2576 = vdwg.mxu0
        %v2578 = vsel %vm2385, %v2433, 0
        %v2581 = vsel %vm2441, %v2437, 0
        %2583 = vmatprep.subr.bf16.mxu0 0
        %2584 = vmatpush1.bf16.msra.mxu0 %v2581
        %2585 = vmatprep.subr.bf16.mxu0 0
        %2586 = vmatpush1.bf16.msra.mxu0 0
        %2587 = vmatprep.subr.bf16.mxu0 0
        %2588 = vmatpush1.bf16.msra.mxu0 0
        %2589 = vmatprep.subr.bf16.mxu0 0
        %2590 = vmatpush1.bf16.msra.mxu0 0
        %2591 = vmatprep.subr.bf16.mxu0 0
        %2592 = vmatpush1.bf16.msra.mxu0 0
        %2593 = vmatprep.subr.bf16.mxu0 0
        %2594 = vmatpush1.bf16.msra.mxu0 0
        %2595 = vmatprep.subr.bf16.mxu0 0
        %2596 = vmatpush1.bf16.msra.mxu0 0
        %2597 = vmatprep.subr.bf16.mxu0 0
        %2598 = vmatpush1.bf16.msra.mxu0 0
        %2599 = vmatprep.subr.bf16.mxu0 0
        %2600 = vmatpush1.bf16.msra.mxu0 0
        %2601 = vmatprep.subr.bf16.mxu0 0
        %2602 = vmatpush1.bf16.msra.mxu0 0
        %2603 = vmatprep.subr.bf16.mxu0 0
        %2604 = vmatpush1.bf16.msra.mxu0 0
        %2605 = vmatprep.subr.bf16.mxu0 0
        %2606 = vmatpush1.bf16.msra.mxu0 0
        %2607 = vmatprep.subr.bf16.mxu0 0
        %2608 = vmatpush1.bf16.msra.mxu0 0
        %2609 = vmatprep.subr.bf16.mxu0 0
        %2610 = vmatpush1.bf16.msra.mxu0 0
        %2611 = vmatprep.subr.bf16.mxu0 0
        %2612 = vmatpush1.bf16.msra.mxu0 0
        %2613 = vmatprep.subr.bf16.mxu0 0
        %2614 = vmatpush1.bf16.msra.mxu0 0
        %2615 = vmatprep.mubr.bf16.mxu0 0
        %2616 = vmatmul.mubr.bf16.gmra.mrb[0].mxu0 %v2578
        %v2617 = vpop.f32.mrb[0].mxu0
        %v2618 = vadd.f32 0.0, %v2617
        %v2619 = vpop.f32.mrb[0].mxu0
        %v2620 = vpop.f32.mrb[0].mxu0
        %v2621 = vpop.f32.mrb[0].mxu0
        %2622 = vdwg.mxu0
        %v2623 = vcombine.low %v2480, %v2572
        %v2624 = vcombine.high %v2480, %v2572
        %v2626 = vunpack.c.l.s4 1983009808
        %v2627 = vunpack.c.0.s8 %v2626
        %v2628 = vlaneseq
        %v2629 = vshrl.u32 %v2628, 7
        %v2630 = vsub.s32 %v2627, %v2629
        %v2631 = vrot.slane %v2623, %v2630
        %v2633 = vunpack.c.l.s4 1983009808
        %v2634 = vunpack.c.0.s8 %v2633
        %v2635 = vlaneseq
        %v2636 = vshrl.u32 %v2635, 7
        %v2637 = vsub.s32 %v2634, %v2636
        %v2638 = vrot.slane %v2624, %v2637
        %v2639 = vcombine.low %v2526, %v2618
        %v2640 = vcombine.high %v2526, %v2618
        %v2642 = vunpack.c.l.s4 1983009808
        %v2643 = vunpack.c.0.s8 %v2642
        %v2644 = vlaneseq
        %v2645 = vshrl.u32 %v2644, 7
        %v2646 = vsub.s32 %v2643, %v2645
        %v2647 = vrot.slane %v2639, %v2646
        %v2649 = vunpack.c.l.s4 1983009808
        %v2650 = vunpack.c.0.s8 %v2649
        %v2651 = vlaneseq
        %v2652 = vshrl.u32 %v2651, 7
        %v2653 = vsub.s32 %v2650, %v2652
        %v2654 = vrot.slane %v2640, %v2653
        %v2655 = vcombine.low %v2631, %v2647
        %v2656 = vcombine.high %v2631, %v2647
        %v2658 = vunpack.c.l.s4 1934713408
        %v2659 = vunpack.c.0.s8 %v2658
        %v2660 = vlaneseq
        %v2661 = vshrl.u32 %v2660, 7
        %v2662 = vsub.s32 %v2659, %v2661
        %v2663 = vrot.slane %v2655, %v2662
        %v2665 = vunpack.c.l.s4 1934713408
        %v2666 = vunpack.c.0.s8 %v2665
        %v2667 = vlaneseq
        %v2668 = vshrl.u32 %v2667, 7
        %v2669 = vsub.s32 %v2666, %v2668
        %v2670 = vrot.slane %v2656, %v2669
        %v2671 = vcombine.low %v2638, %v2654
        %v2672 = vcombine.high %v2638, %v2654
        %v2674 = vunpack.c.l.s4 1934713408
        %v2675 = vunpack.c.0.s8 %v2674
        %v2676 = vlaneseq
        %v2677 = vshrl.u32 %v2676, 7
        %v2678 = vsub.s32 %v2675, %v2677
        %v2679 = vrot.slane %v2671, %v2678
        %v2681 = vunpack.c.l.s4 1934713408
        %v2682 = vunpack.c.0.s8 %v2681
        %v2683 = vlaneseq
        %v2684 = vshrl.u32 %v2683, 7
        %v2685 = vsub.s32 %v2682, %v2684
        %v2686 = vrot.slane %v2672, %v2685
        %v2687 = vcombine.high %v2663, 0.0
        %v2688 = vcombine.high %v2670, 0.0
        %v2689 = vcombine.high %v2679, 0.0
        %v2690 = vcombine.high %v2686, 0.0
        %v2691 = vcombine.low %v2663, %v2670
        %v2693 = vunpack.c.l.s4 1983009808
        %v2694 = vunpack.c.0.s8 %v2693
        %v2695 = vlaneseq
        %v2696 = vshrl.u32 %v2695, 7
        %v2697 = vsub.s32 %v2694, %v2696
        %v2698 = vrot.slane %v2691, %v2697
        %v2699 = vcombine.low %v2687, %v2688
        %v2701 = vunpack.c.l.s4 1983009808
        %v2702 = vunpack.c.0.s8 %v2701
        %v2703 = vlaneseq
        %v2704 = vshrl.u32 %v2703, 7
        %v2705 = vsub.s32 %v2702, %v2704
        %v2706 = vrot.slane %v2699, %v2705
        %v2707 = vcombine.low %v2679, %v2686
        %v2709 = vunpack.c.l.s4 1983009808
        %v2710 = vunpack.c.0.s8 %v2709
        %v2711 = vlaneseq
        %v2712 = vshrl.u32 %v2711, 7
        %v2713 = vsub.s32 %v2710, %v2712
        %v2714 = vrot.slane %v2707, %v2713
        %v2715 = vcombine.low %v2689, %v2690
        %v2717 = vunpack.c.l.s4 1983009808
        %v2718 = vunpack.c.0.s8 %v2717
        %v2719 = vlaneseq
        %v2720 = vshrl.u32 %v2719, 7
        %v2721 = vsub.s32 %v2718, %v2720
        %v2722 = vrot.slane %v2715, %v2721
        %v2723 = vcombine.low %v2698, %v2706
        %v2724 = vcombine.high %v2698, %v2706
        %v2726 = vunpack.c.l.s4 1934713408
        %v2727 = vunpack.c.0.s8 %v2726
        %v2728 = vlaneseq
        %v2729 = vshrl.u32 %v2728, 7
        %v2730 = vsub.s32 %v2727, %v2729
        %v2731 = vrot.slane %v2723, %v2730
        %v2733 = vunpack.c.l.s4 1934713408
        %v2734 = vunpack.c.0.s8 %v2733
        %v2735 = vlaneseq
        %v2736 = vshrl.u32 %v2735, 7
        %v2737 = vsub.s32 %v2734, %v2736
        %v2738 = vrot.slane %v2724, %v2737
        %v2739 = vcombine.low %v2714, %v2722
        %v2740 = vcombine.high %v2714, %v2722
        %v2742 = vunpack.c.l.s4 1934713408
        %v2743 = vunpack.c.0.s8 %v2742
        %v2744 = vlaneseq
        %v2745 = vshrl.u32 %v2744, 7
        %v2746 = vsub.s32 %v2743, %v2745
        %v2747 = vrot.slane %v2739, %v2746
        %v2749 = vunpack.c.l.s4 1934713408
        %v2750 = vunpack.c.0.s8 %v2749
        %v2751 = vlaneseq
        %v2752 = vshrl.u32 %v2751, 7
        %v2753 = vsub.s32 %v2750, %v2752
        %v2754 = vrot.slane %v2740, %v2753
        %v2755 = vcombine.low %v2731, %v2747
        %v2756 = vcombine.high %v2731, %v2747
        %v2757 = vcombine.low %v2738, %v2754
        %v2758 = vcombine.high %v2738, %v2754
        %2760 = vrot.lane.b32.xlu0 %v2756, 32
        %v2761 = vpop.permute.xlu0 %2760
        %2764 = vrot.lane.b32.xlu0 %v2757, 64
        %v2765 = vpop.permute.xlu0 %2764
        %2768 = vrot.lane.b32.xlu0 %v2758, 96
        %v2769 = vpop.permute.xlu0 %2768
        %v2771 = vsel %vm2191, %v2755, %v2761
        %vm2772 = vcmask 523264
        %v2773 = vsel %vm2772, %v2771, %v2765
        %vm2774 = vcmask 785408
        %v2775 = vsel %vm2774, %v2773, %v2769
        %v2776 = vpack.c.bf16 %v2775, %v2775
        %v2793 = vunpack.c.l.b16 %v1441
        %v2794 = vunpack.c.l.b16 %v1442
        %v2795 = vunpack.c.l.b16 %v1443
        %v2796 = vunpack.c.l.b16 %v1444
        %v2797 = vunpack.c.l.b16 %v1445
        %v2798 = vunpack.c.l.b16 %v1446
        %v2799 = vunpack.c.l.b16 %v1447
        %v2800 = vunpack.c.l.b16 %v1448
        %v2801 = vunpack.c.l.b16 %v1449
        %v2802 = vunpack.c.l.b16 %v1450
        %v2803 = vunpack.c.l.b16 %v1451
        %v2804 = vunpack.c.l.b16 %v1452
        %v2805 = vunpack.c.l.b16 %v1453
        %v2806 = vunpack.c.l.b16 %v1454
        %v2807 = vunpack.c.l.b16 %v1455
        %v2808 = vunpack.c.l.b16 %v1456
        %v2809 = vpack.c.b16 %v2794, %v2793
        %v2810 = vpack.c.b16 %v2796, %v2795
        %v2811 = vpack.c.b16 %v2798, %v2797
        %v2812 = vpack.c.b16 %v2800, %v2799
        %v2813 = vpack.c.b16 %v2802, %v2801
        %v2814 = vpack.c.b16 %v2804, %v2803
        %v2815 = vpack.c.b16 %v2806, %v2805
        %v2816 = vpack.c.b16 %v2808, %v2807
        %2825 = vmatprep.subr.bf16.mxu0 0
        %2826 = vmatpush1.bf16.msra.mxu0 %v2809
        %2827 = vmatprep.subr.bf16.mxu0 0
        %2828 = vmatpush1.bf16.msra.mxu0 %v2810
        %2829 = vmatprep.subr.bf16.mxu0 0
        %2830 = vmatpush1.bf16.msra.mxu0 %v2811
        %2831 = vmatprep.subr.bf16.mxu0 0
        %2832 = vmatpush1.bf16.msra.mxu0 %v2812
        %2833 = vmatprep.subr.bf16.mxu0 0
        %2834 = vmatpush1.bf16.msra.mxu0 %v2813
        %2835 = vmatprep.subr.bf16.mxu0 0
        %2836 = vmatpush1.bf16.msra.mxu0 %v2814
        %2837 = vmatprep.subr.bf16.mxu0 0
        %2838 = vmatpush1.bf16.msra.mxu0 %v2815
        %2839 = vmatprep.subr.bf16.mxu0 0
        %2840 = vmatpush1.bf16.msra.mxu0 %v2816
        %2841 = vmatprep.subr.bf16.mxu0 0
        %2842 = vmatpush1.bf16.msra.mxu0 0
        %2843 = vmatprep.subr.bf16.mxu0 0
        %2844 = vmatpush1.bf16.msra.mxu0 0
        %2845 = vmatprep.subr.bf16.mxu0 0
        %2846 = vmatpush1.bf16.msra.mxu0 0
        %2847 = vmatprep.subr.bf16.mxu0 0
        %2848 = vmatpush1.bf16.msra.mxu0 0
        %2849 = vmatprep.subr.bf16.mxu0 0
        %2850 = vmatpush1.bf16.msra.mxu0 0
        %2851 = vmatprep.subr.bf16.mxu0 0
        %2852 = vmatpush1.bf16.msra.mxu0 0
        %2853 = vmatprep.subr.bf16.mxu0 0
        %2854 = vmatpush1.bf16.msra.mxu0 0
        %2855 = vmatprep.subr.bf16.mxu0 0
        %2856 = vmatpush1.bf16.msra.mxu0 0
        %2857 = vmatprep.mubr.bf16.mxu0 0
        %2858 = vmatmul.mubr.bf16.gmra.mrb[0].mxu0 %v2776
        %v2859 = vpop.f32.mrb[0].mxu0
        %v2860 = vadd.f32 0.0, %v2859
        %v2861 = vpop.f32.mrb[0].mxu0
        %v2862 = vpop.f32.mrb[0].mxu0
        %v2863 = vpop.f32.mrb[0].mxu0
        %2864 = vdwg.mxu0
        %v2865 = vadd.f32 %v1349, %v2860
        %v2867 = vlaneseq
        %v2868 = vshrl.u32 %v2867, 7
        %v2869 = vsub.s32 0, %v2868
        %v2870 = vrot.slane %v1460, %v2869
        %v2872 = vadd.f32 %v2865, %v2870
        %v2873 = vld [vmem:[#allocation11] sm:$0x1]
        %v2874 = vld [vmem:[#allocation13] sm:$0x1]
        %2875 = vadd.xlane.f32.xlu0 %v2872
        %v2876 = vpop.xlane.xlu0 %2875
        %v2877 = vmul.f32 %v2876, %v1359
        %v2878 = vsub.f32 %v2872, %v2877
        %v2879 = vmul.f32 %v2878, %v2878
        %2880 = vadd.xlane.f32.xlu0 %v2879
        %v2881 = vpop.xlane.xlu0 %2880
        %v2882 = vmul.f32 %v2881, 0.007874016
        %v2883 = vrsqrt.pop %v2882
        %v2884 = vmul.f32 %v2882, %v2883
        %vm2885 = vcmp.eq.f32.partialorder %v2882, inf
        %v2886 = vsel %vm2885, %v2882, %v2884
        %vm2887 = vcmp.eq.f32.partialorder %v2882, 0.0
        %v2888 = vand.u32 %v2882, 2147483648
        %v2889 = vsel %vm2887, %v2888, %v2886
        %v2890 = vadd.f32 %v2889, 1e-06
        %v2891 = vrcp.pop %v2890
        %v2892 = vmul.f32 %v2890, %v2891
        %v2893 = vsub.f32 2.0, %v2892
        %v2894 = vmul.f32 %v2891, %v2893
        %v2895 = vmul.f32 %v2878, %v2894
        %v2897 = vlaneseq
        %v2898 = vshrl.u32 %v2897, 7
        %v2899 = vsub.s32 0, %v2898
        %v2900 = vrot.slane %v2873, %v2899
        %v2902 = vmul.f32 %v2900, %v2895
        %v2904 = vlaneseq
        %v2905 = vshrl.u32 %v2904, 7
        %v2906 = vsub.s32 0, %v2905
        %v2907 = vrot.slane %v2874, %v2906
        %v2909 = vadd.f32 %v2902, %v2907
        %v2910 = vld [vmem:[%s37] sm:$0xf]
        %v2911 = vld [vmem:[%s37 + $0x4] sm:$0xf]
        %v2912 = vld [vmem:[%s37 + $0x8] sm:$0xf]
        %v2913 = vld [vmem:[%s37 + $0xc] sm:$0xf]
        %v2914 = vld [vmem:[%s37 + $0x10] sm:$0xf]
        %v2915 = vld [vmem:[%s37 + $0x14] sm:$0xf]
        %v2916 = vld [vmem:[%s37 + $0x18] sm:$0xf]
        %v2917 = vld [vmem:[%s37 + $0x1c] sm:$0xf]
        %v2918 = vld [vmem:[%s37 + $0x20] sm:$0xf]
        %v2919 = vld [vmem:[%s37 + $0x24] sm:$0xf]
        %v2920 = vld [vmem:[%s37 + $0x28] sm:$0xf]
        %v2921 = vld [vmem:[%s37 + $0x2c] sm:$0xf]
        %v2922 = vld [vmem:[%s37 + $0x30] sm:$0xf]
        %v2923 = vld [vmem:[%s37 + $0x34] sm:$0xf]
        %v2924 = vld [vmem:[%s37 + $0x38] sm:$0xf]
        %v2925 = vld [vmem:[%s37 + $0x3c] sm:$0xf]
        %v2926 = vld [vmem:[#allocation29] sm:$0xf]
        %v2927 = vld [vmem:[#allocation29 + $0x4] sm:$0xf]
        %v2928 = vld [vmem:[#allocation29 + $0x8] sm:$0xf]
        %v2929 = vld [vmem:[#allocation29 + $0xc] sm:$0xf]
        %v2930 = vld [vmem:[#allocation29 + $0x10] sm:$0xf]
        %v2931 = vld [vmem:[#allocation29 + $0x14] sm:$0xf]
        %v2932 = vld [vmem:[#allocation29 + $0x18] sm:$0xf]
        %v2933 = vld [vmem:[#allocation29 + $0x1c] sm:$0xf]
        %v2934 = vld [vmem:[#allocation29 + $0x20] sm:$0xf]
        %v2935 = vld [vmem:[#allocation29 + $0x24] sm:$0xf]
        %v2936 = vld [vmem:[#allocation29 + $0x28] sm:$0xf]
        %v2937 = vld [vmem:[#allocation29 + $0x2c] sm:$0xf]
        %v2938 = vld [vmem:[#allocation29 + $0x30] sm:$0xf]
        %v2939 = vld [vmem:[#allocation29 + $0x34] sm:$0xf]
        %v2940 = vld [vmem:[#allocation29 + $0x38] sm:$0xf]
        %v2941 = vld [vmem:[#allocation29 + $0x3c] sm:$0xf]
        %v2942 = vld [vmem:[#allocation31] sm:$0xf]
        %v2943 = vld [vmem:[#allocation31 + $0x4] sm:$0xf]
        %v2944 = vld [vmem:[#allocation31 + $0x8] sm:$0xf]
        %v2945 = vld [vmem:[#allocation31 + $0xc] sm:$0xf]
        %v2946 = vld [vmem:[#allocation31 + $0x10] sm:$0xf]
        %v2947 = vld [vmem:[#allocation31 + $0x14] sm:$0xf]
        %v2948 = vld [vmem:[#allocation31 + $0x18] sm:$0xf]
        %v2949 = vld [vmem:[#allocation31 + $0x1c] sm:$0xf]
        %v2950 = vld [vmem:[#allocation31 + $0x20] sm:$0xf]
        %v2951 = vld [vmem:[#allocation31 + $0x24] sm:$0xf]
        %v2952 = vld [vmem:[#allocation31 + $0x28] sm:$0xf]
        %v2953 = vld [vmem:[#allocation31 + $0x2c] sm:$0xf]
        %v2954 = vld [vmem:[#allocation31 + $0x30] sm:$0xf]
        %v2955 = vld [vmem:[#allocation31 + $0x34] sm:$0xf]
        %v2956 = vld [vmem:[#allocation31 + $0x38] sm:$0xf]
        %v2957 = vld [vmem:[#allocation31 + $0x3c] sm:$0xf]
        %v2958 = vld [vmem:[#allocation32] sm:$0xf]
        %v2959 = vld [vmem:[#allocation32 + $0x4] sm:$0xf]
        %v2960 = vld [vmem:[#allocation32 + $0x8] sm:$0xf]
        %v2961 = vld [vmem:[#allocation32 + $0xc] sm:$0xf]
        %v2962 = vld [vmem:[#allocation32 + $0x10] sm:$0xf]
        %v2963 = vld [vmem:[#allocation32 + $0x14] sm:$0xf]
        %v2964 = vld [vmem:[#allocation32 + $0x18] sm:$0xf]
        %v2965 = vld [vmem:[#allocation32 + $0x1c] sm:$0xf]
        %v2966 = vld [vmem:[#allocation32 + $0x20] sm:$0xf]
        %v2967 = vld [vmem:[#allocation32 + $0x24] sm:$0xf]
        %v2968 = vld [vmem:[#allocation32 + $0x28] sm:$0xf]
        %v2969 = vld [vmem:[#allocation32 + $0x2c] sm:$0xf]
        %v2970 = vld [vmem:[#allocation32 + $0x30] sm:$0xf]
        %v2971 = vld [vmem:[#allocation32 + $0x34] sm:$0xf]
        %v2972 = vld [vmem:[#allocation32 + $0x38] sm:$0xf]
        %v2973 = vld [vmem:[#allocation32 + $0x3c] sm:$0xf]
        %v2974 = vld [vmem:[%s45] sm:$0x1]
        %v2975 = vld [vmem:[%s47] sm:$0x1]
        %v2976 = vld [vmem:[%s49] sm:$0x1]
        %v2977 = vld [vmem:[%s51] sm:$0x1]
        %v2978 = vpack.c.bf16 %v2909, %v2909
        %v2979 = vpack.c.bf16 %v1350, %v1350
        %v2981 = vlaneseq
        %v2982 = vshrl.u32 %v2981, 7
        %v2983 = vsub.s32 0, %v2982
        %v2984 = vrot.slane %v2974, %v2983
        %v3002 = vunpack.c.l.b16 %v2910
        %v3003 = vunpack.c.l.b16 %v2911
        %v3004 = vunpack.c.l.b16 %v2912
        %v3005 = vunpack.c.l.b16 %v2913
        %v3006 = vunpack.c.l.b16 %v2914
        %v3007 = vunpack.c.l.b16 %v2915
        %v3008 = vunpack.c.l.b16 %v2916
        %v3009 = vunpack.c.l.b16 %v2917
        %v3010 = vunpack.c.l.b16 %v2918
        %v3011 = vunpack.c.l.b16 %v2919
        %v3012 = vunpack.c.l.b16 %v2920
        %v3013 = vunpack.c.l.b16 %v2921
        %v3014 = vunpack.c.l.b16 %v2922
        %v3015 = vunpack.c.l.b16 %v2923
        %v3016 = vunpack.c.l.b16 %v2924
        %v3017 = vunpack.c.l.b16 %v2925
        %v3018 = vpack.c.b16 %v3003, %v3002
        %v3019 = vpack.c.b16 %v3005, %v3004
        %v3020 = vpack.c.b16 %v3007, %v3006
        %v3021 = vpack.c.b16 %v3009, %v3008
        %v3022 = vpack.c.b16 %v3011, %v3010
        %v3023 = vpack.c.b16 %v3013, %v3012
        %v3024 = vpack.c.b16 %v3015, %v3014
        %v3025 = vpack.c.b16 %v3017, %v3016
        %3034 = vmatprep.subr.bf16.mxu0 0
        %3035 = vmatpush1.bf16.msra.mxu0 %v3018
        %3036 = vmatprep.subr.bf16.mxu0 0
        %3037 = vmatpush1.bf16.msra.mxu0 %v3019
        %3038 = vmatprep.subr.bf16.mxu0 0
        %3039 = vmatpush1.bf16.msra.mxu0 %v3020
        %3040 = vmatprep.subr.bf16.mxu0 0
        %3041 = vmatpush1.bf16.msra.mxu0 %v3021
        %3042 = vmatprep.subr.bf16.mxu0 0
        %3043 = vmatpush1.bf16.msra.mxu0 %v3022
        %3044 = vmatprep.subr.bf16.mxu0 0
        %3045 = vmatpush1.bf16.msra.mxu0 %v3023
        %3046 = vmatprep.subr.bf16.mxu0 0
        %3047 = vmatpush1.bf16.msra.mxu0 %v3024
        %3048 = vmatprep.subr.bf16.mxu0 0
        %3049 = vmatpush1.bf16.msra.mxu0 %v3025
        %3050 = vmatprep.subr.bf16.mxu0 0
        %3051 = vmatpush1.bf16.msra.mxu0 0
        %3052 = vmatprep.subr.bf16.mxu0 0
        %3053 = vmatpush1.bf16.msra.mxu0 0
        %3054 = vmatprep.subr.bf16.mxu0 0
        %3055 = vmatpush1.bf16.msra.mxu0 0
        %3056 = vmatprep.subr.bf16.mxu0 0
        %3057 = vmatpush1.bf16.msra.mxu0 0
        %3058 = vmatprep.subr.bf16.mxu0 0
        %3059 = vmatpush1.bf16.msra.mxu0 0
        %3060 = vmatprep.subr.bf16.mxu0 0
        %3061 = vmatpush1.bf16.msra.mxu0 0
        %3062 = vmatprep.subr.bf16.mxu0 0
        %3063 = vmatpush1.bf16.msra.mxu0 0
        %3064 = vmatprep.subr.bf16.mxu0 0
        %3065 = vmatpush1.bf16.msra.mxu0 0
        %3066 = vmatprep.mubr.bf16.mxu0 0
        %3067 = vmatmul.mubr.bf16.gmra.mrb[0].mxu0 %v2978
        %v3068 = vpop.f32.mrb[0].mxu0
        %v3069 = vadd.f32 %v2984, %v3068
        %v3070 = vpop.f32.mrb[0].mxu0
        %v3071 = vpop.f32.mrb[0].mxu0
        %v3072 = vpop.f32.mrb[0].mxu0
        %3073 = vdwg.mxu0
        %v3074 = vmul.f32 %v3069, 0.17677669
        %v3076 = vlaneseq
        %v3077 = vshrl.u32 %v3076, 7
        %v3078 = vsub.s32 0, %v3077
        %v3079 = vrot.slane %v2975, %v3078
        %v3097 = vunpack.c.l.b16 %v2926
        %v3098 = vunpack.c.l.b16 %v2927
        %v3099 = vunpack.c.l.b16 %v2928
        %v3100 = vunpack.c.l.b16 %v2929
        %v3101 = vunpack.c.l.b16 %v2930
        %v3102 = vunpack.c.l.b16 %v2931
        %v3103 = vunpack.c.l.b16 %v2932
        %v3104 = vunpack.c.l.b16 %v2933
        %v3105 = vunpack.c.l.b16 %v2934
        %v3106 = vunpack.c.l.b16 %v2935
        %v3107 = vunpack.c.l.b16 %v2936
        %v3108 = vunpack.c.l.b16 %v2937
        %v3109 = vunpack.c.l.b16 %v2938
        %v3110 = vunpack.c.l.b16 %v2939
        %v3111 = vunpack.c.l.b16 %v2940
        %v3112 = vunpack.c.l.b16 %v2941
        %v3113 = vpack.c.b16 %v3098, %v3097
        %v3114 = vpack.c.b16 %v3100, %v3099
        %v3115 = vpack.c.b16 %v3102, %v3101
        %v3116 = vpack.c.b16 %v3104, %v3103
        %v3117 = vpack.c.b16 %v3106, %v3105
        %v3118 = vpack.c.b16 %v3108, %v3107
        %v3119 = vpack.c.b16 %v3110, %v3109
        %v3120 = vpack.c.b16 %v3112, %v3111
        %3129 = vmatprep.subr.bf16.mxu0 0
        %3130 = vmatpush1.bf16.msra.mxu0 %v3113
        %3131 = vmatprep.subr.bf16.mxu0 0
        %3132 = vmatpush1.bf16.msra.mxu0 %v3114
        %3133 = vmatprep.subr.bf16.mxu0 0
        %3134 = vmatpush1.bf16.msra.mxu0 %v3115
        %3135 = vmatprep.subr.bf16.mxu0 0
        %3136 = vmatpush1.bf16.msra.mxu0 %v3116
        %3137 = vmatprep.subr.bf16.mxu0 0
        %3138 = vmatpush1.bf16.msra.mxu0 %v3117
        %3139 = vmatprep.subr.bf16.mxu0 0
        %3140 = vmatpush1.bf16.msra.mxu0 %v3118
        %3141 = vmatprep.subr.bf16.mxu0 0
        %3142 = vmatpush1.bf16.msra.mxu0 %v3119
        %3143 = vmatprep.subr.bf16.mxu0 0
        %3144 = vmatpush1.bf16.msra.mxu0 %v3120
        %3145 = vmatprep.subr.bf16.mxu0 0
        %3146 = vmatpush1.bf16.msra.mxu0 0
        %3147 = vmatprep.subr.bf16.mxu0 0
        %3148 = vmatpush1.bf16.msra.mxu0 0
        %3149 = vmatprep.subr.bf16.mxu0 0
        %3150 = vmatpush1.bf16.msra.mxu0 0
        %3151 = vmatprep.subr.bf16.mxu0 0
        %3152 = vmatpush1.bf16.msra.mxu0 0
        %3153 = vmatprep.subr.bf16.mxu0 0
        %3154 = vmatpush1.bf16.msra.mxu0 0
        %3155 = vmatprep.subr.bf16.mxu0 0
        %3156 = vmatpush1.bf16.msra.mxu0 0
        %3157 = vmatprep.subr.bf16.mxu0 0
        %3158 = vmatpush1.bf16.msra.mxu0 0
        %3159 = vmatprep.subr.bf16.mxu0 0
        %3160 = vmatpush1.bf16.msra.mxu0 0
        %3161 = vmatprep.mubr.bf16.mxu0 0
        %3162 = vmatmul.mubr.bf16.gmra.mrb[0].mxu0 %v2979
        %v3163 = vpop.f32.mrb[0].mxu0
        %v3164 = vadd.f32 %v3079, %v3163
        %v3165 = vpop.f32.mrb[0].mxu0
        %v3166 = vpop.f32.mrb[0].mxu0
        %v3167 = vpop.f32.mrb[0].mxu0
        %3168 = vdwg.mxu0
        %v3170 = vlaneseq
        %v3171 = vshrl.u32 %v3170, 7
        %v3172 = vsub.s32 0, %v3171
        %v3173 = vrot.slane %v2976, %v3172
        %v3191 = vunpack.c.l.b16 %v2942
        %v3192 = vunpack.c.l.b16 %v2943
        %v3193 = vunpack.c.l.b16 %v2944
        %v3194 = vunpack.c.l.b16 %v2945
        %v3195 = vunpack.c.l.b16 %v2946
        %v3196 = vunpack.c.l.b16 %v2947
        %v3197 = vunpack.c.l.b16 %v2948
        %v3198 = vunpack.c.l.b16 %v2949
        %v3199 = vunpack.c.l.b16 %v2950
        %v3200 = vunpack.c.l.b16 %v2951
        %v3201 = vunpack.c.l.b16 %v2952
        %v3202 = vunpack.c.l.b16 %v2953
        %v3203 = vunpack.c.l.b16 %v2954
        %v3204 = vunpack.c.l.b16 %v2955
        %v3205 = vunpack.c.l.b16 %v2956
        %v3206 = vunpack.c.l.b16 %v2957
        %v3207 = vpack.c.b16 %v3192, %v3191
        %v3208 = vpack.c.b16 %v3194, %v3193
        %v3209 = vpack.c.b16 %v3196, %v3195
        %v3210 = vpack.c.b16 %v3198, %v3197
        %v3211 = vpack.c.b16 %v3200, %v3199
        %v3212 = vpack.c.b16 %v3202, %v3201
        %v3213 = vpack.c.b16 %v3204, %v3203
        %v3214 = vpack.c.b16 %v3206, %v3205
        %3223 = vmatprep.subr.bf16.mxu0 0
        %3224 = vmatpush1.bf16.msra.mxu0 %v3207
        %3225 = vmatprep.subr.bf16.mxu0 0
        %3226 = vmatpush1.bf16.msra.mxu0 %v3208
        %3227 = vmatprep.subr.bf16.mxu0 0
        %3228 = vmatpush1.bf16.msra.mxu0 %v3209
        %3229 = vmatprep.subr.bf16.mxu0 0
        %3230 = vmatpush1.bf16.msra.mxu0 %v3210
        %3231 = vmatprep.subr.bf16.mxu0 0
        %3232 = vmatpush1.bf16.msra.mxu0 %v3211
        %3233 = vmatprep.subr.bf16.mxu0 0
        %3234 = vmatpush1.bf16.msra.mxu0 %v3212
        %3235 = vmatprep.subr.bf16.mxu0 0
        %3236 = vmatpush1.bf16.msra.mxu0 %v3213
        %3237 = vmatprep.subr.bf16.mxu0 0
        %3238 = vmatpush1.bf16.msra.mxu0 %v3214
        %3239 = vmatprep.subr.bf16.mxu0 0
        %3240 = vmatpush1.bf16.msra.mxu0 0
        %3241 = vmatprep.subr.bf16.mxu0 0
        %3242 = vmatpush1.bf16.msra.mxu0 0
        %3243 = vmatprep.subr.bf16.mxu0 0
        %3244 = vmatpush1.bf16.msra.mxu0 0
        %3245 = vmatprep.subr.bf16.mxu0 0
        %3246 = vmatpush1.bf16.msra.mxu0 0
        %3247 = vmatprep.subr.bf16.mxu0 0
        %3248 = vmatpush1.bf16.msra.mxu0 0
        %3249 = vmatprep.subr.bf16.mxu0 0
        %3250 = vmatpush1.bf16.msra.mxu0 0
        %3251 = vmatprep.subr.bf16.mxu0 0
        %3252 = vmatpush1.bf16.msra.mxu0 0
        %3253 = vmatprep.subr.bf16.mxu0 0
        %3254 = vmatpush1.bf16.msra.mxu0 0
        %3255 = vmatprep.mubr.bf16.mxu0 0
        %3256 = vmatmul.mubr.bf16.gmra.mrb[0].mxu0 %v2979
        %v3257 = vpop.f32.mrb[0].mxu0
        %v3258 = vadd.f32 %v3173, %v3257
        %v3259 = vpop.f32.mrb[0].mxu0
        %v3260 = vpop.f32.mrb[0].mxu0
        %v3261 = vpop.f32.mrb[0].mxu0
        %3262 = vdwg.mxu0
        %3264 = vrot.lane.b32.xlu0 %v3074, 96
        %v3265 = vpop.permute.xlu0 %3264
        %3267 = vrot.lane.b32.xlu0 %v3074, 64
        %v3268 = vpop.permute.xlu0 %3267
        %3270 = vrot.lane.b32.xlu0 %v3074, 32
        %v3271 = vpop.permute.xlu0 %3270
        %v3273 = vcombine.low %v3074, %v3268
        %v3274 = vcombine.high %v3074, %v3268
        %v3276 = vunpack.c.l.s4 1983009808
        %v3277 = vunpack.c.0.s8 %v3276
        %v3278 = vlaneseq
        %v3279 = vshrl.u32 %v3278, 7
        %v3280 = vsub.s32 %v3277, %v3279
        %v3281 = vrot.slane %v3273, %v3280
        %v3283 = vunpack.c.l.s4 1983009808
        %v3284 = vunpack.c.0.s8 %v3283
        %v3285 = vlaneseq
        %v3286 = vshrl.u32 %v3285, 7
        %v3287 = vsub.s32 %v3284, %v3286
        %v3288 = vrot.slane %v3274, %v3287
        %v3289 = vcombine.low %v3265, %v3271
        %v3290 = vcombine.high %v3265, %v3271
        %v3292 = vunpack.c.l.s4 1983009808
        %v3293 = vunpack.c.0.s8 %v3292
        %v3294 = vlaneseq
        %v3295 = vshrl.u32 %v3294, 7
        %v3296 = vsub.s32 %v3293, %v3295
        %v3297 = vrot.slane %v3289, %v3296
        %v3299 = vunpack.c.l.s4 1983009808
        %v3300 = vunpack.c.0.s8 %v3299
        %v3301 = vlaneseq
        %v3302 = vshrl.u32 %v3301, 7
        %v3303 = vsub.s32 %v3300, %v3302
        %v3304 = vrot.slane %v3290, %v3303
        %v3305 = vcombine.low %v3281, %v3297
        %v3306 = vcombine.high %v3281, %v3297
        %v3308 = vunpack.c.l.s4 1934713408
        %v3309 = vunpack.c.0.s8 %v3308
        %v3310 = vlaneseq
        %v3311 = vshrl.u32 %v3310, 7
        %v3312 = vsub.s32 %v3309, %v3311
        %v3313 = vrot.slane %v3305, %v3312
        %v3315 = vunpack.c.l.s4 1934713408
        %v3316 = vunpack.c.0.s8 %v3315
        %v3317 = vlaneseq
        %v3318 = vshrl.u32 %v3317, 7
        %v3319 = vsub.s32 %v3316, %v3318
        %v3320 = vrot.slane %v3306, %v3319
        %v3321 = vcombine.low %v3288, %v3304
        %v3322 = vcombine.high %v3288, %v3304
        %v3324 = vunpack.c.l.s4 1934713408
        %v3325 = vunpack.c.0.s8 %v3324
        %v3326 = vlaneseq
        %v3327 = vshrl.u32 %v3326, 7
        %v3328 = vsub.s32 %v3325, %v3327
        %v3329 = vrot.slane %v3321, %v3328
        %v3331 = vunpack.c.l.s4 1934713408
        %v3332 = vunpack.c.0.s8 %v3331
        %v3333 = vlaneseq
        %v3334 = vshrl.u32 %v3333, 7
        %v3335 = vsub.s32 %v3332, %v3334
        %v3336 = vrot.slane %v3322, %v3335
        %v3337 = vcombine.high %v3313, 0.0
        %v3338 = vcombine.high %v3320, 0.0
        %v3339 = vcombine.high %v3329, 0.0
        %v3340 = vcombine.high %v3336, 0.0
        %v3341 = vcombine.low %v3313, %v3320
        %v3343 = vunpack.c.l.s4 1983009808
        %v3344 = vunpack.c.0.s8 %v3343
        %v3345 = vlaneseq
        %v3346 = vshrl.u32 %v3345, 7
        %v3347 = vsub.s32 %v3344, %v3346
        %v3348 = vrot.slane %v3341, %v3347
        %v3349 = vcombine.low %v3337, %v3338
        %v3351 = vunpack.c.l.s4 1983009808
        %v3352 = vunpack.c.0.s8 %v3351
        %v3353 = vlaneseq
        %v3354 = vshrl.u32 %v3353, 7
        %v3355 = vsub.s32 %v3352, %v3354
        %v3356 = vrot.slane %v3349, %v3355
        %v3357 = vcombine.low %v3329, %v3336
        %v3359 = vunpack.c.l.s4 1983009808
        %v3360 = vunpack.c.0.s8 %v3359
        %v3361 = vlaneseq
        %v3362 = vshrl.u32 %v3361, 7
        %v3363 = vsub.s32 %v3360, %v3362
        %v3364 = vrot.slane %v3357, %v3363
        %v3365 = vcombine.low %v3339, %v3340
        %v3367 = vunpack.c.l.s4 1983009808
        %v3368 = vunpack.c.0.s8 %v3367
        %v3369 = vlaneseq
        %v3370 = vshrl.u32 %v3369, 7
        %v3371 = vsub.s32 %v3368, %v3370
        %v3372 = vrot.slane %v3365, %v3371
        %v3373 = vcombine.low %v3348, %v3356
        %v3374 = vcombine.high %v3348, %v3356
        %v3376 = vunpack.c.l.s4 1934713408
        %v3377 = vunpack.c.0.s8 %v3376
        %v3378 = vlaneseq
        %v3379 = vshrl.u32 %v3378, 7
        %v3380 = vsub.s32 %v3377, %v3379
        %v3381 = vrot.slane %v3373, %v3380
        %v3383 = vunpack.c.l.s4 1934713408
        %v3384 = vunpack.c.0.s8 %v3383
        %v3385 = vlaneseq
        %v3386 = vshrl.u32 %v3385, 7
        %v3387 = vsub.s32 %v3384, %v3386
        %v3388 = vrot.slane %v3374, %v3387
        %v3389 = vcombine.low %v3364, %v3372
        %v3390 = vcombine.high %v3364, %v3372
        %v3392 = vunpack.c.l.s4 1934713408
        %v3393 = vunpack.c.0.s8 %v3392
        %v3394 = vlaneseq
        %v3395 = vshrl.u32 %v3394, 7
        %v3396 = vsub.s32 %v3393, %v3395
        %v3397 = vrot.slane %v3389, %v3396
        %v3399 = vunpack.c.l.s4 1934713408
        %v3400 = vunpack.c.0.s8 %v3399
        %v3401 = vlaneseq
        %v3402 = vshrl.u32 %v3401, 7
        %v3403 = vsub.s32 %v3400, %v3402
        %v3404 = vrot.slane %v3390, %v3403
        %v3405 = vcombine.low %v3381, %v3397
        %v3406 = vcombine.high %v3381, %v3397
        %v3407 = vcombine.low %v3388, %v3404
        %v3408 = vcombine.high %v3388, %v3404
        %3410 = vrot.lane.b32.xlu0 %v3164, 96
        %v3411 = vpop.permute.xlu0 %3410
        %3413 = vrot.lane.b32.xlu0 %v3164, 64
        %v3414 = vpop.permute.xlu0 %3413
        %3416 = vrot.lane.b32.xlu0 %v3164, 32
        %v3417 = vpop.permute.xlu0 %3416
        %v3419 = vcombine.low %v3164, %v3414
        %v3420 = vcombine.high %v3164, %v3414
        %v3422 = vunpack.c.l.s4 1983009808
        %v3423 = vunpack.c.0.s8 %v3422
        %v3424 = vlaneseq
        %v3425 = vshrl.u32 %v3424, 7
        %v3426 = vsub.s32 %v3423, %v3425
        %v3427 = vrot.slane %v3419, %v3426
        %v3429 = vunpack.c.l.s4 1983009808
        %v3430 = vunpack.c.0.s8 %v3429
        %v3431 = vlaneseq
        %v3432 = vshrl.u32 %v3431, 7
        %v3433 = vsub.s32 %v3430, %v3432
        %v3434 = vrot.slane %v3420, %v3433
        %v3435 = vcombine.low %v3411, %v3417
        %v3436 = vcombine.high %v3411, %v3417
        %v3438 = vunpack.c.l.s4 1983009808
        %v3439 = vunpack.c.0.s8 %v3438
        %v3440 = vlaneseq
        %v3441 = vshrl.u32 %v3440, 7
        %v3442 = vsub.s32 %v3439, %v3441
        %v3443 = vrot.slane %v3435, %v3442
        %v3445 = vunpack.c.l.s4 1983009808
        %v3446 = vunpack.c.0.s8 %v3445
        %v3447 = vlaneseq
        %v3448 = vshrl.u32 %v3447, 7
        %v3449 = vsub.s32 %v3446, %v3448
        %v3450 = vrot.slane %v3436, %v3449
        %v3451 = vcombine.low %v3427, %v3443
        %v3452 = vcombine.high %v3427, %v3443
        %v3454 = vunpack.c.l.s4 1934713408
        %v3455 = vunpack.c.0.s8 %v3454
        %v3456 = vlaneseq
        %v3457 = vshrl.u32 %v3456, 7
        %v3458 = vsub.s32 %v3455, %v3457
        %v3459 = vrot.slane %v3451, %v3458
        %v3461 = vunpack.c.l.s4 1934713408
        %v3462 = vunpack.c.0.s8 %v3461
        %v3463 = vlaneseq
        %v3464 = vshrl.u32 %v3463, 7
        %v3465 = vsub.s32 %v3462, %v3464
        %v3466 = vrot.slane %v3452, %v3465
        %v3467 = vcombine.low %v3434, %v3450
        %v3468 = vcombine.high %v3434, %v3450
        %v3470 = vunpack.c.l.s4 1934713408
        %v3471 = vunpack.c.0.s8 %v3470
        %v3472 = vlaneseq
        %v3473 = vshrl.u32 %v3472, 7
        %v3474 = vsub.s32 %v3471, %v3473
        %v3475 = vrot.slane %v3467, %v3474
        %v3477 = vunpack.c.l.s4 1934713408
        %v3478 = vunpack.c.0.s8 %v3477
        %v3479 = vlaneseq
        %v3480 = vshrl.u32 %v3479, 7
        %v3481 = vsub.s32 %v3478, %v3480
        %v3482 = vrot.slane %v3468, %v3481
        %v3483 = vcombine.high %v3459, 0.0
        %v3484 = vcombine.high %v3466, 0.0
        %v3485 = vcombine.high %v3475, 0.0
        %v3486 = vcombine.high %v3482, 0.0
        %v3487 = vcombine.low %v3459, %v3466
        %v3489 = vunpack.c.l.s4 1983009808
        %v3490 = vunpack.c.0.s8 %v3489
        %v3491 = vlaneseq
        %v3492 = vshrl.u32 %v3491, 7
        %v3493 = vsub.s32 %v3490, %v3492
        %v3494 = vrot.slane %v3487, %v3493
        %v3495 = vcombine.low %v3483, %v3484
        %v3497 = vunpack.c.l.s4 1983009808
        %v3498 = vunpack.c.0.s8 %v3497
        %v3499 = vlaneseq
        %v3500 = vshrl.u32 %v3499, 7
        %v3501 = vsub.s32 %v3498, %v3500
        %v3502 = vrot.slane %v3495, %v3501
        %v3503 = vcombine.low %v3475, %v3482
        %v3505 = vunpack.c.l.s4 1983009808
        %v3506 = vunpack.c.0.s8 %v3505
        %v3507 = vlaneseq
        %v3508 = vshrl.u32 %v3507, 7
        %v3509 = vsub.s32 %v3506, %v3508
        %v3510 = vrot.slane %v3503, %v3509
        %v3511 = vcombine.low %v3485, %v3486
        %v3513 = vunpack.c.l.s4 1983009808
        %v3514 = vunpack.c.0.s8 %v3513
        %v3515 = vlaneseq
        %v3516 = vshrl.u32 %v3515, 7
        %v3517 = vsub.s32 %v3514, %v3516
        %v3518 = vrot.slane %v3511, %v3517
        %v3519 = vcombine.low %v3494, %v3502
        %v3520 = vcombine.high %v3494, %v3502
        %v3522 = vunpack.c.l.s4 1934713408
        %v3523 = vunpack.c.0.s8 %v3522
        %v3524 = vlaneseq
        %v3525 = vshrl.u32 %v3524, 7
        %v3526 = vsub.s32 %v3523, %v3525
        %v3527 = vrot.slane %v3519, %v3526
        %v3529 = vunpack.c.l.s4 1934713408
        %v3530 = vunpack.c.0.s8 %v3529
        %v3531 = vlaneseq
        %v3532 = vshrl.u32 %v3531, 7
        %v3533 = vsub.s32 %v3530, %v3532
        %v3534 = vrot.slane %v3520, %v3533
        %v3535 = vcombine.low %v3510, %v3518
        %v3536 = vcombine.high %v3510, %v3518
        %v3538 = vunpack.c.l.s4 1934713408
        %v3539 = vunpack.c.0.s8 %v3538
        %v3540 = vlaneseq
        %v3541 = vshrl.u32 %v3540, 7
        %v3542 = vsub.s32 %v3539, %v3541
        %v3543 = vrot.slane %v3535, %v3542
        %v3545 = vunpack.c.l.s4 1934713408
        %v3546 = vunpack.c.0.s8 %v3545
        %v3547 = vlaneseq
        %v3548 = vshrl.u32 %v3547, 7
        %v3549 = vsub.s32 %v3546, %v3548
        %v3550 = vrot.slane %v3536, %v3549
        %v3551 = vcombine.low %v3527, %v3543
        %v3552 = vcombine.high %v3527, %v3543
        %v3553 = vcombine.low %v3534, %v3550
        %v3554 = vcombine.high %v3534, %v3550
        %3556 = vrot.lane.b32.xlu0 %v3258, 96
        %v3557 = vpop.permute.xlu0 %3556
        %3559 = vrot.lane.b32.xlu0 %v3258, 64
        %v3560 = vpop.permute.xlu0 %3559
        %3562 = vrot.lane.b32.xlu0 %v3258, 32
        %v3563 = vpop.permute.xlu0 %3562
        %v3565 = vcombine.low %v3258, %v3560
        %v3566 = vcombine.high %v3258, %v3560
        %v3568 = vunpack.c.l.s4 1983009808
        %v3569 = vunpack.c.0.s8 %v3568
        %v3570 = vlaneseq
        %v3571 = vshrl.u32 %v3570, 7
        %v3572 = vsub.s32 %v3569, %v3571
        %v3573 = vrot.slane %v3565, %v3572
        %v3575 = vunpack.c.l.s4 1983009808
        %v3576 = vunpack.c.0.s8 %v3575
        %v3577 = vlaneseq
        %v3578 = vshrl.u32 %v3577, 7
        %v3579 = vsub.s32 %v3576, %v3578
        %v3580 = vrot.slane %v3566, %v3579
        %v3581 = vcombine.low %v3557, %v3563
        %v3582 = vcombine.high %v3557, %v3563
        %v3584 = vunpack.c.l.s4 1983009808
        %v3585 = vunpack.c.0.s8 %v3584
        %v3586 = vlaneseq
        %v3587 = vshrl.u32 %v3586, 7
        %v3588 = vsub.s32 %v3585, %v3587
        %v3589 = vrot.slane %v3581, %v3588
        %v3591 = vunpack.c.l.s4 1983009808
        %v3592 = vunpack.c.0.s8 %v3591
        %v3593 = vlaneseq
        %v3594 = vshrl.u32 %v3593, 7
        %v3595 = vsub.s32 %v3592, %v3594
        %v3596 = vrot.slane %v3582, %v3595
        %v3597 = vcombine.low %v3573, %v3589
        %v3598 = vcombine.high %v3573, %v3589
        %v3600 = vunpack.c.l.s4 1934713408
        %v3601 = vunpack.c.0.s8 %v3600
        %v3602 = vlaneseq
        %v3603 = vshrl.u32 %v3602, 7
        %v3604 = vsub.s32 %v3601, %v3603
        %v3605 = vrot.slane %v3597, %v3604
        %v3607 = vunpack.c.l.s4 1934713408
        %v3608 = vunpack.c.0.s8 %v3607
        %v3609 = vlaneseq
        %v3610 = vshrl.u32 %v3609, 7
        %v3611 = vsub.s32 %v3608, %v3610
        %v3612 = vrot.slane %v3598, %v3611
        %v3613 = vcombine.low %v3580, %v3596
        %v3614 = vcombine.high %v3580, %v3596
        %v3616 = vunpack.c.l.s4 1934713408
        %v3617 = vunpack.c.0.s8 %v3616
        %v3618 = vlaneseq
        %v3619 = vshrl.u32 %v3618, 7
        %v3620 = vsub.s32 %v3617, %v3619
        %v3621 = vrot.slane %v3613, %v3620
        %v3623 = vunpack.c.l.s4 1934713408
        %v3624 = vunpack.c.0.s8 %v3623
        %v3625 = vlaneseq
        %v3626 = vshrl.u32 %v3625, 7
        %v3627 = vsub.s32 %v3624, %v3626
        %v3628 = vrot.slane %v3614, %v3627
        %v3629 = vcombine.high %v3605, 0.0
        %v3630 = vcombine.high %v3612, 0.0
        %v3631 = vcombine.high %v3621, 0.0
        %v3632 = vcombine.high %v3628, 0.0
        %v3633 = vcombine.low %v3605, %v3612
        %v3635 = vunpack.c.l.s4 1983009808
        %v3636 = vunpack.c.0.s8 %v3635
        %v3637 = vlaneseq
        %v3638 = vshrl.u32 %v3637, 7
        %v3639 = vsub.s32 %v3636, %v3638
        %v3640 = vrot.slane %v3633, %v3639
        %v3641 = vcombine.low %v3629, %v3630
        %v3643 = vunpack.c.l.s4 1983009808
        %v3644 = vunpack.c.0.s8 %v3643
        %v3645 = vlaneseq
        %v3646 = vshrl.u32 %v3645, 7
        %v3647 = vsub.s32 %v3644, %v3646
        %v3648 = vrot.slane %v3641, %v3647
        %v3649 = vcombine.low %v3621, %v3628
        %v3651 = vunpack.c.l.s4 1983009808
        %v3652 = vunpack.c.0.s8 %v3651
        %v3653 = vlaneseq
        %v3654 = vshrl.u32 %v3653, 7
        %v3655 = vsub.s32 %v3652, %v3654
        %v3656 = vrot.slane %v3649, %v3655
        %v3657 = vcombine.low %v3631, %v3632
        %v3659 = vunpack.c.l.s4 1983009808
        %v3660 = vunpack.c.0.s8 %v3659
        %v3661 = vlaneseq
        %v3662 = vshrl.u32 %v3661, 7
        %v3663 = vsub.s32 %v3660, %v3662
        %v3664 = vrot.slane %v3657, %v3663
        %v3665 = vcombine.low %v3640, %v3648
        %v3666 = vcombine.high %v3640, %v3648
        %v3668 = vunpack.c.l.s4 1934713408
        %v3669 = vunpack.c.0.s8 %v3668
        %v3670 = vlaneseq
        %v3671 = vshrl.u32 %v3670, 7
        %v3672 = vsub.s32 %v3669, %v3671
        %v3673 = vrot.slane %v3665, %v3672
        %v3675 = vunpack.c.l.s4 1934713408
        %v3676 = vunpack.c.0.s8 %v3675
        %v3677 = vlaneseq
        %v3678 = vshrl.u32 %v3677, 7
        %v3679 = vsub.s32 %v3676, %v3678
        %v3680 = vrot.slane %v3666, %v3679
        %v3681 = vcombine.low %v3656, %v3664
        %v3682 = vcombine.high %v3656, %v3664
        %v3684 = vunpack.c.l.s4 1934713408
        %v3685 = vunpack.c.0.s8 %v3684
        %v3686 = vlaneseq
        %v3687 = vshrl.u32 %v3686, 7
        %v3688 = vsub.s32 %v3685, %v3687
        %v3689 = vrot.slane %v3681, %v3688
        %v3691 = vunpack.c.l.s4 1934713408
        %v3692 = vunpack.c.0.s8 %v3691
        %v3693 = vlaneseq
        %v3694 = vshrl.u32 %v3693, 7
        %v3695 = vsub.s32 %v3692, %v3694
        %v3696 = vrot.slane %v3682, %v3695
        %v3697 = vcombine.low %v3673, %v3689
        %v3698 = vcombine.high %v3673, %v3689
        %v3699 = vcombine.low %v3680, %v3696
        %v3700 = vcombine.high %v3680, %v3696
        %v3701 = vpack.c.bf16 %v3405, %v3405
        %v3702 = vpack.c.bf16 %v3406, %v3406
        %v3703 = vpack.c.bf16 %v3407, %v3407
        %v3704 = vpack.c.bf16 %v3408, %v3408
        %v3705 = vpack.c.bf16 %v3551, %v3551
        %v3706 = vpack.c.bf16 %v3552, %v3552
        %v3707 = vpack.c.bf16 %v3553, %v3553
        %v3708 = vpack.c.bf16 %v3554, %v3554
        %v3710 = vsel %vm2191, %v3701, 0
        %v3713 = vsel %vm2191, %v3705, 0
        %3715 = vmatprep.subr.bf16.mxu0 0
        %3716 = vmatpush1.bf16.xpose.msra.mxu0 %v3713
        %3717 = vmatprep.subr.bf16.mxu0 0
        %3718 = vmatpush1.bf16.xpose.msra.mxu0 0
        %3719 = vmatprep.subr.bf16.mxu0 0
        %3720 = vmatpush1.bf16.xpose.msra.mxu0 0
        %3721 = vmatprep.subr.bf16.mxu0 0
        %3722 = vmatpush1.bf16.xpose.msra.mxu0 0
        %3723 = vmatprep.subr.bf16.mxu0 0
        %3724 = vmatpush1.bf16.xpose.msra.mxu0 0
        %3725 = vmatprep.subr.bf16.mxu0 0
        %3726 = vmatpush1.bf16.xpose.msra.mxu0 0
        %3727 = vmatprep.subr.bf16.mxu0 0
        %3728 = vmatpush1.bf16.xpose.msra.mxu0 0
        %3729 = vmatprep.subr.bf16.mxu0 0
        %3730 = vmatpush1.bf16.xpose.msra.mxu0 0
        %3731 = vmatprep.subr.bf16.mxu0 0
        %3732 = vmatpush1.bf16.xpose.msra.mxu0 0
        %3733 = vmatprep.subr.bf16.mxu0 0
        %3734 = vmatpush1.bf16.xpose.msra.mxu0 0
        %3735 = vmatprep.subr.bf16.mxu0 0
        %3736 = vmatpush1.bf16.xpose.msra.mxu0 0
        %3737 = vmatprep.subr.bf16.mxu0 0
        %3738 = vmatpush1.bf16.xpose.msra.mxu0 0
        %3739 = vmatprep.subr.bf16.mxu0 0
        %3740 = vmatpush1.bf16.xpose.msra.mxu0 0
        %3741 = vmatprep.subr.bf16.mxu0 0
        %3742 = vmatpush1.bf16.xpose.msra.mxu0 0
        %3743 = vmatprep.subr.bf16.mxu0 0
        %3744 = vmatpush1.bf16.xpose.msra.mxu0 0
        %3745 = vmatprep.subr.bf16.mxu0 0
        %3746 = vmatpush1.bf16.xpose.msra.mxu0 0
        %3747 = vmatprep.mubr.bf16.mxu0 0
        %3748 = vmatmul.mubr.bf16.gmra.mrb[0].mxu0 %v3710
        %v3749 = vpop.f32.mrb[0].mxu0
        %v3750 = vadd.f32 0.0, %v3749
        %v3751 = vpop.f32.mrb[0].mxu0
        %v3752 = vpop.f32.mrb[0].mxu0
        %v3753 = vpop.f32.mrb[0].mxu0
        %3754 = vdwg.mxu0
        %v3756 = vsel %vm2191, %v3702, 0
        %v3759 = vsel %vm2191, %v3706, 0
        %3761 = vmatprep.subr.bf16.mxu0 0
        %3762 = vmatpush1.bf16.xpose.msra.mxu0 %v3759
        %3763 = vmatprep.subr.bf16.mxu0 0
        %3764 = vmatpush1.bf16.xpose.msra.mxu0 0
        %3765 = vmatprep.subr.bf16.mxu0 0
        %3766 = vmatpush1.bf16.xpose.msra.mxu0 0
        %3767 = vmatprep.subr.bf16.mxu0 0
        %3768 = vmatpush1.bf16.xpose.msra.mxu0 0
        %3769 = vmatprep.subr.bf16.mxu0 0
        %3770 = vmatpush1.bf16.xpose.msra.mxu0 0
        %3771 = vmatprep.subr.bf16.mxu0 0
        %3772 = vmatpush1.bf16.xpose.msra.mxu0 0
        %3773 = vmatprep.subr.bf16.mxu0 0
        %3774 = vmatpush1.bf16.xpose.msra.mxu0 0
        %3775 = vmatprep.subr.bf16.mxu0 0
        %3776 = vmatpush1.bf16.xpose.msra.mxu0 0
        %3777 = vmatprep.subr.bf16.mxu0 0
        %3778 = vmatpush1.bf16.xpose.msra.mxu0 0
        %3779 = vmatprep.subr.bf16.mxu0 0
        %3780 = vmatpush1.bf16.xpose.msra.mxu0 0
        %3781 = vmatprep.subr.bf16.mxu0 0
        %3782 = vmatpush1.bf16.xpose.msra.mxu0 0
        %3783 = vmatprep.subr.bf16.mxu0 0
        %3784 = vmatpush1.bf16.xpose.msra.mxu0 0
        %3785 = vmatprep.subr.bf16.mxu0 0
        %3786 = vmatpush1.bf16.xpose.msra.mxu0 0
        %3787 = vmatprep.subr.bf16.mxu0 0
        %3788 = vmatpush1.bf16.xpose.msra.mxu0 0
        %3789 = vmatprep.subr.bf16.mxu0 0
        %3790 = vmatpush1.bf16.xpose.msra.mxu0 0
        %3791 = vmatprep.subr.bf16.mxu0 0
        %3792 = vmatpush1.bf16.xpose.msra.mxu0 0
        %3793 = vmatprep.mubr.bf16.mxu0 0
        %3794 = vmatmul.mubr.bf16.gmra.mrb[0].mxu0 %v3756
        %v3795 = vpop.f32.mrb[0].mxu0
        %v3796 = vadd.f32 0.0, %v3795
        %v3797 = vpop.f32.mrb[0].mxu0
        %v3798 = vpop.f32.mrb[0].mxu0
        %v3799 = vpop.f32.mrb[0].mxu0
        %3800 = vdwg.mxu0
        %v3802 = vsel %vm2191, %v3703, 0
        %v3805 = vsel %vm2191, %v3707, 0
        %3807 = vmatprep.subr.bf16.mxu0 0
        %3808 = vmatpush1.bf16.xpose.msra.mxu0 %v3805
        %3809 = vmatprep.subr.bf16.mxu0 0
        %3810 = vmatpush1.bf16.xpose.msra.mxu0 0
        %3811 = vmatprep.subr.bf16.mxu0 0
        %3812 = vmatpush1.bf16.xpose.msra.mxu0 0
        %3813 = vmatprep.subr.bf16.mxu0 0
        %3814 = vmatpush1.bf16.xpose.msra.mxu0 0
        %3815 = vmatprep.subr.bf16.mxu0 0
        %3816 = vmatpush1.bf16.xpose.msra.mxu0 0
        %3817 = vmatprep.subr.bf16.mxu0 0
        %3818 = vmatpush1.bf16.xpose.msra.mxu0 0
        %3819 = vmatprep.subr.bf16.mxu0 0
        %3820 = vmatpush1.bf16.xpose.msra.mxu0 0
        %3821 = vmatprep.subr.bf16.mxu0 0
        %3822 = vmatpush1.bf16.xpose.msra.mxu0 0
        %3823 = vmatprep.subr.bf16.mxu0 0
        %3824 = vmatpush1.bf16.xpose.msra.mxu0 0
        %3825 = vmatprep.subr.bf16.mxu0 0
        %3826 = vmatpush1.bf16.xpose.msra.mxu0 0
        %3827 = vmatprep.subr.bf16.mxu0 0
        %3828 = vmatpush1.bf16.xpose.msra.mxu0 0
        %3829 = vmatprep.subr.bf16.mxu0 0
        %3830 = vmatpush1.bf16.xpose.msra.mxu0 0
        %3831 = vmatprep.subr.bf16.mxu0 0
        %3832 = vmatpush1.bf16.xpose.msra.mxu0 0
        %3833 = vmatprep.subr.bf16.mxu0 0
        %3834 = vmatpush1.bf16.xpose.msra.mxu0 0
        %3835 = vmatprep.subr.bf16.mxu0 0
        %3836 = vmatpush1.bf16.xpose.msra.mxu0 0
        %3837 = vmatprep.subr.bf16.mxu0 0
        %3838 = vmatpush1.bf16.xpose.msra.mxu0 0
        %3839 = vmatprep.mubr.bf16.mxu0 0
        %3840 = vmatmul.mubr.bf16.gmra.mrb[0].mxu0 %v3802
        %v3841 = vpop.f32.mrb[0].mxu0
        %v3842 = vadd.f32 0.0, %v3841
        %v3843 = vpop.f32.mrb[0].mxu0
        %v3844 = vpop.f32.mrb[0].mxu0
        %v3845 = vpop.f32.mrb[0].mxu0
        %3846 = vdwg.mxu0
        %v3848 = vsel %vm2191, %v3704, 0
        %v3851 = vsel %vm2191, %v3708, 0
        %3853 = vmatprep.subr.bf16.mxu0 0
        %3854 = vmatpush1.bf16.xpose.msra.mxu0 %v3851
        %3855 = vmatprep.subr.bf16.mxu0 0
        %3856 = vmatpush1.bf16.xpose.msra.mxu0 0
        %3857 = vmatprep.subr.bf16.mxu0 0
        %3858 = vmatpush1.bf16.xpose.msra.mxu0 0
        %3859 = vmatprep.subr.bf16.mxu0 0
        %3860 = vmatpush1.bf16.xpose.msra.mxu0 0
        %3861 = vmatprep.subr.bf16.mxu0 0
        %3862 = vmatpush1.bf16.xpose.msra.mxu0 0
        %3863 = vmatprep.subr.bf16.mxu0 0
        %3864 = vmatpush1.bf16.xpose.msra.mxu0 0
        %3865 = vmatprep.subr.bf16.mxu0 0
        %3866 = vmatpush1.bf16.xpose.msra.mxu0 0
        %3867 = vmatprep.subr.bf16.mxu0 0
        %3868 = vmatpush1.bf16.xpose.msra.mxu0 0
        %3869 = vmatprep.subr.bf16.mxu0 0
        %3870 = vmatpush1.bf16.xpose.msra.mxu0 0
        %3871 = vmatprep.subr.bf16.mxu0 0
        %3872 = vmatpush1.bf16.xpose.msra.mxu0 0
        %3873 = vmatprep.subr.bf16.mxu0 0
        %3874 = vmatpush1.bf16.xpose.msra.mxu0 0
        %3875 = vmatprep.subr.bf16.mxu0 0
        %3876 = vmatpush1.bf16.xpose.msra.mxu0 0
        %3877 = vmatprep.subr.bf16.mxu0 0
        %3878 = vmatpush1.bf16.xpose.msra.mxu0 0
        %3879 = vmatprep.subr.bf16.mxu0 0
        %3880 = vmatpush1.bf16.xpose.msra.mxu0 0
        %3881 = vmatprep.subr.bf16.mxu0 0
        %3882 = vmatpush1.bf16.xpose.msra.mxu0 0
        %3883 = vmatprep.subr.bf16.mxu0 0
        %3884 = vmatpush1.bf16.xpose.msra.mxu0 0
        %3885 = vmatprep.mubr.bf16.mxu0 0
        %3886 = vmatmul.mubr.bf16.gmra.mrb[0].mxu0 %v3848
        %v3887 = vpop.f32.mrb[0].mxu0
        %v3888 = vadd.f32 0.0, %v3887
        %v3889 = vpop.f32.mrb[0].mxu0
        %v3890 = vpop.f32.mrb[0].mxu0
        %v3891 = vpop.f32.mrb[0].mxu0
        %3892 = vdwg.mxu0
        %v3893 = vsel %vm1354, 16843009, 0
        %v3894 = vunpack.c.0.s8 %v3893
        %vm3895 = vcmp.ne.s32.totalorder %v3894, 0
        %v3896 = vsel %vm3895, 1, 0
        %vm3897 = vcmp.eq.s32.totalorder %v3896, 1
        %v3898 = vsel %vm3897, %v3750, -1e+09
        %v3899 = vsel %vm3897, %v3796, -1e+09
        %v3900 = vsel %vm3897, %v3842, -1e+09
        %v3901 = vsel %vm3897, %v3888, -1e+09
        %v3902 = vsel %vm2385, %v3898, -inf
        %3903 = vmax.xlane.f32.xlu0 %v3902
        %v3904 = vpop.xlane.xlu0 %3903
        %v3905 = vsel %vm2385, %v3899, -inf
        %3906 = vmax.xlane.f32.xlu0 %v3905
        %v3907 = vpop.xlane.xlu0 %3906
        %v3908 = vsel %vm2385, %v3900, -inf
        %3909 = vmax.xlane.f32.xlu0 %v3908
        %v3910 = vpop.xlane.xlu0 %3909
        %v3911 = vsel %vm2385, %v3901, -inf
        %3912 = vmax.xlane.f32.xlu0 %v3911
        %v3913 = vpop.xlane.xlu0 %3912
        %v3914 = vsub.f32 %v3898, %v3904
        %v3915 = vsub.f32 %v3899, %v3907
        %v3916 = vsub.f32 %v3900, %v3910
        %v3917 = vsub.f32 %v3901, %v3913
        %v3918 = vmul.f32 %v3914, 1.442695
        %v3919 = vpow.pop %v3918
        %v3920 = vmul.f32 %v3915, 1.442695
        %v3921 = vpow.pop %v3920
        %v3922 = vmul.f32 %v3916, 1.442695
        %v3923 = vpow.pop %v3922
        %v3924 = vmul.f32 %v3917, 1.442695
        %v3925 = vpow.pop %v3924
        %v3926 = vsel %vm2385, %v3919, 0.0
        %3927 = vadd.xlane.f32.xlu0 %v3926
        %v3928 = vpop.xlane.xlu0 %3927
        %v3929 = vsel %vm2385, %v3921, 0.0
        %3930 = vadd.xlane.f32.xlu0 %v3929
        %v3931 = vpop.xlane.xlu0 %3930
        %v3932 = vsel %vm2385, %v3923, 0.0
        %3933 = vadd.xlane.f32.xlu0 %v3932
        %v3934 = vpop.xlane.xlu0 %3933
        %v3935 = vsel %vm2385, %v3925, 0.0
        %3936 = vadd.xlane.f32.xlu0 %v3935
        %v3937 = vpop.xlane.xlu0 %3936
        %v3938 = vrcp.pop %v3928
        %v3939 = vrcp.pop %v3931
        %v3940 = vrcp.pop %v3934
        %v3941 = vrcp.pop %v3937
        %v3942 = vmul.f32 %v3919, %v3938
        %v3943 = vmul.f32 %v3921, %v3939
        %v3944 = vmul.f32 %v3923, %v3940
        %v3945 = vmul.f32 %v3925, %v3941
        %v3946 = vpack.c.bf16 %v3942, %v3942
        %v3947 = vpack.c.bf16 %v3943, %v3943
        %v3948 = vpack.c.bf16 %v3944, %v3944
        %v3949 = vpack.c.bf16 %v3945, %v3945
        %v3950 = vpack.c.bf16 %v3697, %v3697
        %v3951 = vpack.c.bf16 %v3698, %v3698
        %v3952 = vpack.c.bf16 %v3699, %v3699
        %v3953 = vpack.c.bf16 %v3700, %v3700
        %v3955 = vsel %vm2385, %v3946, 0
        %v3958 = vsel %vm2441, %v3950, 0
        %3960 = vmatprep.subr.bf16.mxu0 0
        %3961 = vmatpush1.bf16.msra.mxu0 %v3958
        %3962 = vmatprep.subr.bf16.mxu0 0
        %3963 = vmatpush1.bf16.msra.mxu0 0
        %3964 = vmatprep.subr.bf16.mxu0 0
        %3965 = vmatpush1.bf16.msra.mxu0 0
        %3966 = vmatprep.subr.bf16.mxu0 0
        %3967 = vmatpush1.bf16.msra.mxu0 0
        %3968 = vmatprep.subr.bf16.mxu0 0
        %3969 = vmatpush1.bf16.msra.mxu0 0
        %3970 = vmatprep.subr.bf16.mxu0 0
        %3971 = vmatpush1.bf16.msra.mxu0 0
        %3972 = vmatprep.subr.bf16.mxu0 0
        %3973 = vmatpush1.bf16.msra.mxu0 0
        %3974 = vmatprep.subr.bf16.mxu0 0
        %3975 = vmatpush1.bf16.msra.mxu0 0
        %3976 = vmatprep.subr.bf16.mxu0 0
        %3977 = vmatpush1.bf16.msra.mxu0 0
        %3978 = vmatprep.subr.bf16.mxu0 0
        %3979 = vmatpush1.bf16.msra.mxu0 0
        %3980 = vmatprep.subr.bf16.mxu0 0
        %3981 = vmatpush1.bf16.msra.mxu0 0
        %3982 = vmatprep.subr.bf16.mxu0 0
        %3983 = vmatpush1.bf16.msra.mxu0 0
        %3984 = vmatprep.subr.bf16.mxu0 0
        %3985 = vmatpush1.bf16.msra.mxu0 0
        %3986 = vmatprep.subr.bf16.mxu0 0
        %3987 = vmatpush1.bf16.msra.mxu0 0
        %3988 = vmatprep.subr.bf16.mxu0 0
        %3989 = vmatpush1.bf16.msra.mxu0 0
        %3990 = vmatprep.subr.bf16.mxu0 0
        %3991 = vmatpush1.bf16.msra.mxu0 0
        %3992 = vmatprep.mubr.bf16.mxu0 0
        %3993 = vmatmul.mubr.bf16.gmra.mrb[0].mxu0 %v3955
        %v3994 = vpop.f32.mrb[0].mxu0
        %v3995 = vadd.f32 0.0, %v3994
        %v3996 = vpop.f32.mrb[0].mxu0
        %v3997 = vpop.f32.mrb[0].mxu0
        %v3998 = vpop.f32.mrb[0].mxu0
        %3999 = vdwg.mxu0
        %v4001 = vsel %vm2385, %v3947, 0
        %v4004 = vsel %vm2441, %v3951, 0
        %4006 = vmatprep.subr.bf16.mxu0 0
        %4007 = vmatpush1.bf16.msra.mxu0 %v4004
        %4008 = vmatprep.subr.bf16.mxu0 0
        %4009 = vmatpush1.bf16.msra.mxu0 0
        %4010 = vmatprep.subr.bf16.mxu0 0
        %4011 = vmatpush1.bf16.msra.mxu0 0
        %4012 = vmatprep.subr.bf16.mxu0 0
        %4013 = vmatpush1.bf16.msra.mxu0 0
        %4014 = vmatprep.subr.bf16.mxu0 0
        %4015 = vmatpush1.bf16.msra.mxu0 0
        %4016 = vmatprep.subr.bf16.mxu0 0
        %4017 = vmatpush1.bf16.msra.mxu0 0
        %4018 = vmatprep.subr.bf16.mxu0 0
        %4019 = vmatpush1.bf16.msra.mxu0 0
        %4020 = vmatprep.subr.bf16.mxu0 0
        %4021 = vmatpush1.bf16.msra.mxu0 0
        %4022 = vmatprep.subr.bf16.mxu0 0
        %4023 = vmatpush1.bf16.msra.mxu0 0
        %4024 = vmatprep.subr.bf16.mxu0 0
        %4025 = vmatpush1.bf16.msra.mxu0 0
        %4026 = vmatprep.subr.bf16.mxu0 0
        %4027 = vmatpush1.bf16.msra.mxu0 0
        %4028 = vmatprep.subr.bf16.mxu0 0
        %4029 = vmatpush1.bf16.msra.mxu0 0
        %4030 = vmatprep.subr.bf16.mxu0 0
        %4031 = vmatpush1.bf16.msra.mxu0 0
        %4032 = vmatprep.subr.bf16.mxu0 0
        %4033 = vmatpush1.bf16.msra.mxu0 0
        %4034 = vmatprep.subr.bf16.mxu0 0
        %4035 = vmatpush1.bf16.msra.mxu0 0
        %4036 = vmatprep.subr.bf16.mxu0 0
        %4037 = vmatpush1.bf16.msra.mxu0 0
        %4038 = vmatprep.mubr.bf16.mxu0 0
        %4039 = vmatmul.mubr.bf16.gmra.mrb[0].mxu0 %v4001
        %v4040 = vpop.f32.mrb[0].mxu0
        %v4041 = vadd.f32 0.0, %v4040
        %v4042 = vpop.f32.mrb[0].mxu0
        %v4043 = vpop.f32.mrb[0].mxu0
        %v4044 = vpop.f32.mrb[0].mxu0
        %4045 = vdwg.mxu0
        %v4047 = vsel %vm2385, %v3948, 0
        %v4050 = vsel %vm2441, %v3952, 0
        %4052 = vmatprep.subr.bf16.mxu0 0
        %4053 = vmatpush1.bf16.msra.mxu0 %v4050
        %4054 = vmatprep.subr.bf16.mxu0 0
        %4055 = vmatpush1.bf16.msra.mxu0 0
        %4056 = vmatprep.subr.bf16.mxu0 0
        %4057 = vmatpush1.bf16.msra.mxu0 0
        %4058 = vmatprep.subr.bf16.mxu0 0
        %4059 = vmatpush1.bf16.msra.mxu0 0
        %4060 = vmatprep.subr.bf16.mxu0 0
        %4061 = vmatpush1.bf16.msra.mxu0 0
        %4062 = vmatprep.subr.bf16.mxu0 0
        %4063 = vmatpush1.bf16.msra.mxu0 0
        %4064 = vmatprep.subr.bf16.mxu0 0
        %4065 = vmatpush1.bf16.msra.mxu0 0
        %4066 = vmatprep.subr.bf16.mxu0 0
        %4067 = vmatpush1.bf16.msra.mxu0 0
        %4068 = vmatprep.subr.bf16.mxu0 0
        %4069 = vmatpush1.bf16.msra.mxu0 0
        %4070 = vmatprep.subr.bf16.mxu0 0
        %4071 = vmatpush1.bf16.msra.mxu0 0
        %4072 = vmatprep.subr.bf16.mxu0 0
        %4073 = vmatpush1.bf16.msra.mxu0 0
        %4074 = vmatprep.subr.bf16.mxu0 0
        %4075 = vmatpush1.bf16.msra.mxu0 0
        %4076 = vmatprep.subr.bf16.mxu0 0
        %4077 = vmatpush1.bf16.msra.mxu0 0
        %4078 = vmatprep.subr.bf16.mxu0 0
        %4079 = vmatpush1.bf16.msra.mxu0 0
        %4080 = vmatprep.subr.bf16.mxu0 0
        %4081 = vmatpush1.bf16.msra.mxu0 0
        %4082 = vmatprep.subr.bf16.mxu0 0
        %4083 = vmatpush1.bf16.msra.mxu0 0
        %4084 = vmatprep.mubr.bf16.mxu0 0
        %4085 = vmatmul.mubr.bf16.gmra.mrb[0].mxu0 %v4047
        %v4086 = vpop.f32.mrb[0].mxu0
        %v4087 = vadd.f32 0.0, %v4086
        %v4088 = vpop.f32.mrb[0].mxu0
        %v4089 = vpop.f32.mrb[0].mxu0
        %v4090 = vpop.f32.mrb[0].mxu0
        %4091 = vdwg.mxu0
        %v4093 = vsel %vm2385, %v3949, 0
        %v4096 = vsel %vm2441, %v3953, 0
        %4098 = vmatprep.subr.bf16.mxu0 0
        %4099 = vmatpush1.bf16.msra.mxu0 %v4096
        %4100 = vmatprep.subr.bf16.mxu0 0
        %4101 = vmatpush1.bf16.msra.mxu0 0
        %4102 = vmatprep.subr.bf16.mxu0 0
        %4103 = vmatpush1.bf16.msra.mxu0 0
        %4104 = vmatprep.subr.bf16.mxu0 0
        %4105 = vmatpush1.bf16.msra.mxu0 0
        %4106 = vmatprep.subr.bf16.mxu0 0
        %4107 = vmatpush1.bf16.msra.mxu0 0
        %4108 = vmatprep.subr.bf16.mxu0 0
        %4109 = vmatpush1.bf16.msra.mxu0 0
        %4110 = vmatprep.subr.bf16.mxu0 0
        %4111 = vmatpush1.bf16.msra.mxu0 0
        %4112 = vmatprep.subr.bf16.mxu0 0
        %4113 = vmatpush1.bf16.msra.mxu0 0
        %4114 = vmatprep.subr.bf16.mxu0 0
        %4115 = vmatpush1.bf16.msra.mxu0 0
        %4116 = vmatprep.subr.bf16.mxu0 0
        %4117 = vmatpush1.bf16.msra.mxu0 0
        %4118 = vmatprep.subr.bf16.mxu0 0
        %4119 = vmatpush1.bf16.msra.mxu0 0
        %4120 = vmatprep.subr.bf16.mxu0 0
        %4121 = vmatpush1.bf16.msra.mxu0 0
        %4122 = vmatprep.subr.bf16.mxu0 0
        %4123 = vmatpush1.bf16.msra.mxu0 0
        %4124 = vmatprep.subr.bf16.mxu0 0
        %4125 = vmatpush1.bf16.msra.mxu0 0
        %4126 = vmatprep.subr.bf16.mxu0 0
        %4127 = vmatpush1.bf16.msra.mxu0 0
        %4128 = vmatprep.subr.bf16.mxu0 0
        %4129 = vmatpush1.bf16.msra.mxu0 0
        %4130 = vmatprep.mubr.bf16.mxu0 0
        %4131 = vmatmul.mubr.bf16.gmra.mrb[0].mxu0 %v4093
        %v4132 = vpop.f32.mrb[0].mxu0
        %v4133 = vadd.f32 0.0, %v4132
        %v4134 = vpop.f32.mrb[0].mxu0
        %v4135 = vpop.f32.mrb[0].mxu0
        %v4136 = vpop.f32.mrb[0].mxu0
        %4137 = vdwg.mxu0
        %v4138 = vcombine.low %v3995, %v4087
        %v4139 = vcombine.high %v3995, %v4087
        %v4141 = vunpack.c.l.s4 1983009808
        %v4142 = vunpack.c.0.s8 %v4141
        %v4143 = vlaneseq
        %v4144 = vshrl.u32 %v4143, 7
        %v4145 = vsub.s32 %v4142, %v4144
        %v4146 = vrot.slane %v4138, %v4145
        %v4148 = vunpack.c.l.s4 1983009808
        %v4149 = vunpack.c.0.s8 %v4148
        %v4150 = vlaneseq
        %v4151 = vshrl.u32 %v4150, 7
        %v4152 = vsub.s32 %v4149, %v4151
        %v4153 = vrot.slane %v4139, %v4152
        %v4154 = vcombine.low %v4041, %v4133
        %v4155 = vcombine.high %v4041, %v4133
        %v4157 = vunpack.c.l.s4 1983009808
        %v4158 = vunpack.c.0.s8 %v4157
        %v4159 = vlaneseq
        %v4160 = vshrl.u32 %v4159, 7
        %v4161 = vsub.s32 %v4158, %v4160
        %v4162 = vrot.slane %v4154, %v4161
        %v4164 = vunpack.c.l.s4 1983009808
        %v4165 = vunpack.c.0.s8 %v4164
        %v4166 = vlaneseq
        %v4167 = vshrl.u32 %v4166, 7
        %v4168 = vsub.s32 %v4165, %v4167
        %v4169 = vrot.slane %v4155, %v4168
        %v4170 = vcombine.low %v4146, %v4162
        %v4171 = vcombine.high %v4146, %v4162
        %v4173 = vunpack.c.l.s4 1934713408
        %v4174 = vunpack.c.0.s8 %v4173
        %v4175 = vlaneseq
        %v4176 = vshrl.u32 %v4175, 7
        %v4177 = vsub.s32 %v4174, %v4176
        %v4178 = vrot.slane %v4170, %v4177
        %v4180 = vunpack.c.l.s4 1934713408
        %v4181 = vunpack.c.0.s8 %v4180
        %v4182 = vlaneseq
        %v4183 = vshrl.u32 %v4182, 7
        %v4184 = vsub.s32 %v4181, %v4183
        %v4185 = vrot.slane %v4171, %v4184
        %v4186 = vcombine.low %v4153, %v4169
        %v4187 = vcombine.high %v4153, %v4169
        %v4189 = vunpack.c.l.s4 1934713408
        %v4190 = vunpack.c.0.s8 %v4189
        %v4191 = vlaneseq
        %v4192 = vshrl.u32 %v4191, 7
        %v4193 = vsub.s32 %v4190, %v4192
        %v4194 = vrot.slane %v4186, %v4193
        %v4196 = vunpack.c.l.s4 1934713408
        %v4197 = vunpack.c.0.s8 %v4196
        %v4198 = vlaneseq
        %v4199 = vshrl.u32 %v4198, 7
        %v4200 = vsub.s32 %v4197, %v4199
        %v4201 = vrot.slane %v4187, %v4200
        %v4202 = vcombine.high %v4178, 0.0
        %v4203 = vcombine.high %v4185, 0.0
        %v4204 = vcombine.high %v4194, 0.0
        %v4205 = vcombine.high %v4201, 0.0
        %v4206 = vcombine.low %v4178, %v4185
        %v4208 = vunpack.c.l.s4 1983009808
        %v4209 = vunpack.c.0.s8 %v4208
        %v4210 = vlaneseq
        %v4211 = vshrl.u32 %v4210, 7
        %v4212 = vsub.s32 %v4209, %v4211
        %v4213 = vrot.slane %v4206, %v4212
        %v4214 = vcombine.low %v4202, %v4203
        %v4216 = vunpack.c.l.s4 1983009808
        %v4217 = vunpack.c.0.s8 %v4216
        %v4218 = vlaneseq
        %v4219 = vshrl.u32 %v4218, 7
        %v4220 = vsub.s32 %v4217, %v4219
        %v4221 = vrot.slane %v4214, %v4220
        %v4222 = vcombine.low %v4194, %v4201
        %v4224 = vunpack.c.l.s4 1983009808
        %v4225 = vunpack.c.0.s8 %v4224
        %v4226 = vlaneseq
        %v4227 = vshrl.u32 %v4226, 7
        %v4228 = vsub.s32 %v4225, %v4227
        %v4229 = vrot.slane %v4222, %v4228
        %v4230 = vcombine.low %v4204, %v4205
        %v4232 = vunpack.c.l.s4 1983009808
        %v4233 = vunpack.c.0.s8 %v4232
        %v4234 = vlaneseq
        %v4235 = vshrl.u32 %v4234, 7
        %v4236 = vsub.s32 %v4233, %v4235
        %v4237 = vrot.slane %v4230, %v4236
        %v4238 = vcombine.low %v4213, %v4221
        %v4239 = vcombine.high %v4213, %v4221
        %v4241 = vunpack.c.l.s4 1934713408
        %v4242 = vunpack.c.0.s8 %v4241
        %v4243 = vlaneseq
        %v4244 = vshrl.u32 %v4243, 7
        %v4245 = vsub.s32 %v4242, %v4244
        %v4246 = vrot.slane %v4238, %v4245
        %v4248 = vunpack.c.l.s4 1934713408
        %v4249 = vunpack.c.0.s8 %v4248
        %v4250 = vlaneseq
        %v4251 = vshrl.u32 %v4250, 7
        %v4252 = vsub.s32 %v4249, %v4251
        %v4253 = vrot.slane %v4239, %v4252
        %v4254 = vcombine.low %v4229, %v4237
        %v4255 = vcombine.high %v4229, %v4237
        %v4257 = vunpack.c.l.s4 1934713408
        %v4258 = vunpack.c.0.s8 %v4257
        %v4259 = vlaneseq
        %v4260 = vshrl.u32 %v4259, 7
        %v4261 = vsub.s32 %v4258, %v4260
        %v4262 = vrot.slane %v4254, %v4261
        %v4264 = vunpack.c.l.s4 1934713408
        %v4265 = vunpack.c.0.s8 %v4264
        %v4266 = vlaneseq
        %v4267 = vshrl.u32 %v4266, 7
        %v4268 = vsub.s32 %v4265, %v4267
        %v4269 = vrot.slane %v4255, %v4268
        %v4270 = vcombine.low %v4246, %v4262
        %v4271 = vcombine.high %v4246, %v4262
        %v4272 = vcombine.low %v4253, %v4269
        %v4273 = vcombine.high %v4253, %v4269
        %4275 = vrot.lane.b32.xlu0 %v4271, 32
        %v4276 = vpop.permute.xlu0 %4275
        %4279 = vrot.lane.b32.xlu0 %v4272, 64
        %v4280 = vpop.permute.xlu0 %4279
        %4283 = vrot.lane.b32.xlu0 %v4273, 96
        %v4284 = vpop.permute.xlu0 %4283
        %v4286 = vsel %vm2191, %v4270, %v4276
        %v4287 = vsel %vm2772, %v4286, %v4280
        %v4288 = vsel %vm2774, %v4287, %v4284
        %v4289 = vpack.c.bf16 %v4288, %v4288
        %v4306 = vunpack.c.l.b16 %v2958
        %v4307 = vunpack.c.l.b16 %v2959
        %v4308 = vunpack.c.l.b16 %v2960
        %v4309 = vunpack.c.l.b16 %v2961
        %v4310 = vunpack.c.l.b16 %v2962
        %v4311 = vunpack.c.l.b16 %v2963
        %v4312 = vunpack.c.l.b16 %v2964
        %v4313 = vunpack.c.l.b16 %v2965
        %v4314 = vunpack.c.l.b16 %v2966
        %v4315 = vunpack.c.l.b16 %v2967
        %v4316 = vunpack.c.l.b16 %v2968
        %v4317 = vunpack.c.l.b16 %v2969
        %v4318 = vunpack.c.l.b16 %v2970
        %v4319 = vunpack.c.l.b16 %v2971
        %v4320 = vunpack.c.l.b16 %v2972
        %v4321 = vunpack.c.l.b16 %v2973
        %v4322 = vpack.c.b16 %v4307, %v4306
        %v4323 = vpack.c.b16 %v4309, %v4308
        %v4324 = vpack.c.b16 %v4311, %v4310
        %v4325 = vpack.c.b16 %v4313, %v4312
        %v4326 = vpack.c.b16 %v4315, %v4314
        %v4327 = vpack.c.b16 %v4317, %v4316
        %v4328 = vpack.c.b16 %v4319, %v4318
        %v4329 = vpack.c.b16 %v4321, %v4320
        %4338 = vmatprep.subr.bf16.mxu0 0
        %4339 = vmatpush1.bf16.msra.mxu0 %v4322
        %4340 = vmatprep.subr.bf16.mxu0 0
        %4341 = vmatpush1.bf16.msra.mxu0 %v4323
        %4342 = vmatprep.subr.bf16.mxu0 0
        %4343 = vmatpush1.bf16.msra.mxu0 %v4324
        %4344 = vmatprep.subr.bf16.mxu0 0
        %4345 = vmatpush1.bf16.msra.mxu0 %v4325
        %4346 = vmatprep.subr.bf16.mxu0 0
        %4347 = vmatpush1.bf16.msra.mxu0 %v4326
        %4348 = vmatprep.subr.bf16.mxu0 0
        %4349 = vmatpush1.bf16.msra.mxu0 %v4327
        %4350 = vmatprep.subr.bf16.mxu0 0
        %4351 = vmatpush1.bf16.msra.mxu0 %v4328
        %4352 = vmatprep.subr.bf16.mxu0 0
        %4353 = vmatpush1.bf16.msra.mxu0 %v4329
        %4354 = vmatprep.subr.bf16.mxu0 0
        %4355 = vmatpush1.bf16.msra.mxu0 0
        %4356 = vmatprep.subr.bf16.mxu0 0
        %4357 = vmatpush1.bf16.msra.mxu0 0
        %4358 = vmatprep.subr.bf16.mxu0 0
        %4359 = vmatpush1.bf16.msra.mxu0 0
        %4360 = vmatprep.subr.bf16.mxu0 0
        %4361 = vmatpush1.bf16.msra.mxu0 0
        %4362 = vmatprep.subr.bf16.mxu0 0
        %4363 = vmatpush1.bf16.msra.mxu0 0
        %4364 = vmatprep.subr.bf16.mxu0 0
        %4365 = vmatpush1.bf16.msra.mxu0 0
        %4366 = vmatprep.subr.bf16.mxu0 0
        %4367 = vmatpush1.bf16.msra.mxu0 0
        %4368 = vmatprep.subr.bf16.mxu0 0
        %4369 = vmatpush1.bf16.msra.mxu0 0
        %4370 = vmatprep.mubr.bf16.mxu0 0
        %4371 = vmatmul.mubr.bf16.gmra.mrb[0].mxu0 %v4289
        %v4372 = vpop.f32.mrb[0].mxu0
        %v4373 = vadd.f32 0.0, %v4372
        %v4374 = vpop.f32.mrb[0].mxu0
        %v4375 = vpop.f32.mrb[0].mxu0
        %v4376 = vpop.f32.mrb[0].mxu0
        %4377 = vdwg.mxu0
        %v4378 = vadd.f32 %v2872, %v4373
        %v4380 = vlaneseq
        %v4381 = vshrl.u32 %v4380, 7
        %v4382 = vsub.s32 0, %v4381
        %v4383 = vrot.slane %v2977, %v4382
        %v4385 = vadd.f32 %v4378, %v4383
        %v4386 = vld [vmem:[#allocation14] sm:$0x1]
        %v4387 = vld [vmem:[#allocation16] sm:$0x1]
        %4388 = vadd.xlane.f32.xlu0 %v4385
        %v4389 = vpop.xlane.xlu0 %4388
        %v4390 = vmul.f32 %v4389, %v1359
        %v4391 = vsub.f32 %v4385, %v4390
        %v4392 = vmul.f32 %v4391, %v4391
        %4393 = vadd.xlane.f32.xlu0 %v4392
        %v4394 = vpop.xlane.xlu0 %4393
        %v4395 = vmul.f32 %v4394, 0.007874016
        %v4396 = vrsqrt.pop %v4395
        %v4397 = vmul.f32 %v4395, %v4396
        %vm4398 = vcmp.eq.f32.partialorder %v4395, inf
        %v4399 = vsel %vm4398, %v4395, %v4397
        %vm4400 = vcmp.eq.f32.partialorder %v4395, 0.0
        %v4401 = vand.u32 %v4395, 2147483648
        %v4402 = vsel %vm4400, %v4401, %v4399
        %v4403 = vadd.f32 %v4402, 1e-06
        %v4404 = vrcp.pop %v4403
        %v4405 = vmul.f32 %v4403, %v4404
        %v4406 = vsub.f32 2.0, %v4405
        %v4407 = vmul.f32 %v4404, %v4406
        %v4408 = vmul.f32 %v4391, %v4407
        %v4410 = vlaneseq
        %v4411 = vshrl.u32 %v4410, 7
        %v4412 = vsub.s32 0, %v4411
        %v4413 = vrot.slane %v4386, %v4412
        %v4415 = vmul.f32 %v4413, %v4408
        %v4417 = vlaneseq
        %v4418 = vshrl.u32 %v4417, 7
        %v4419 = vsub.s32 0, %v4418
        %v4420 = vrot.slane %v4387, %v4419
        %v4422 = vadd.f32 %v4415, %v4420
        %v4423 = vld [vmem:[#allocation34] sm:$0xff]
        %v4424 = vld [vmem:[#allocation34 + $0x8] sm:$0xff]
        %v4425 = vld [vmem:[#allocation34 + $0x10] sm:$0xff]
        %v4426 = vld [vmem:[#allocation34 + $0x18] sm:$0xff]
        %v4427 = vld [vmem:[#allocation34 + $0x20] sm:$0xff]
        %v4428 = vld [vmem:[#allocation34 + $0x28] sm:$0xff]
        %v4429 = vld [vmem:[#allocation34 + $0x30] sm:$0xff]
        %v4430 = vld [vmem:[#allocation34 + $0x38] sm:$0xff]
        %v4431 = vld [vmem:[#allocation34 + $0x40] sm:$0xff]
        %v4432 = vld [vmem:[#allocation34 + $0x48] sm:$0xff]
        %v4433 = vld [vmem:[#allocation34 + $0x50] sm:$0xff]
        %v4434 = vld [vmem:[#allocation34 + $0x58] sm:$0xff]
        %v4435 = vld [vmem:[#allocation34 + $0x60] sm:$0xff]
        %v4436 = vld [vmem:[#allocation34 + $0x68] sm:$0xff]
        %v4437 = vld [vmem:[#allocation34 + $0x70] sm:$0xff]
        %v4438 = vld [vmem:[#allocation34 + $0x78] sm:$0xff]
        %v4439 = vld [vmem:[%s55] sm:$0x3]
        %v4440 = vld [vmem:[#allocation35] sm:$0xf]
        %v4441 = vld [vmem:[#allocation35 + $0x4] sm:$0xf]
        %v4442 = vld [vmem:[#allocation35 + $0x8] sm:$0xf]
        %v4443 = vld [vmem:[#allocation35 + $0xc] sm:$0xf]
        %v4444 = vld [vmem:[#allocation35 + $0x10] sm:$0xf]
        %v4445 = vld [vmem:[#allocation35 + $0x14] sm:$0xf]
        %v4446 = vld [vmem:[#allocation35 + $0x18] sm:$0xf]
        %v4447 = vld [vmem:[#allocation35 + $0x1c] sm:$0xf]
        %v4448 = vld [vmem:[#allocation35 + $0x20] sm:$0xf]
        %v4449 = vld [vmem:[#allocation35 + $0x24] sm:$0xf]
        %v4450 = vld [vmem:[#allocation35 + $0x28] sm:$0xf]
        %v4451 = vld [vmem:[#allocation35 + $0x2c] sm:$0xf]
        %v4452 = vld [vmem:[#allocation35 + $0x30] sm:$0xf]
        %v4453 = vld [vmem:[#allocation35 + $0x34] sm:$0xf]
        %v4454 = vld [vmem:[#allocation35 + $0x38] sm:$0xf]
        %v4455 = vld [vmem:[#allocation35 + $0x3c] sm:$0xf]
        %v4456 = vld [vmem:[#allocation35 + $0x40] sm:$0xf]
        %v4457 = vld [vmem:[#allocation35 + $0x44] sm:$0xf]
        %v4458 = vld [vmem:[#allocation35 + $0x48] sm:$0xf]
        %v4459 = vld [vmem:[#allocation35 + $0x4c] sm:$0xf]
        %v4460 = vld [vmem:[#allocation35 + $0x50] sm:$0xf]
        %v4461 = vld [vmem:[#allocation35 + $0x54] sm:$0xf]
        %v4462 = vld [vmem:[#allocation35 + $0x58] sm:$0xf]
        %v4463 = vld [vmem:[#allocation35 + $0x5c] sm:$0xf]
        %v4464 = vld [vmem:[#allocation35 + $0x60] sm:$0xf]
        %v4465 = vld [vmem:[#allocation35 + $0x64] sm:$0xf]
        %v4466 = vld [vmem:[#allocation35 + $0x68] sm:$0xf]
        %v4467 = vld [vmem:[#allocation35 + $0x6c] sm:$0xf]
        %v4468 = vld [vmem:[#allocation35 + $0x70] sm:$0xf]
        %v4469 = vld [vmem:[#allocation35 + $0x74] sm:$0xf]
        %v4470 = vld [vmem:[#allocation35 + $0x78] sm:$0xf]
        %v4471 = vld [vmem:[#allocation35 + $0x7c] sm:$0xf]
        %v4472 = vld [vmem:[%s59] sm:$0x1]
        %v4473 = vpack.c.bf16 %v4422, %v4422
        %v4475 = vlaneseq
        %v4476 = vshrl.u32 %v4475, 7
        %v4477 = vsub.s32 0, %v4476
        %v4478 = vrot.slane %v4439, %v4477
        %v4479 = vlaneseq
        %v4480 = vshrl.u32 %v4479, 7
        %v4481 = vsub.s32 1, %v4480
        %v4482 = vrot.slane %v4439, %v4481
        %v4501 = vunpack.c.l.b16 %v4423
        %v4502 = vunpack.c.h.b16 %v4423
        %v4503 = vunpack.c.l.b16 %v4424
        %v4504 = vunpack.c.h.b16 %v4424
        %v4505 = vunpack.c.l.b16 %v4425
        %v4506 = vunpack.c.h.b16 %v4425
        %v4507 = vunpack.c.l.b16 %v4426
        %v4508 = vunpack.c.h.b16 %v4426
        %v4509 = vunpack.c.l.b16 %v4427
        %v4510 = vunpack.c.h.b16 %v4427
        %v4511 = vunpack.c.l.b16 %v4428
        %v4512 = vunpack.c.h.b16 %v4428
        %v4513 = vunpack.c.l.b16 %v4429
        %v4514 = vunpack.c.h.b16 %v4429
        %v4515 = vunpack.c.l.b16 %v4430
        %v4516 = vunpack.c.h.b16 %v4430
        %v4517 = vunpack.c.l.b16 %v4431
        %v4518 = vunpack.c.h.b16 %v4431
        %v4519 = vunpack.c.l.b16 %v4432
        %v4520 = vunpack.c.h.b16 %v4432
        %v4521 = vunpack.c.l.b16 %v4433
        %v4522 = vunpack.c.h.b16 %v4433
        %v4523 = vunpack.c.l.b16 %v4434
        %v4524 = vunpack.c.h.b16 %v4434
        %v4525 = vunpack.c.l.b16 %v4435
        %v4526 = vunpack.c.h.b16 %v4435
        %v4527 = vunpack.c.l.b16 %v4436
        %v4528 = vunpack.c.h.b16 %v4436
        %v4529 = vunpack.c.l.b16 %v4437
        %v4530 = vunpack.c.h.b16 %v4437
        %v4531 = vunpack.c.l.b16 %v4438
        %v4532 = vunpack.c.h.b16 %v4438
        %v4533 = vpack.c.b16 %v4503, %v4501
        %v4534 = vpack.c.b16 %v4504, %v4502
        %v4535 = vpack.c.b16 %v4507, %v4505
        %v4536 = vpack.c.b16 %v4508, %v4506
        %v4537 = vpack.c.b16 %v4511, %v4509
        %v4538 = vpack.c.b16 %v4512, %v4510
        %v4539 = vpack.c.b16 %v4515, %v4513
        %v4540 = vpack.c.b16 %v4516, %v4514
        %v4541 = vpack.c.b16 %v4519, %v4517
        %v4542 = vpack.c.b16 %v4520, %v4518
        %v4543 = vpack.c.b16 %v4523, %v4521
        %v4544 = vpack.c.b16 %v4524, %v4522
        %v4545 = vpack.c.b16 %v4527, %v4525
        %v4546 = vpack.c.b16 %v4528, %v4526
        %v4547 = vpack.c.b16 %v4531, %v4529
        %v4548 = vpack.c.b16 %v4532, %v4530
        %4565 = vmatprep.subr.bf16.mxu0 %v4534
        %4566 = vmatpush1.bf16.msra.mxu0 %v4533
        %4567 = vmatprep.subr.bf16.mxu0 %v4536
        %4568 = vmatpush1.bf16.msra.mxu0 %v4535
        %4569 = vmatprep.subr.bf16.mxu0 %v4538
        %4570 = vmatpush1.bf16.msra.mxu0 %v4537
        %4571 = vmatprep.subr.bf16.mxu0 %v4540
        %4572 = vmatpush1.bf16.msra.mxu0 %v4539
        %4573 = vmatprep.subr.bf16.mxu0 %v4542
        %4574 = vmatpush1.bf16.msra.mxu0 %v4541
        %4575 = vmatprep.subr.bf16.mxu0 %v4544
        %4576 = vmatpush1.bf16.msra.mxu0 %v4543
        %4577 = vmatprep.subr.bf16.mxu0 %v4546
        %4578 = vmatpush1.bf16.msra.mxu0 %v4545
        %4579 = vmatprep.subr.bf16.mxu0 %v4548
        %4580 = vmatpush1.bf16.msra.mxu0 %v4547
        %4581 = vmatprep.subr.bf16.mxu0 0
        %4582 = vmatpush1.bf16.msra.mxu0 0
        %4583 = vmatprep.subr.bf16.mxu0 0
        %4584 = vmatpush1.bf16.msra.mxu0 0
        %4585 = vmatprep.subr.bf16.mxu0 0
        %4586 = vmatpush1.bf16.msra.mxu0 0
        %4587 = vmatprep.subr.bf16.mxu0 0
        %4588 = vmatpush1.bf16.msra.mxu0 0
        %4589 = vmatprep.subr.bf16.mxu0 0
        %4590 = vmatpush1.bf16.msra.mxu0 0
        %4591 = vmatprep.subr.bf16.mxu0 0
        %4592 = vmatpush1.bf16.msra.mxu0 0
        %4593 = vmatprep.subr.bf16.mxu0 0
        %4594 = vmatpush1.bf16.msra.mxu0 0
        %4595 = vmatprep.subr.bf16.mxu0 0
        %4596 = vmatpush1.bf16.msra.mxu0 0
        %4597 = vmatprep.mubr.bf16.mxu0 0
        %4598 = vmatmul.mubr.bf16.gmra.mrb[0].mxu0 %v4473
        %v4599 = vpop.f32.mrb[0].mxu0
        %v4600 = vadd.f32 %v4478, %v4599
        %v4601 = vpop.f32.mrb[0].mxu0
        %v4602 = vadd.f32 %v4482, %v4601
        %v4603 = vpop.f32.mrb[0].mxu0
        %v4604 = vpop.f32.mrb[0].mxu0
        %4605 = vdwg.mxu0
        %v4606 = vmax.f32 %v4600, 0.0
        %v4607 = vmax.f32 %v4602, 0.0
        %v4608 = vpack.c.bf16 %v4606, %v4606
        %v4609 = vpack.c.bf16 %v4607, %v4607
        %v4611 = vlaneseq
        %v4612 = vshrl.u32 %v4611, 7
        %v4613 = vsub.s32 0, %v4612
        %v4614 = vrot.slane %v4472, %v4613
        %v4648 = vunpack.c.l.b16 %v4440
        %v4649 = vunpack.c.l.b16 %v4441
        %v4650 = vunpack.c.l.b16 %v4442
        %v4651 = vunpack.c.l.b16 %v4443
        %v4652 = vunpack.c.l.b16 %v4444
        %v4653 = vunpack.c.l.b16 %v4445
        %v4654 = vunpack.c.l.b16 %v4446
        %v4655 = vunpack.c.l.b16 %v4447
        %v4656 = vunpack.c.l.b16 %v4448
        %v4657 = vunpack.c.l.b16 %v4449
        %v4658 = vunpack.c.l.b16 %v4450
        %v4659 = vunpack.c.l.b16 %v4451
        %v4660 = vunpack.c.l.b16 %v4452
        %v4661 = vunpack.c.l.b16 %v4453
        %v4662 = vunpack.c.l.b16 %v4454
        %v4663 = vunpack.c.l.b16 %v4455
        %v4664 = vunpack.c.l.b16 %v4456
        %v4665 = vunpack.c.l.b16 %v4457
        %v4666 = vunpack.c.l.b16 %v4458
        %v4667 = vunpack.c.l.b16 %v4459
        %v4668 = vunpack.c.l.b16 %v4460
        %v4669 = vunpack.c.l.b16 %v4461
        %v4670 = vunpack.c.l.b16 %v4462
        %v4671 = vunpack.c.l.b16 %v4463
        %v4672 = vunpack.c.l.b16 %v4464
        %v4673 = vunpack.c.l.b16 %v4465
        %v4674 = vunpack.c.l.b16 %v4466
        %v4675 = vunpack.c.l.b16 %v4467
        %v4676 = vunpack.c.l.b16 %v4468
        %v4677 = vunpack.c.l.b16 %v4469
        %v4678 = vunpack.c.l.b16 %v4470
        %v4679 = vunpack.c.l.b16 %v4471
        %v4680 = vpack.c.b16 %v4649, %v4648
        %v4681 = vpack.c.b16 %v4651, %v4650
        %v4682 = vpack.c.b16 %v4653, %v4652
        %v4683 = vpack.c.b16 %v4655, %v4654
        %v4684 = vpack.c.b16 %v4657, %v4656
        %v4685 = vpack.c.b16 %v4659, %v4658
        %v4686 = vpack.c.b16 %v4661, %v4660
        %v4687 = vpack.c.b16 %v4663, %v4662
        %v4688 = vpack.c.b16 %v4665, %v4664
        %v4689 = vpack.c.b16 %v4667, %v4666
        %v4690 = vpack.c.b16 %v4669, %v4668
        %v4691 = vpack.c.b16 %v4671, %v4670
        %v4692 = vpack.c.b16 %v4673, %v4672
        %v4693 = vpack.c.b16 %v4675, %v4674
        %v4694 = vpack.c.b16 %v4677, %v4676
        %v4695 = vpack.c.b16 %v4679, %v4678
        %4712 = vmatprep.subr.bf16.mxu0 0
        %4713 = vmatpush1.bf16.msra.mxu0 %v4680
        %4714 = vmatprep.subr.bf16.mxu0 0
        %4715 = vmatpush1.bf16.msra.mxu0 %v4681
        %4716 = vmatprep.subr.bf16.mxu0 0
        %4717 = vmatpush1.bf16.msra.mxu0 %v4682
        %4718 = vmatprep.subr.bf16.mxu0 0
        %4719 = vmatpush1.bf16.msra.mxu0 %v4683
        %4720 = vmatprep.subr.bf16.mxu0 0
        %4721 = vmatpush1.bf16.msra.mxu0 %v4684
        %4722 = vmatprep.subr.bf16.mxu0 0
        %4723 = vmatpush1.bf16.msra.mxu0 %v4685
        %4724 = vmatprep.subr.bf16.mxu0 0
        %4725 = vmatpush1.bf16.msra.mxu0 %v4686
        %4726 = vmatprep.subr.bf16.mxu0 0
        %4727 = vmatpush1.bf16.msra.mxu0 %v4687
        %4728 = vmatprep.subr.bf16.mxu0 0
        %4729 = vmatpush1.bf16.msra.mxu0 %v4688
        %4730 = vmatprep.subr.bf16.mxu0 0
        %4731 = vmatpush1.bf16.msra.mxu0 %v4689
        %4732 = vmatprep.subr.bf16.mxu0 0
        %4733 = vmatpush1.bf16.msra.mxu0 %v4690
        %4734 = vmatprep.subr.bf16.mxu0 0
        %4735 = vmatpush1.bf16.msra.mxu0 %v4691
        %4736 = vmatprep.subr.bf16.mxu0 0
        %4737 = vmatpush1.bf16.msra.mxu0 %v4692
        %4738 = vmatprep.subr.bf16.mxu0 0
        %4739 = vmatpush1.bf16.msra.mxu0 %v4693
        %4740 = vmatprep.subr.bf16.mxu0 0
        %4741 = vmatpush1.bf16.msra.mxu0 %v4694
        %4742 = vmatprep.subr.bf16.mxu0 0
        %4743 = vmatpush1.bf16.msra.mxu0 %v4695
        %4744 = vmatprep.mubr.bf16.mxu0 %v4609
        %4745 = vmatmul.mubr.bf16.gmra.mrb[0].mxu0 %v4608
        %v4746 = vpop.f32.mrb[0].mxu0
        %v4747 = vadd.f32 %v4614, %v4746
        %v4748 = vpop.f32.mrb[0].mxu0
        %v4749 = vpop.f32.mrb[0].mxu0
        %v4750 = vpop.f32.mrb[0].mxu0
        %4751 = vdwg.mxu0
        %v4752 = vadd.f32 %v4385, %v4747
        %4753 = vst [vmem:[%s1341] sm:$0xff] %v4752
        %s4754 = sand.u32 %s795, 1
        %s4755 = scalar_lea.sflag [#allocation4], %s4754
        %s4756 = sand.u32 %s795, 1
        %s4757 = smul.addr %s4756, 8
        %s4758 = scalar_lea.vmem [#allocation37], %s4757
        // Predicated region
        $region237: #{tpu_custom_call.1} parent=147 // pred_check
          %p4759 = pneg %p805
        $region238: #{tpu_custom_call.1} parent=147 // pred_check_branch
          %4761 = sbr.rel (%p4759) target = $region240
        $region239: #{tpu_custom_call.1} parent=147 // pred_region
          %s4763 = ssub.s32 128, 128
          %4764 = vsyncadd %s4755, %s4763
          %s4765 = smul.addr %s95, 128
          %s4766 = scalar_lea.hbm %s65, %s4765
          %s4768 = sshll.u32 %s4758, 4
          %s4769 = int_to_ptr.vmem [resolvable:$true] %s4768
          %4771 = dma.vmem_to_hbm [thread:$0]  %s4769, 128, %s4766, %s4755
        $region240: #{tpu_custom_call.1} parent=147 // pred_fallthru
          _
      $region148: #{tpu_custom_call.1} parent=5 // pred_fallthru
        _
      %p4772 = scmp.le.s32.totalorder 2, %s90
      // Predicated region
      $region241: #{tpu_custom_call.1} parent=5 // pred_check
        %p4773 = pneg %p4772
      $region242: #{tpu_custom_call.1} parent=5 // pred_check_branch
        %4775 = sbr.rel (%p4773) target = $region244
      $region243: #{tpu_custom_call.1} parent=5 // pred_region
        %s4776 = ssub.s32 %s90, 2
        // Predicated region
        $region245: #{tpu_custom_call.1} parent=243 // pred_check
          %p4777 = pneg %p811
        $region246: #{tpu_custom_call.1} parent=243 // pred_check_branch
          %4779 = sbr.rel (%p4777) target = $region248
        $region247: #{tpu_custom_call.1} parent=243 // pred_region
          %s4780 = sand.u32 %s796, 1
          %s4781 = scalar_lea.sflag [#allocation4], %s4780
          %s4782 = sand.u32 %s796, 1
          %s4783 = smul.addr %s4782, 8
          %s4784 = scalar_lea.vmem [#allocation37], %s4783
          %4785 = dma.done %s4781, 128
        $region248: #{tpu_custom_call.1} parent=243 // pred_fallthru
          _
      $region244: #{tpu_custom_call.1} parent=5 // pred_fallthru
        _
    $region6: #{tpu_custom_call.1} parent=1 // loop_footer
      %s94 = sadd.s32 1, %s90
    $region7: #{tpu_custom_call.1} parent=1 // loop_footer_branch
      %89 = sbr.rel target = $region3
    $region8: #{tpu_custom_call.1} parent=1 // loop_exit
      _
    %4786 = vsyncpa [#allocation3], 1
    %s4787 = scalar_lea.sflag [#allocation3], 1
    %4788 = vsyncpa %s4787, 1
    %4789 = vsyncpa [#allocation6], 1
    %s4790 = scalar_lea.sflag [#allocation6], 1
    %4791 = vsyncpa %s4790, 1
    %4792 = vsyncpa [#allocation9], 1
    %4793 = vsyncpa [#allocation12], 1
    %4794 = vsyncpa [#allocation15], 1
    %4795 = vsyncpa [#allocation18], 1
    %4796 = vsyncpa [#allocation21], 1
    %4797 = vsyncpa [#allocation24], 1
    %4798 = vsyncpa [#allocation27], 1
    %4799 = vsyncpa [#allocation30], 1
    %4800 = vsyncpa [#allocation33], 1
    %4801 = vsyncpa [#allocation36], 1
    %4802 = vsyncpa [#allocation4], 1
    %s4803 = scalar_lea.sflag [#allocation4], 1
    %4804 = vsyncpa %s4803, 1

</llo_original>
